<compile_context>
chip_gen: v7x
topology: tpu7x:2x2x1
jax: 0.10.0
libtpu: 0.0.40
codegen_flags: <defaults>
</compile_context>

<pallas_src>
import functools

import jax
import jax.numpy as jnp
from jax.experimental import pallas as pl
from jax.experimental.pallas import tpu as pltpu


def _silu(y):
    # exp and approx-reciprocal both lower to the EUP slot -> keeps the large
    # (rows x 1280) epilogue off the VPU critical path.
    return y * pl.reciprocal(1.0 + jnp.exp(-y), approx=True)


# --------------------------- single fused kernel (per siamese branch) ---------------------------
def fused_kernel(p_ref, sw_ref, sb_ref, hw_ref, hb_ref,
                 w1_ref, b1_ref, w2_ref, b2_ref, o_ref,
                 *, half, spatial):
    # ---- stem conv as im2col matmul: (rows, 9) @ (9, 32), BN scale pre-folded into weights.
    # K=9 / N=32 is tiny for the MXU, but it is a single pass inside the fused kernel and
    # off the critical path; result stays in VMEM (never hits HBM at 32-lane width).
    stem = jnp.dot(p_ref[0], sw_ref[...], preferred_element_type=jnp.float32)
    stem = _silu(stem + sb_ref[...])                                    # (rows, 32) f32

    # ---- 1x1 head conv 32 -> 1280 (+ folded-BN bias) + SiLU, single matmul over all rows.
    head = jnp.dot(stem.astype(jnp.bfloat16), hw_ref[...],
                   preferred_element_type=jnp.float32)
    head = _silu(head + hb_ref[...])                                    # (rows, 1280) f32

    # ---- AdaptiveAvgPool2d((1,1)): per-image mean over the spatial rows (XLU reduce).
    pooled = jnp.mean(head.reshape(half, spatial, head.shape[-1]), axis=1)   # (half, 1280)

    # ---- fc: Linear(1280, 512) -> ReLU -> Linear(512, 128)
    h = jnp.dot(pooled.astype(jnp.bfloat16), w1_ref[...],
                preferred_element_type=jnp.float32) + b1_ref[...]
    h = jnp.maximum(h, 0.0)
    out = jnp.dot(h.astype(jnp.bfloat16), w2_ref[...],
                  preferred_element_type=jnp.float32) + b2_ref[...]
    o_ref[0] = out                                                      # (half, 128) f32


def siamese_fused(patches, sw, sb, hw, hb, w1, b1, w2, b2, *, half, spatial, out_dim):
    G, rows, K = patches.shape         # G = 2 (one grid step per siamese branch)
    kern = functools.partial(fused_kernel, half=half, spatial=spatial)
    return pl.pallas_call(
        kern,
        out_shape=jax.ShapeDtypeStruct((G, half, out_dim), jnp.float32),
        grid=(G,),
        in_specs=[
            pl.BlockSpec((1, rows, K), lambda g: (g, 0, 0)),
            pl.BlockSpec(sw.shape, lambda g: (0, 0)),
            pl.BlockSpec(sb.shape, lambda g: (0, 0)),
            pl.BlockSpec(hw.shape, lambda g: (0, 0)),
            pl.BlockSpec(hb.shape, lambda g: (0, 0)),
            pl.BlockSpec(w1.shape, lambda g: (0, 0)),
            pl.BlockSpec(b1.shape, lambda g: (0, 0)),
            pl.BlockSpec(w2.shape, lambda g: (0, 0)),
            pl.BlockSpec(b2.shape, lambda g: (0, 0)),
        ],
        out_specs=pl.BlockSpec((1, half, out_dim), lambda g: (g, 0, 0)),
        compiler_params=pltpu.CompilerParams(
            dimension_semantics=("parallel",)),  # v7x: one branch per TensorCore
    )(patches, sw, sb, hw, hb, w1, b1, w2, b2)


# ------------------------------------ glue (plain JAX) ------------------------------------
def im2col_stride2_3x3(x_nchw):
    """Conv2d(1, Cout, 3, stride=2, padding=1) patch extraction. Returns (B*OH*OW, 9)."""
    B, C, H, W = x_nchw.shape
    assert C == 1
    OH, OW = H // 2, W // 2
    xp = jnp.pad(x_nchw[:, 0], ((0, 0), (1, 1), (1, 1)))
    taps = []
    for kh in range(3):
        for kw in range(3):
            taps.append(xp[:, kh:kh + 2 * OH:2, kw:kw + 2 * OW:2])
    patches = jnp.stack(taps, axis=-1)           # (B, OH, OW, 9)
    return patches.reshape(B * OH * OW, 9), OH, OW


def init_params(key):
    ks = jax.random.split(key, 8)
    p = {}
    # stem: Conv2d(1, 32, 3, stride=2, padding=1, bias=False) + folded BN
    p["stem_w"] = jax.random.normal(ks[0], (32, 1, 3, 3), jnp.float32) * 0.1
    p["stem_scale"] = 1.0 + 0.05 * jax.random.normal(ks[1], (1, 32), jnp.float32)
    p["stem_bias"] = 0.05 * jax.random.normal(ks[2], (1, 32), jnp.float32)
    # head: 1x1 conv to 1280 channels + folded BN
    p["head_w"] = jax.random.normal(ks[3], (32, 1280), jnp.float32) * 0.05
    p["head_scale"] = 1.0 + 0.05 * jax.random.normal(ks[4], (1, 1280), jnp.float32)
    p["head_bias"] = 0.05 * jax.random.normal(ks[5], (1, 1280), jnp.float32)
    # fc: Linear(1280, 512) -> ReLU -> Linear(512, 128)
    p["fc1_w"] = jax.random.normal(ks[6], (1280, 512), jnp.float32) * 0.02
    p["fc1_b"] = jnp.zeros((1, 512), jnp.float32)
    p["fc2_w"] = jax.random.normal(ks[7], (512, 128), jnp.float32) * 0.05
    p["fc2_b"] = jnp.zeros((1, 128), jnp.float32)
    return p


def siamese_forward(params, input1, input2):
    B = input1.shape[0]
    x = jnp.concatenate([input1, input2], axis=0)        # (2B, 1, H, W) -- both branches at once
    patches, OH, OW = im2col_stride2_3x3(x)              # (2B*OH*OW, 9)
    S = OH * OW

    # Fold BN scales into the linear weights (mathematically identical: BN precedes SiLU),
    # cast matmul operands to bf16 (f32 accumulation in-kernel), keep biases in f32.
    sw = (params["stem_w"].reshape(32, 9).T * params["stem_scale"]).astype(jnp.bfloat16)  # (9, 32)
    sb = params["stem_bias"]                                                              # (1, 32)
    hw = (params["head_w"] * params["head_scale"]).astype(jnp.bfloat16)                   # (32, 1280)
    hb = params["head_bias"]                                                              # (1, 1280)
    w1 = params["fc1_w"].astype(jnp.bfloat16)
    b1 = params["fc1_b"]
    w2 = params["fc2_w"].astype(jnp.bfloat16)
    b2 = params["fc2_b"]

    # Grid axis 0 = siamese branch; each grid step handles B images * S spatial rows.
    patches = patches.astype(jnp.bfloat16).reshape(2, B * S, 9)
    out = siamese_fused(patches, sw, sb, hw, hb, w1, b1, w2, b2,
                        half=B, spatial=S, out_dim=128)   # (2, B, 128)
    return out[0], out[1]


if __name__ == "__main__":
    key = jax.random.PRNGKey(0)
    pkey, k1, k2 = jax.random.split(key, 3)
    params = init_params(pkey)

    x1 = jax.random.normal(k1, (2, 1, 16, 16), jnp.float32)
    x2 = jax.random.normal(k2, (2, 1, 16, 16), jnp.float32)

    fwd = jax.jit(lambda a, b: siamese_forward(params, a, b))
    o1, o2 = fwd(x1, x2)
    jax.block_until_ready((o1, o2))

    assert o1.shape == (2, 128) and o2.shape == (2, 128)
    assert o1.dtype == jnp.float32 and o2.dtype == jnp.float32
    print("KERNEL_OK")
</pallas_src>

<mosaic_0001>
module attributes {stable_mosaic.version = 11 : i64} {
  func.func @fused_kernel(%arg0: i32, %arg1: memref<1x128x9xbf16, #tpu.memory_space<vmem>>, %arg2: memref<9x32xbf16, #tpu.memory_space<vmem>>, %arg3: memref<1x32xf32, #tpu.memory_space<vmem>>, %arg4: memref<32x1280xbf16, #tpu.memory_space<vmem>>, %arg5: memref<1x1280xf32, #tpu.memory_space<vmem>>, %arg6: memref<1280x512xbf16, #tpu.memory_space<vmem>>, %arg7: memref<1x512xf32, #tpu.memory_space<vmem>>, %arg8: memref<512x128xbf16, #tpu.memory_space<vmem>>, %arg9: memref<1x128xf32, #tpu.memory_space<vmem>>, %arg10: memref<1x2x128xf32, #tpu.memory_space<vmem>>) attributes {dimension_semantics = [#tpu.dimension_semantics<parallel>], iteration_bounds = array<i64: 2>, scalar_prefetch = 0 : i64, scratch_operands = 0 : i64, tpu.core_type = #tpu.core_type<tc>, window_params = [{transform_indices = @transform_0, window_bounds = array<i64: 1, 128, 9>}, {pipeline_mode = #tpu.pipeline_mode<synchronous>, transform_indices = @transform_1, window_bounds = array<i64: 9, 32>}, {pipeline_mode = #tpu.pipeline_mode<synchronous>, transform_indices = @transform_2, window_bounds = array<i64: 1, 32>}, {pipeline_mode = #tpu.pipeline_mode<synchronous>, transform_indices = @transform_3, window_bounds = array<i64: 32, 1280>}, {pipeline_mode = #tpu.pipeline_mode<synchronous>, transform_indices = @transform_4, window_bounds = array<i64: 1, 1280>}, {pipeline_mode = #tpu.pipeline_mode<synchronous>, transform_indices = @transform_5, window_bounds = array<i64: 1280, 512>}, {pipeline_mode = #tpu.pipeline_mode<synchronous>, transform_indices = @transform_6, window_bounds = array<i64: 1, 512>}, {pipeline_mode = #tpu.pipeline_mode<synchronous>, transform_indices = @transform_7, window_bounds = array<i64: 512, 128>}, {pipeline_mode = #tpu.pipeline_mode<synchronous>, transform_indices = @transform_8, window_bounds = array<i64: 1, 128>}, {transform_indices = @transform_9, window_bounds = array<i64: 1, 2, 128>}]} {
    %c0 = arith.constant 0 : index
    %c0_0 = arith.constant 0 : index
    %c0_1 = arith.constant 0 : index
    %0 = vector.load %arg1[%c0, %c0_0, %c0_1] : memref<1x128x9xbf16, #tpu.memory_space<vmem>>, vector<1x128x9xbf16>
    %1 = vector.shape_cast %0 : vector<1x128x9xbf16> to vector<128x9xbf16>
    %c0_2 = arith.constant 0 : index
    %c0_3 = arith.constant 0 : index
    %2 = vector.load %arg2[%c0_2, %c0_3] : memref<9x32xbf16, #tpu.memory_space<vmem>>, vector<9x32xbf16>
    %cst = arith.constant dense<0.000000e+00> : vector<128x32xf32>
    %3 = tpu.matmul %1, %2, %cst {dimension_numbers = #tpu.dot_dimension_numbers<[1], [0], [0], [1], [0, 0, 1, 1], [], []>} : vector<128x9xbf16>, vector<9x32xbf16>, vector<128x32xf32> -> vector<128x32xf32>
    %c0_4 = arith.constant 0 : index
    %c0_5 = arith.constant 0 : index
    %4 = vector.load %arg3[%c0_4, %c0_5] : memref<1x32xf32, #tpu.memory_space<vmem>>, vector<1x32xf32>
    %5 = vector.broadcast %4 : vector<1x32xf32> to vector<128x32xf32>
    %6 = arith.addf %3, %5 : vector<128x32xf32>
    %cst_6 = arith.constant 0.000000e+00 : f32
    %7 = vector.broadcast %cst_6 : f32 to vector<128x32xf32>
    %8 = arith.subf %7, %6 : vector<128x32xf32>
    %9 = math.exp %8 : vector<128x32xf32>
    %cst_7 = arith.constant 1.000000e+00 : f32
    %10 = vector.broadcast %cst_7 : f32 to vector<128x32xf32>
    %11 = arith.addf %10, %9 : vector<128x32xf32>
    %12 = tpu.reciprocal %11 {approx = true} : vector<128x32xf32> -> vector<128x32xf32>
    %13 = arith.mulf %6, %12 : vector<128x32xf32>
    %14 = arith.truncf %13 : vector<128x32xf32> to vector<128x32xbf16>
    %c0_8 = arith.constant 0 : index
    %c0_9 = arith.constant 0 : index
    %15 = vector.load %arg4[%c0_8, %c0_9] : memref<32x1280xbf16, #tpu.memory_space<vmem>>, vector<32x1280xbf16>
    %cst_10 = arith.constant dense<0.000000e+00> : vector<128x1280xf32>
    %16 = tpu.matmul %14, %15, %cst_10 {dimension_numbers = #tpu.dot_dimension_numbers<[1], [0], [0], [1], [0, 0, 1, 1], [], []>} : vector<128x32xbf16>, vector<32x1280xbf16>, vector<128x1280xf32> -> vector<128x1280xf32>
    %c0_11 = arith.constant 0 : index
    %c0_12 = arith.constant 0 : index
    %17 = vector.load %arg5[%c0_11, %c0_12] : memref<1x1280xf32, #tpu.memory_space<vmem>>, vector<1x1280xf32>
    %18 = vector.broadcast %17 : vector<1x1280xf32> to vector<128x1280xf32>
    %19 = arith.addf %16, %18 : vector<128x1280xf32>
    %cst_13 = arith.constant 0.000000e+00 : f32
    %20 = vector.broadcast %cst_13 : f32 to vector<128x1280xf32>
    %21 = arith.subf %20, %19 : vector<128x1280xf32>
    %22 = math.exp %21 : vector<128x1280xf32>
    %cst_14 = arith.constant 1.000000e+00 : f32
    %23 = vector.broadcast %cst_14 : f32 to vector<128x1280xf32>
    %24 = arith.addf %23, %22 : vector<128x1280xf32>
    %25 = tpu.reciprocal %24 {approx = true} : vector<128x1280xf32> -> vector<128x1280xf32>
    %26 = arith.mulf %19, %25 : vector<128x1280xf32>
    %27 = vector.shape_cast %26 : vector<128x1280xf32> to vector<2x64x1280xf32>
    %cst_15 = arith.constant dense<0.000000e+00> : vector<2x1280xf32>
    %28 = vector.multi_reduction <add>, %27, %cst_15 [1] : vector<2x64x1280xf32> to vector<2x1280xf32>
    %cst_16 = arith.constant 6.400000e+01 : f32
    %29 = vector.broadcast %cst_16 : f32 to vector<2x1280xf32>
    %30 = arith.divf %28, %29 : vector<2x1280xf32>
    %31 = arith.truncf %30 : vector<2x1280xf32> to vector<2x1280xbf16>
    %c0_17 = arith.constant 0 : index
    %c0_18 = arith.constant 0 : index
    %32 = vector.load %arg6[%c0_17, %c0_18] : memref<1280x512xbf16, #tpu.memory_space<vmem>>, vector<1280x512xbf16>
    %cst_19 = arith.constant dense<0.000000e+00> : vector<2x512xf32>
    %33 = tpu.matmul %31, %32, %cst_19 {dimension_numbers = #tpu.dot_dimension_numbers<[1], [0], [0], [1], [0, 0, 1, 1], [], []>} : vector<2x1280xbf16>, vector<1280x512xbf16>, vector<2x512xf32> -> vector<2x512xf32>
    %c0_20 = arith.constant 0 : index
    %c0_21 = arith.constant 0 : index
    %34 = vector.load %arg7[%c0_20, %c0_21] : memref<1x512xf32, #tpu.memory_space<vmem>>, vector<1x512xf32>
    %35 = vector.broadcast %34 : vector<1x512xf32> to vector<2x512xf32>
    %36 = arith.addf %33, %35 : vector<2x512xf32>
    %cst_22 = arith.constant 0.000000e+00 : f32
    %37 = vector.broadcast %cst_22 : f32 to vector<2x512xf32>
    %38 = arith.maximumf %36, %37 : vector<2x512xf32>
    %39 = arith.truncf %38 : vector<2x512xf32> to vector<2x512xbf16>
    %c0_23 = arith.constant 0 : index
    %c0_24 = arith.constant 0 : index
    %40 = vector.load %arg8[%c0_23, %c0_24] : memref<512x128xbf16, #tpu.memory_space<vmem>>, vector<512x128xbf16>
    %cst_25 = arith.constant dense<0.000000e+00> : vector<2x128xf32>
    %41 = tpu.matmul %39, %40, %cst_25 {dimension_numbers = #tpu.dot_dimension_numbers<[1], [0], [0], [1], [0, 0, 1, 1], [], []>} : vector<2x512xbf16>, vector<512x128xbf16>, vector<2x128xf32> -> vector<2x128xf32>
    %c0_26 = arith.constant 0 : index
    %c0_27 = arith.constant 0 : index
    %42 = vector.load %arg9[%c0_26, %c0_27] : memref<1x128xf32, #tpu.memory_space<vmem>>, vector<1x128xf32>
    %43 = vector.broadcast %42 : vector<1x128xf32> to vector<2x128xf32>
    %44 = arith.addf %41, %43 : vector<2x128xf32>
    %c0_28 = arith.constant 0 : index
    %c0_29 = arith.constant 0 : index
    %c0_30 = arith.constant 0 : index
    %45 = vector.load %arg10[%c0_28, %c0_29, %c0_30] : memref<1x2x128xf32, #tpu.memory_space<vmem>>, vector<1x2x128xf32>
    %46 = vector.shape_cast %45 : vector<1x2x128xf32> to vector<2x128xf32>
    %47 = vector.shape_cast %44 : vector<2x128xf32> to vector<1x2x128xf32>
    tpu.vector_store %arg10[%c0_28, %c0_29, %c0_30], %47 {strides = array<i32>} : memref<1x2x128xf32, #tpu.memory_space<vmem>>, vector<1x2x128xf32>,
    return
  }
  func.func @transform_0(%arg0: i32) -> (i32, i32, i32) {
    %c0_i32 = arith.constant 0 : i32
    %c0_i32_0 = arith.constant 0 : i32
    %c0_i32_1 = arith.constant 0 : i32
    return %arg0, %c0_i32, %c0_i32_0 : i32, i32, i32
  }
  func.func @transform_1(%arg0: i32) -> (i32, i32) {
    %c0_i32 = arith.constant 0 : i32
    %c0_i32_0 = arith.constant 0 : i32
    %c0_i32_1 = arith.constant 0 : i32
    return %c0_i32, %c0_i32_0 : i32, i32
  }
  func.func @transform_2(%arg0: i32) -> (i32, i32) {
    %c0_i32 = arith.constant 0 : i32
    %c0_i32_0 = arith.constant 0 : i32
    %c0_i32_1 = arith.constant 0 : i32
    return %c0_i32, %c0_i32_0 : i32, i32
  }
  func.func @transform_3(%arg0: i32) -> (i32, i32) {
    %c0_i32 = arith.constant 0 : i32
    %c0_i32_0 = arith.constant 0 : i32
    %c0_i32_1 = arith.constant 0 : i32
    return %c0_i32, %c0_i32_0 : i32, i32
  }
  func.func @transform_4(%arg0: i32) -> (i32, i32) {
    %c0_i32 = arith.constant 0 : i32
    %c0_i32_0 = arith.constant 0 : i32
    %c0_i32_1 = arith.constant 0 : i32
    return %c0_i32, %c0_i32_0 : i32, i32
  }
  func.func @transform_5(%arg0: i32) -> (i32, i32) {
    %c0_i32 = arith.constant 0 : i32
    %c0_i32_0 = arith.constant 0 : i32
    %c0_i32_1 = arith.constant 0 : i32
    return %c0_i32, %c0_i32_0 : i32, i32
  }
  func.func @transform_6(%arg0: i32) -> (i32, i32) {
    %c0_i32 = arith.constant 0 : i32
    %c0_i32_0 = arith.constant 0 : i32
    %c0_i32_1 = arith.constant 0 : i32
    return %c0_i32, %c0_i32_0 : i32, i32
  }
  func.func @transform_7(%arg0: i32) -> (i32, i32) {
    %c0_i32 = arith.constant 0 : i32
    %c0_i32_0 = arith.constant 0 : i32
    %c0_i32_1 = arith.constant 0 : i32
    return %c0_i32, %c0_i32_0 : i32, i32
  }
  func.func @transform_8(%arg0: i32) -> (i32, i32) {
    %c0_i32 = arith.constant 0 : i32
    %c0_i32_0 = arith.constant 0 : i32
    %c0_i32_1 = arith.constant 0 : i32
    return %c0_i32, %c0_i32_0 : i32, i32
  }
  func.func @transform_9(%arg0: i32) -> (i32, i32, i32) {
    %c0_i32 = arith.constant 0 : i32
    %c0_i32_0 = arith.constant 0 : i32
    %c0_i32_1 = arith.constant 0 : i32
    return %arg0, %c0_i32, %c0_i32_0 : i32, i32, i32
  }
}

</mosaic_0001>

<llo_original>
// kernel: _lambda_.1
$region0: #{_lambda_.1}
  #allocation0 [shape = 'u32[]', space=smem, size = 0x4, offset = 0x4, fixed_abs, tag = 'smem constant byte address 0x4 - core index']
  #allocation1 [shape = 'u32[144,128]{1,0:T(1,128)}', space=vmem, size = 0x12000, scoped, tag = 'internal scratch']
  %s0 = inlined_call_operand.vmem [shape: bf16[2,128,9], index: 0, kind: input, shape index: {}]
  %s1 = inlined_call_operand.vmem [shape: bf16[9,32], index: 1, kind: input, shape index: {}]
  %s2 = inlined_call_operand.vmem [shape: f32[1,32], index: 2, kind: input, shape index: {}]
  %s3 = inlined_call_operand.vmem [shape: bf16[32,1280], index: 3, kind: input, shape index: {}]
  %s4 = inlined_call_operand.vmem [shape: f32[1,1280], index: 4, kind: input, shape index: {}]
  %s5 = inlined_call_operand.vmem [shape: bf16[1280,512], index: 5, kind: input, shape index: {}]
  %s6 = inlined_call_operand.vmem [shape: f32[1,512], index: 6, kind: input, shape index: {}]
  %s7 = inlined_call_operand.vmem [shape: bf16[512,128], index: 7, kind: input, shape index: {}]
  %s8 = inlined_call_operand.vmem [shape: f32[1,128], index: 8, kind: input, shape index: {}]
  %s9 = inlined_call_operand.vmem [shape: f32[2,2,128], index: 9, kind: output, shape index: {}]
  %s10 = sld [smem:[#allocation0]]
  $region69: #{_lambda_.1} parent=0
    _
  %s12 = ssub.s32 1, %s10
  %s13 = scalar_select 0, %s12, %s10
  loop: start=0, step=1, limit=4
  $region2: #{_lambda_.1} parent=0 // loop_pre_header
    _
  $region3: #{_lambda_.1} parent=0 // loop_header
    %s15 = sphi 0, %s19
    %p16 = scmp.ge.s32.totalorder %s15, 4
    %s25 = sphi 0, %s27
    %s28 = sphi 0, %s25
    %s29 = sphi 0, %s28
    %s45 = sphi 0, %s29
    %s49 = sphi 0, %s49
    %s51 = sphi 0, %s49
    %s52 = sphi 0, %s51
    %s66 = sphi 0, %s52
    %s70 = sphi 0, %s70
    %s72 = sphi 0, %s70
    %s73 = sphi 0, %s72
    %s87 = sphi 0, %s73
    %s91 = sphi 0, %s91
    %s93 = sphi 0, %s91
    %s94 = sphi 0, %s93
    %s108 = sphi 0, %s94
    %s112 = sphi 0, %s112
    %s114 = sphi 0, %s112
    %s115 = sphi 0, %s114
    %s129 = sphi 0, %s115
    %s133 = sphi 0, %s133
    %s135 = sphi 0, %s133
    %s136 = sphi 0, %s135
    %s150 = sphi 0, %s136
    %s154 = sphi 0, %s154
    %s156 = sphi 0, %s154
    %s157 = sphi 0, %s156
    %s171 = sphi 0, %s157
    %s175 = sphi 0, %s175
    %s177 = sphi 0, %s175
    %s178 = sphi 0, %s177
    %s192 = sphi 0, %s178
    %s196 = sphi 0, %s196
    %s198 = sphi 0, %s196
    %s199 = sphi 0, %s198
    %s213 = sphi 0, %s199
    %s219 = sphi 0, %s221
    %s222 = sphi 0, %s219
    %s223 = sphi 0, %s222
    %s239 = sphi 0, %s223
  $region4: #{_lambda_.1} parent=0 // loop_header_branch
    %18 = sbr.rel (%p16) target = $region8
  $region5: #{_lambda_.1} parent=0 // loop_body
    %s20 = ssub.s32 %s15, 1
    %s21 = ssub.s32 %s15, 2
    %s22 = sadd.s32 %s15, 1
    %s23 = ssub.s32 %s15, %s22
    %p24 = scmp.eq.s32.totalorder %s23, 0
    %s26 = sadd.s32 %s25, 1
    %s27 = scalar_select %p24, %s25, %s26
    %p30 = pneg %p24
    %p31 = scmp.eq.s32.totalorder %s15, 1
    %p32 = por %p30, %p31
    %p33 = scmp.ne.s32.totalorder %s25, %s28
    %p34 = scmp.eq.s32.totalorder %s15, 0
    %p35 = por %p33, %p34
    %p36 = scmp.ne.s32.totalorder %s25, %s28
    %p37 = scmp.eq.s32.totalorder %s20, 1
    %p38 = por %p36, %p37
    %p39 = scmp.ne.s32.totalorder %s28, %s29
    %p40 = scmp.eq.s32.totalorder %s20, 0
    %p41 = por %p39, %p40
    %p42 = scmp.ne.s32.totalorder %s28, %s29
    %p43 = scmp.eq.s32.totalorder %s21, 1
    %p44 = por %p42, %p43
    %p46 = scmp.ne.s32.totalorder %s29, %s45
    %p47 = scmp.eq.s32.totalorder %s21, 0
    %p48 = por %p46, %p47
    %s50 = sadd.s32 %s49, 1
    %p53 = scmp.eq.s32.totalorder %s15, 1
    %p54 = scmp.ne.s32.totalorder %s49, %s51
    %p55 = scmp.eq.s32.totalorder %s15, 0
    %p56 = por %p54, %p55
    %p57 = scmp.ne.s32.totalorder %s49, %s51
    %p58 = scmp.eq.s32.totalorder %s20, 1
    %p59 = por %p57, %p58
    %p60 = scmp.ne.s32.totalorder %s51, %s52
    %p61 = scmp.eq.s32.totalorder %s20, 0
    %p62 = por %p60, %p61
    %p63 = scmp.ne.s32.totalorder %s51, %s52
    %p64 = scmp.eq.s32.totalorder %s21, 1
    %p65 = por %p63, %p64
    %p67 = scmp.ne.s32.totalorder %s52, %s66
    %p68 = scmp.eq.s32.totalorder %s21, 0
    %p69 = por %p67, %p68
    %s71 = sadd.s32 %s70, 1
    %p74 = scmp.eq.s32.totalorder %s15, 1
    %p75 = scmp.ne.s32.totalorder %s70, %s72
    %p76 = scmp.eq.s32.totalorder %s15, 0
    %p77 = por %p75, %p76
    %p78 = scmp.ne.s32.totalorder %s70, %s72
    %p79 = scmp.eq.s32.totalorder %s20, 1
    %p80 = por %p78, %p79
    %p81 = scmp.ne.s32.totalorder %s72, %s73
    %p82 = scmp.eq.s32.totalorder %s20, 0
    %p83 = por %p81, %p82
    %p84 = scmp.ne.s32.totalorder %s72, %s73
    %p85 = scmp.eq.s32.totalorder %s21, 1
    %p86 = por %p84, %p85
    %p88 = scmp.ne.s32.totalorder %s73, %s87
    %p89 = scmp.eq.s32.totalorder %s21, 0
    %p90 = por %p88, %p89
    %s92 = sadd.s32 %s91, 1
    %p95 = scmp.eq.s32.totalorder %s15, 1
    %p96 = scmp.ne.s32.totalorder %s91, %s93
    %p97 = scmp.eq.s32.totalorder %s15, 0
    %p98 = por %p96, %p97
    %p99 = scmp.ne.s32.totalorder %s91, %s93
    %p100 = scmp.eq.s32.totalorder %s20, 1
    %p101 = por %p99, %p100
    %p102 = scmp.ne.s32.totalorder %s93, %s94
    %p103 = scmp.eq.s32.totalorder %s20, 0
    %p104 = por %p102, %p103
    %p105 = scmp.ne.s32.totalorder %s93, %s94
    %p106 = scmp.eq.s32.totalorder %s21, 1
    %p107 = por %p105, %p106
    %p109 = scmp.ne.s32.totalorder %s94, %s108
    %p110 = scmp.eq.s32.totalorder %s21, 0
    %p111 = por %p109, %p110
    %s113 = sadd.s32 %s112, 1
    %p116 = scmp.eq.s32.totalorder %s15, 1
    %p117 = scmp.ne.s32.totalorder %s112, %s114
    %p118 = scmp.eq.s32.totalorder %s15, 0
    %p119 = por %p117, %p118
    %p120 = scmp.ne.s32.totalorder %s112, %s114
    %p121 = scmp.eq.s32.totalorder %s20, 1
    %p122 = por %p120, %p121
    %p123 = scmp.ne.s32.totalorder %s114, %s115
    %p124 = scmp.eq.s32.totalorder %s20, 0
    %p125 = por %p123, %p124
    %p126 = scmp.ne.s32.totalorder %s114, %s115
    %p127 = scmp.eq.s32.totalorder %s21, 1
    %p128 = por %p126, %p127
    %p130 = scmp.ne.s32.totalorder %s115, %s129
    %p131 = scmp.eq.s32.totalorder %s21, 0
    %p132 = por %p130, %p131
    %s134 = sadd.s32 %s133, 1
    %p137 = scmp.eq.s32.totalorder %s15, 1
    %p138 = scmp.ne.s32.totalorder %s133, %s135
    %p139 = scmp.eq.s32.totalorder %s15, 0
    %p140 = por %p138, %p139
    %p141 = scmp.ne.s32.totalorder %s133, %s135
    %p142 = scmp.eq.s32.totalorder %s20, 1
    %p143 = por %p141, %p142
    %p144 = scmp.ne.s32.totalorder %s135, %s136
    %p145 = scmp.eq.s32.totalorder %s20, 0
    %p146 = por %p144, %p145
    %p147 = scmp.ne.s32.totalorder %s135, %s136
    %p148 = scmp.eq.s32.totalorder %s21, 1
    %p149 = por %p147, %p148
    %p151 = scmp.ne.s32.totalorder %s136, %s150
    %p152 = scmp.eq.s32.totalorder %s21, 0
    %p153 = por %p151, %p152
    %s155 = sadd.s32 %s154, 1
    %p158 = scmp.eq.s32.totalorder %s15, 1
    %p159 = scmp.ne.s32.totalorder %s154, %s156
    %p160 = scmp.eq.s32.totalorder %s15, 0
    %p161 = por %p159, %p160
    %p162 = scmp.ne.s32.totalorder %s154, %s156
    %p163 = scmp.eq.s32.totalorder %s20, 1
    %p164 = por %p162, %p163
    %p165 = scmp.ne.s32.totalorder %s156, %s157
    %p166 = scmp.eq.s32.totalorder %s20, 0
    %p167 = por %p165, %p166
    %p168 = scmp.ne.s32.totalorder %s156, %s157
    %p169 = scmp.eq.s32.totalorder %s21, 1
    %p170 = por %p168, %p169
    %p172 = scmp.ne.s32.totalorder %s157, %s171
    %p173 = scmp.eq.s32.totalorder %s21, 0
    %p174 = por %p172, %p173
    %s176 = sadd.s32 %s175, 1
    %p179 = scmp.eq.s32.totalorder %s15, 1
    %p180 = scmp.ne.s32.totalorder %s175, %s177
    %p181 = scmp.eq.s32.totalorder %s15, 0
    %p182 = por %p180, %p181
    %p183 = scmp.ne.s32.totalorder %s175, %s177
    %p184 = scmp.eq.s32.totalorder %s20, 1
    %p185 = por %p183, %p184
    %p186 = scmp.ne.s32.totalorder %s177, %s178
    %p187 = scmp.eq.s32.totalorder %s20, 0
    %p188 = por %p186, %p187
    %p189 = scmp.ne.s32.totalorder %s177, %s178
    %p190 = scmp.eq.s32.totalorder %s21, 1
    %p191 = por %p189, %p190
    %p193 = scmp.ne.s32.totalorder %s178, %s192
    %p194 = scmp.eq.s32.totalorder %s21, 0
    %p195 = por %p193, %p194
    %s197 = sadd.s32 %s196, 1
    %p200 = scmp.eq.s32.totalorder %s15, 1
    %p201 = scmp.ne.s32.totalorder %s196, %s198
    %p202 = scmp.eq.s32.totalorder %s15, 0
    %p203 = por %p201, %p202
    %p204 = scmp.ne.s32.totalorder %s196, %s198
    %p205 = scmp.eq.s32.totalorder %s20, 1
    %p206 = por %p204, %p205
    %p207 = scmp.ne.s32.totalorder %s198, %s199
    %p208 = scmp.eq.s32.totalorder %s20, 0
    %p209 = por %p207, %p208
    %p210 = scmp.ne.s32.totalorder %s198, %s199
    %p211 = scmp.eq.s32.totalorder %s21, 1
    %p212 = por %p210, %p211
    %p214 = scmp.ne.s32.totalorder %s199, %s213
    %p215 = scmp.eq.s32.totalorder %s21, 0
    %p216 = por %p214, %p215
    %s217 = ssub.s32 %s15, %s22
    %p218 = scmp.eq.s32.totalorder %s217, 0
    %s220 = sadd.s32 %s219, 1
    %s221 = scalar_select %p218, %s219, %s220
    %p224 = pneg %p218
    %p225 = scmp.eq.s32.totalorder %s15, 1
    %p226 = por %p224, %p225
    %p227 = scmp.ne.s32.totalorder %s219, %s222
    %p228 = scmp.eq.s32.totalorder %s15, 0
    %p229 = por %p227, %p228
    %p230 = scmp.ne.s32.totalorder %s219, %s222
    %p231 = scmp.eq.s32.totalorder %s20, 1
    %p232 = por %p230, %p231
    %p233 = scmp.ne.s32.totalorder %s222, %s223
    %p234 = scmp.eq.s32.totalorder %s20, 0
    %p235 = por %p233, %p234
    %p236 = scmp.ne.s32.totalorder %s222, %s223
    %p237 = scmp.eq.s32.totalorder %s21, 1
    %p238 = por %p236, %p237
    %p240 = scmp.ne.s32.totalorder %s223, %s239
    %p241 = scmp.eq.s32.totalorder %s21, 0
    %p242 = por %p240, %p241
    %p243 = scmp.le.s32.totalorder 1, %s15
    %p244 = scmp.lt.s32.totalorder %s15, 3
    %p245 = pnand %p243, %p244
    %p246 = pneg %p245
    // Predicated region
    $region9: #{_lambda_.1} parent=5 // pred_check
      _
    $region10: #{_lambda_.1} parent=5 // pred_check_branch
      %248 = sbr.rel (%p245) target = $region12
    $region11: #{_lambda_.1} parent=5 // pred_region
      %s249 = ssub.s32 %s15, 1
      // Predicated region
      $region13: #{_lambda_.1} parent=11 // pred_check
        %p250 = pneg %p62
      $region14: #{_lambda_.1} parent=11 // pred_check_branch
        %252 = sbr.rel (%p250) target = $region16
      $region15: #{_lambda_.1} parent=11 // pred_region
        _
      $region16: #{_lambda_.1} parent=11 // pred_fallthru
        _
      // Predicated region
      $region17: #{_lambda_.1} parent=11 // pred_check
        %p253 = pneg %p83
      $region18: #{_lambda_.1} parent=11 // pred_check_branch
        %255 = sbr.rel (%p253) target = $region20
      $region19: #{_lambda_.1} parent=11 // pred_region
        _
      $region20: #{_lambda_.1} parent=11 // pred_fallthru
        _
      // Predicated region
      $region21: #{_lambda_.1} parent=11 // pred_check
        %p256 = pneg %p104
      $region22: #{_lambda_.1} parent=11 // pred_check_branch
        %258 = sbr.rel (%p256) target = $region24
      $region23: #{_lambda_.1} parent=11 // pred_region
        _
      $region24: #{_lambda_.1} parent=11 // pred_fallthru
        _
      // Predicated region
      $region25: #{_lambda_.1} parent=11 // pred_check
        %p259 = pneg %p125
      $region26: #{_lambda_.1} parent=11 // pred_check_branch
        %261 = sbr.rel (%p259) target = $region28
      $region27: #{_lambda_.1} parent=11 // pred_region
        _
      $region28: #{_lambda_.1} parent=11 // pred_fallthru
        _
      // Predicated region
      $region29: #{_lambda_.1} parent=11 // pred_check
        %p262 = pneg %p146
      $region30: #{_lambda_.1} parent=11 // pred_check_branch
        %264 = sbr.rel (%p262) target = $region32
      $region31: #{_lambda_.1} parent=11 // pred_region
        _
      $region32: #{_lambda_.1} parent=11 // pred_fallthru
        _
      // Predicated region
      $region33: #{_lambda_.1} parent=11 // pred_check
        %p265 = pneg %p167
      $region34: #{_lambda_.1} parent=11 // pred_check_branch
        %267 = sbr.rel (%p265) target = $region36
      $region35: #{_lambda_.1} parent=11 // pred_region
        _
      $region36: #{_lambda_.1} parent=11 // pred_fallthru
        _
      // Predicated region
      $region37: #{_lambda_.1} parent=11 // pred_check
        %p268 = pneg %p188
      $region38: #{_lambda_.1} parent=11 // pred_check_branch
        %270 = sbr.rel (%p268) target = $region40
      $region39: #{_lambda_.1} parent=11 // pred_region
        _
      $region40: #{_lambda_.1} parent=11 // pred_fallthru
        _
      // Predicated region
      $region41: #{_lambda_.1} parent=11 // pred_check
        %p271 = pneg %p209
      $region42: #{_lambda_.1} parent=11 // pred_check_branch
        %273 = sbr.rel (%p271) target = $region44
      $region43: #{_lambda_.1} parent=11 // pred_region
        _
      $region44: #{_lambda_.1} parent=11 // pred_fallthru
        _
    $region12: #{_lambda_.1} parent=5 // pred_fallthru
      _
    %p274 = scmp.lt.s32.totalorder %s15, 2
    // Predicated region
    $region45: #{_lambda_.1} parent=5 // pred_check
      %p275 = pneg %p274
    $region46: #{_lambda_.1} parent=5 // pred_check_branch
      %277 = sbr.rel (%p275) target = $region48
    $region47: #{_lambda_.1} parent=5 // pred_region
      // Predicated region
      $region49: #{_lambda_.1} parent=47 // pred_check
        %p278 = pneg %p35
      $region50: #{_lambda_.1} parent=47 // pred_check_branch
        %280 = sbr.rel (%p278) target = $region52
      $region51: #{_lambda_.1} parent=47 // pred_region
        %p281 = scmp.lt.s32.totalorder %s15, 1
        %s282 = scalar_select %p281, %s15, 1
        %s283 = smul.addr %s282, 16
        %s284 = smul.addr %s283, 4
        %s285 = scalar_lea.vmem %s0, %s284
      $region52: #{_lambda_.1} parent=47 // pred_fallthru
        _
    $region48: #{_lambda_.1} parent=5 // pred_fallthru
      _
    %p286 = scmp.le.s32.totalorder 1, %s15
    %p287 = scmp.lt.s32.totalorder %s15, 3
    %p288 = pnand %p286, %p287
    %p289 = pneg %p288
    // Predicated region
    $region53: #{_lambda_.1} parent=5 // pred_check
      _
    $region54: #{_lambda_.1} parent=5 // pred_check_branch
      %291 = sbr.rel (%p288) target = $region56
    $region55: #{_lambda_.1} parent=5 // pred_region
      %s292 = ssub.s32 %s15, 1
      %p293 = scmp.lt.s32.totalorder %s20, 1
      %s294 = scalar_select %p293, %s20, 1
      %s295 = smul.addr %s294, 16
      %s296 = smul.addr %s295, 4
      %s297 = scalar_lea.vmem %s0, %s296
      %p298 = pneg %p41
      %p299 = pneg %p38
      %p300 = pneg %p62
      %p301 = pneg %p59
      %p302 = pneg %p83
      %p303 = pneg %p80
      %p304 = pneg %p104
      %p305 = pneg %p101
      %p306 = pneg %p125
      %p307 = pneg %p122
      %p308 = pneg %p146
      %p309 = pneg %p143
      %p310 = pneg %p167
      %p311 = pneg %p164
      %p312 = pneg %p188
      %p313 = pneg %p185
      %p314 = pneg %p209
      %p315 = pneg %p206
      %p316 = pneg %p235
      %p317 = pneg %p232
      %p318 = scmp.lt.s32.totalorder %s20, 1
      %s319 = scalar_select %p318, %s20, 1
      %s320 = smul.addr %s319, 2
      %s321 = scalar_lea.vmem %s9, %s320
      %p322 = scmp.lt.s32.totalorder %s20, 1
      %s323 = scalar_select %p322, %s20, 1
      %s324 = smul.addr %s323, 16
      %s325 = smul.addr %s324, 4
      %s326 = scalar_lea.vmem %s0, %s325
      %p327 = scmp.lt.s32.totalorder %s20, 1
      %s328 = scalar_select %p327, %s20, 1
      %s329 = smul.addr %s328, 2
      %s330 = scalar_lea.vmem %s9, %s329
      %v332 = vld [vmem:[%s326] sm:$0xf]
      %v333 = vld [vmem:[%s326 + $0x4] sm:$0xf]
      %v334 = vld [vmem:[%s326 + $0x8] sm:$0xf]
      %v335 = vld [vmem:[%s326 + $0xc] sm:$0xf]
      %v336 = vld [vmem:[%s326 + $0x10] sm:$0xf]
      %v337 = vld [vmem:[%s326 + $0x14] sm:$0xf]
      %v338 = vld [vmem:[%s326 + $0x18] sm:$0xf]
      %v339 = vld [vmem:[%s326 + $0x1c] sm:$0xf]
      %v340 = vld [vmem:[%s326 + $0x20] sm:$0xf]
      %v341 = vld [vmem:[%s326 + $0x24] sm:$0xf]
      %v342 = vld [vmem:[%s326 + $0x28] sm:$0xf]
      %v343 = vld [vmem:[%s326 + $0x2c] sm:$0xf]
      %v344 = vld [vmem:[%s326 + $0x30] sm:$0xf]
      %v345 = vld [vmem:[%s326 + $0x34] sm:$0xf]
      %v346 = vld [vmem:[%s326 + $0x38] sm:$0xf]
      %v347 = vld [vmem:[%s326 + $0x3c] sm:$0xf]
      %v348 = vld [vmem:[%s1] sm:$0xf]
      %v349 = vld [vmem:[%s1 + $0x4] sm:$0x1]
      %v350 = vld [vmem:[%s2] sm:$0x1]
      %v352 = vlaneseq
      %v353 = vshrl.u32 %v352, 7
      %v354 = vsub.s32 0, %v353
      %v355 = vrot.slane %v350, %v354
      %v373 = vunpack.c.l.b16 %v332
      %v374 = vunpack.c.l.b16 %v333
      %v375 = vunpack.c.l.b16 %v334
      %v376 = vunpack.c.l.b16 %v335
      %v377 = vunpack.c.l.b16 %v336
      %v378 = vunpack.c.l.b16 %v337
      %v379 = vunpack.c.l.b16 %v338
      %v380 = vunpack.c.l.b16 %v339
      %v381 = vunpack.c.l.b16 %v340
      %v382 = vunpack.c.l.b16 %v341
      %v383 = vunpack.c.l.b16 %v342
      %v384 = vunpack.c.l.b16 %v343
      %v385 = vunpack.c.l.b16 %v344
      %v386 = vunpack.c.l.b16 %v345
      %v387 = vunpack.c.l.b16 %v346
      %v388 = vunpack.c.l.b16 %v347
      %v389 = vpack.c.b16 %v374, %v373
      %v390 = vpack.c.b16 %v376, %v375
      %v391 = vpack.c.b16 %v378, %v377
      %v392 = vpack.c.b16 %v380, %v379
      %v393 = vpack.c.b16 %v382, %v381
      %v394 = vpack.c.b16 %v384, %v383
      %v395 = vpack.c.b16 %v386, %v385
      %v396 = vpack.c.b16 %v388, %v387
      %v399 = vunpack.c.l.b16 %v348
      %v400 = vunpack.c.l.b16 %v349
      %v401 = vpack.c.b16 %v400, %v399
      %vm402 = vcmask 72704
      %v404 = vsel %vm402, %v389, 0
      %v407 = vsel %vm402, %v390, 0
      %v410 = vsel %vm402, %v391, 0
      %v413 = vsel %vm402, %v392, 0
      %v416 = vsel %vm402, %v393, 0
      %v419 = vsel %vm402, %v394, 0
      %v422 = vsel %vm402, %v395, 0
      %v425 = vsel %vm402, %v396, 0
      %vm427 = vcmask 1043456
      %vm428 = vcmask 1044480
      %v429 = vsel %vm427, 4294967295, 65535
      %v430 = vsel %vm428, %v429, 0
      %v432 = vand.u32 %v401, %v430
      %434 = vmatprep.subr.bf16.mxu0 0
      %435 = vmatpush1.bf16.msra.mxu0 %v432
      %436 = vmatprep.subr.bf16.mxu0 0
      %437 = vmatpush1.bf16.msra.mxu0 0
      %438 = vmatprep.subr.bf16.mxu0 0
      %439 = vmatpush1.bf16.msra.mxu0 0
      %440 = vmatprep.subr.bf16.mxu0 0
      %441 = vmatpush1.bf16.msra.mxu0 0
      %442 = vmatprep.subr.bf16.mxu0 0
      %443 = vmatpush1.bf16.msra.mxu0 0
      %444 = vmatprep.subr.bf16.mxu0 0
      %445 = vmatpush1.bf16.msra.mxu0 0
      %446 = vmatprep.subr.bf16.mxu0 0
      %447 = vmatpush1.bf16.msra.mxu0 0
      %448 = vmatprep.subr.bf16.mxu0 0
      %449 = vmatpush1.bf16.msra.mxu0 0
      %450 = vmatprep.subr.bf16.mxu0 0
      %451 = vmatpush1.bf16.msra.mxu0 0
      %452 = vmatprep.subr.bf16.mxu0 0
      %453 = vmatpush1.bf16.msra.mxu0 0
      %454 = vmatprep.subr.bf16.mxu0 0
      %455 = vmatpush1.bf16.msra.mxu0 0
      %456 = vmatprep.subr.bf16.mxu0 0
      %457 = vmatpush1.bf16.msra.mxu0 0
      %458 = vmatprep.subr.bf16.mxu0 0
      %459 = vmatpush1.bf16.msra.mxu0 0
      %460 = vmatprep.subr.bf16.mxu0 0
      %461 = vmatpush1.bf16.msra.mxu0 0
      %462 = vmatprep.subr.bf16.mxu0 0
      %463 = vmatpush1.bf16.msra.mxu0 0
      %464 = vmatprep.subr.bf16.mxu0 0
      %465 = vmatpush1.bf16.msra.mxu0 0
      %466 = vmatprep.mubr.bf16.mxu0 0
      %467 = vmatmul.mubr.bf16.gmra.mrb[0].mxu0 %v404
      %v468 = vpop.f32.mrb[0].mxu0
      %v469 = vadd.f32 %v355, %v468
      %v470 = vpop.f32.mrb[0].mxu0
      %v471 = vpop.f32.mrb[0].mxu0
      %v472 = vadd.f32 %v355, %v471
      %v473 = vpop.f32.mrb[0].mxu0
      %474 = vmatprep.mubr.bf16.mxu0 0
      %475 = vmatmul.mubr.bf16.gmra.mrb[0].mxu0 %v407
      %v476 = vpop.f32.mrb[0].mxu0
      %v477 = vadd.f32 %v355, %v476
      %v478 = vpop.f32.mrb[0].mxu0
      %v479 = vpop.f32.mrb[0].mxu0
      %v480 = vadd.f32 %v355, %v479
      %v481 = vpop.f32.mrb[0].mxu0
      %482 = vmatprep.mubr.bf16.mxu0 0
      %483 = vmatmul.mubr.bf16.gmra.mrb[0].mxu0 %v410
      %v484 = vpop.f32.mrb[0].mxu0
      %v485 = vadd.f32 %v355, %v484
      %v486 = vpop.f32.mrb[0].mxu0
      %v487 = vpop.f32.mrb[0].mxu0
      %v488 = vadd.f32 %v355, %v487
      %v489 = vpop.f32.mrb[0].mxu0
      %490 = vmatprep.mubr.bf16.mxu0 0
      %491 = vmatmul.mubr.bf16.gmra.mrb[0].mxu0 %v413
      %v492 = vpop.f32.mrb[0].mxu0
      %v493 = vadd.f32 %v355, %v492
      %v494 = vpop.f32.mrb[0].mxu0
      %v495 = vpop.f32.mrb[0].mxu0
      %v496 = vadd.f32 %v355, %v495
      %v497 = vpop.f32.mrb[0].mxu0
      %498 = vmatprep.mubr.bf16.mxu0 0
      %499 = vmatmul.mubr.bf16.gmra.mrb[0].mxu0 %v416
      %v500 = vpop.f32.mrb[0].mxu0
      %v501 = vadd.f32 %v355, %v500
      %v502 = vpop.f32.mrb[0].mxu0
      %v503 = vpop.f32.mrb[0].mxu0
      %v504 = vadd.f32 %v355, %v503
      %v505 = vpop.f32.mrb[0].mxu0
      %506 = vmatprep.mubr.bf16.mxu0 0
      %507 = vmatmul.mubr.bf16.gmra.mrb[0].mxu0 %v419
      %v508 = vpop.f32.mrb[0].mxu0
      %v509 = vadd.f32 %v355, %v508
      %v510 = vpop.f32.mrb[0].mxu0
      %v511 = vpop.f32.mrb[0].mxu0
      %v512 = vadd.f32 %v355, %v511
      %v513 = vpop.f32.mrb[0].mxu0
      %514 = vmatprep.mubr.bf16.mxu0 0
      %515 = vmatmul.mubr.bf16.gmra.mrb[0].mxu0 %v422
      %v516 = vpop.f32.mrb[0].mxu0
      %v517 = vadd.f32 %v355, %v516
      %v518 = vpop.f32.mrb[0].mxu0
      %v519 = vpop.f32.mrb[0].mxu0
      %v520 = vadd.f32 %v355, %v519
      %v521 = vpop.f32.mrb[0].mxu0
      %522 = vmatprep.mubr.bf16.mxu0 0
      %523 = vmatmul.mubr.bf16.gmra.mrb[0].mxu0 %v425
      %v524 = vpop.f32.mrb[0].mxu0
      %v525 = vadd.f32 %v355, %v524
      %v526 = vpop.f32.mrb[0].mxu0
      %v527 = vpop.f32.mrb[0].mxu0
      %v528 = vadd.f32 %v355, %v527
      %v529 = vpop.f32.mrb[0].mxu0
      %530 = vdwg.mxu0
      %v531 = vsub.f32 0.0, %v469
      %v532 = vsub.f32 0.0, %v472
      %v533 = vsub.f32 0.0, %v477
      %v534 = vsub.f32 0.0, %v480
      %v535 = vsub.f32 0.0, %v485
      %v536 = vsub.f32 0.0, %v488
      %v537 = vsub.f32 0.0, %v493
      %v538 = vsub.f32 0.0, %v496
      %v539 = vsub.f32 0.0, %v501
      %v540 = vsub.f32 0.0, %v504
      %v541 = vsub.f32 0.0, %v509
      %v542 = vsub.f32 0.0, %v512
      %v543 = vsub.f32 0.0, %v517
      %v544 = vsub.f32 0.0, %v520
      %v545 = vsub.f32 0.0, %v525
      %v546 = vsub.f32 0.0, %v528
      %v547 = vmul.f32 %v531, 1.442695
      %v548 = vpow.pop %v547
      %v549 = vmul.f32 %v532, 1.442695
      %v550 = vpow.pop %v549
      %v551 = vmul.f32 %v533, 1.442695
      %v552 = vpow.pop %v551
      %v553 = vmul.f32 %v534, 1.442695
      %v554 = vpow.pop %v553
      %v555 = vmul.f32 %v535, 1.442695
      %v556 = vpow.pop %v555
      %v557 = vmul.f32 %v536, 1.442695
      %v558 = vpow.pop %v557
      %v559 = vmul.f32 %v537, 1.442695
      %v560 = vpow.pop %v559
      %v561 = vmul.f32 %v538, 1.442695
      %v562 = vpow.pop %v561
      %v563 = vmul.f32 %v539, 1.442695
      %v564 = vpow.pop %v563
      %v565 = vmul.f32 %v540, 1.442695
      %v566 = vpow.pop %v565
      %v567 = vmul.f32 %v541, 1.442695
      %v568 = vpow.pop %v567
      %v569 = vmul.f32 %v542, 1.442695
      %v570 = vpow.pop %v569
      %v571 = vmul.f32 %v543, 1.442695
      %v572 = vpow.pop %v571
      %v573 = vmul.f32 %v544, 1.442695
      %v574 = vpow.pop %v573
      %v575 = vmul.f32 %v545, 1.442695
      %v576 = vpow.pop %v575
      %v577 = vmul.f32 %v546, 1.442695
      %v578 = vpow.pop %v577
      %v579 = vadd.f32 %v548, 1.0
      %v580 = vadd.f32 %v550, 1.0
      %v581 = vadd.f32 %v552, 1.0
      %v582 = vadd.f32 %v554, 1.0
      %v583 = vadd.f32 %v556, 1.0
      %v584 = vadd.f32 %v558, 1.0
      %v585 = vadd.f32 %v560, 1.0
      %v586 = vadd.f32 %v562, 1.0
      %v587 = vadd.f32 %v564, 1.0
      %v588 = vadd.f32 %v566, 1.0
      %v589 = vadd.f32 %v568, 1.0
      %v590 = vadd.f32 %v570, 1.0
      %v591 = vadd.f32 %v572, 1.0
      %v592 = vadd.f32 %v574, 1.0
      %v593 = vadd.f32 %v576, 1.0
      %v594 = vadd.f32 %v578, 1.0
      %v595 = vrcp.pop %v579
      %v596 = vrcp.pop %v580
      %v597 = vrcp.pop %v581
      %v598 = vrcp.pop %v582
      %v599 = vrcp.pop %v583
      %v600 = vrcp.pop %v584
      %v601 = vrcp.pop %v585
      %v602 = vrcp.pop %v586
      %v603 = vrcp.pop %v587
      %v604 = vrcp.pop %v588
      %v605 = vrcp.pop %v589
      %v606 = vrcp.pop %v590
      %v607 = vrcp.pop %v591
      %v608 = vrcp.pop %v592
      %v609 = vrcp.pop %v593
      %v610 = vrcp.pop %v594
      %v611 = vmul.f32 %v469, %v595
      %v612 = vmul.f32 %v472, %v596
      %v613 = vmul.f32 %v477, %v597
      %v614 = vmul.f32 %v480, %v598
      %v615 = vmul.f32 %v485, %v599
      %v616 = vmul.f32 %v488, %v600
      %v617 = vmul.f32 %v493, %v601
      %v618 = vmul.f32 %v496, %v602
      %v619 = vmul.f32 %v501, %v603
      %v620 = vmul.f32 %v504, %v604
      %v621 = vmul.f32 %v509, %v605
      %v622 = vmul.f32 %v512, %v606
      %v623 = vmul.f32 %v517, %v607
      %v624 = vmul.f32 %v520, %v608
      %v625 = vmul.f32 %v525, %v609
      %v626 = vmul.f32 %v528, %v610
      %v627 = vpack.c.bf16 %v612, %v611
      %v628 = vpack.c.bf16 %v614, %v613
      %v629 = vpack.c.bf16 %v616, %v615
      %v630 = vpack.c.bf16 %v618, %v617
      %v631 = vpack.c.bf16 %v620, %v619
      %v632 = vpack.c.bf16 %v622, %v621
      %v633 = vpack.c.bf16 %v624, %v623
      %v634 = vpack.c.bf16 %v626, %v625
      %v635 = vld [vmem:[%s3] sm:$0xff]
      %v636 = vld [vmem:[%s3 + $0x8] sm:$0xff]
      %v637 = vld [vmem:[%s3 + $0x10] sm:$0xff]
      %v638 = vld [vmem:[%s3 + $0x18] sm:$0xff]
      %v639 = vld [vmem:[%s3 + $0x20] sm:$0xff]
      %v640 = vld [vmem:[%s3 + $0x28] sm:$0xff]
      %v641 = vld [vmem:[%s3 + $0x30] sm:$0xff]
      %v642 = vld [vmem:[%s3 + $0x38] sm:$0xff]
      %v643 = vld [vmem:[%s3 + $0x40] sm:$0xff]
      %v644 = vld [vmem:[%s3 + $0x48] sm:$0xff]
      %v645 = vld [vmem:[%s3 + $0x50] sm:$0xff]
      %v646 = vld [vmem:[%s3 + $0x58] sm:$0xff]
      %v647 = vld [vmem:[%s3 + $0x60] sm:$0xff]
      %v648 = vld [vmem:[%s3 + $0x68] sm:$0xff]
      %v649 = vld [vmem:[%s3 + $0x70] sm:$0xff]
      %v650 = vld [vmem:[%s3 + $0x78] sm:$0xff]
      %v651 = vld [vmem:[%s3 + $0x80] sm:$0xff]
      %v652 = vld [vmem:[%s3 + $0x88] sm:$0xff]
      %v653 = vld [vmem:[%s3 + $0x90] sm:$0xff]
      %v654 = vld [vmem:[%s3 + $0x98] sm:$0xff]
      %v655 = vld [vmem:[%s4] sm:$0xff]
      %v656 = vld [vmem:[%s4 + $0x8] sm:$0x3]
      %v659 = vlaneseq
      %v660 = vshrl.u32 %v659, 7
      %v661 = vsub.s32 0, %v660
      %v662 = vrot.slane %v655, %v661
      %v663 = vlaneseq
      %v664 = vshrl.u32 %v663, 7
      %v665 = vsub.s32 1, %v664
      %v666 = vrot.slane %v655, %v665
      %v667 = vlaneseq
      %v668 = vshrl.u32 %v667, 7
      %v669 = vsub.s32 2, %v668
      %v670 = vrot.slane %v655, %v669
      %v671 = vlaneseq
      %v672 = vshrl.u32 %v671, 7
      %v673 = vsub.s32 3, %v672
      %v674 = vrot.slane %v655, %v673
      %v675 = vlaneseq
      %v676 = vshrl.u32 %v675, 7
      %v677 = vsub.s32 4, %v676
      %v678 = vrot.slane %v655, %v677
      %v679 = vlaneseq
      %v680 = vshrl.u32 %v679, 7
      %v681 = vsub.s32 5, %v680
      %v682 = vrot.slane %v655, %v681
      %v683 = vlaneseq
      %v684 = vshrl.u32 %v683, 7
      %v685 = vsub.s32 6, %v684
      %v686 = vrot.slane %v655, %v685
      %v687 = vlaneseq
      %v688 = vshrl.u32 %v687, 7
      %v689 = vsub.s32 7, %v688
      %v690 = vrot.slane %v655, %v689
      %v691 = vlaneseq
      %v692 = vshrl.u32 %v691, 7
      %v693 = vsub.s32 0, %v692
      %v694 = vrot.slane %v656, %v693
      %v695 = vlaneseq
      %v696 = vshrl.u32 %v695, 7
      %v697 = vsub.s32 1, %v696
      %v698 = vrot.slane %v656, %v697
      %v729 = vunpack.c.l.b16 %v635
      %v730 = vunpack.c.h.b16 %v635
      %v731 = vunpack.c.l.b16 %v636
      %v732 = vunpack.c.h.b16 %v636
      %v733 = vunpack.c.l.b16 %v637
      %v734 = vunpack.c.h.b16 %v637
      %v735 = vunpack.c.l.b16 %v638
      %v736 = vunpack.c.h.b16 %v638
      %v737 = vunpack.c.l.b16 %v639
      %v738 = vunpack.c.h.b16 %v639
      %v739 = vunpack.c.l.b16 %v640
      %v740 = vunpack.c.h.b16 %v640
      %v741 = vunpack.c.l.b16 %v641
      %v742 = vunpack.c.h.b16 %v641
      %v743 = vunpack.c.l.b16 %v642
      %v744 = vunpack.c.h.b16 %v642
      %v745 = vunpack.c.l.b16 %v643
      %v746 = vunpack.c.h.b16 %v643
      %v747 = vunpack.c.l.b16 %v644
      %v748 = vunpack.c.h.b16 %v644
      %v749 = vunpack.c.l.b16 %v645
      %v750 = vunpack.c.h.b16 %v645
      %v751 = vunpack.c.l.b16 %v646
      %v752 = vunpack.c.h.b16 %v646
      %v753 = vunpack.c.l.b16 %v647
      %v754 = vunpack.c.h.b16 %v647
      %v755 = vunpack.c.l.b16 %v648
      %v756 = vunpack.c.h.b16 %v648
      %v757 = vunpack.c.l.b16 %v649
      %v758 = vunpack.c.h.b16 %v649
      %v759 = vunpack.c.l.b16 %v650
      %v760 = vunpack.c.h.b16 %v650
      %v761 = vunpack.c.l.b16 %v651
      %v762 = vunpack.c.h.b16 %v651
      %v763 = vunpack.c.l.b16 %v652
      %v764 = vunpack.c.h.b16 %v652
      %v765 = vunpack.c.l.b16 %v653
      %v766 = vunpack.c.h.b16 %v653
      %v767 = vunpack.c.l.b16 %v654
      %v768 = vunpack.c.h.b16 %v654
      %v769 = vpack.c.b16 %v739, %v729
      %v770 = vpack.c.b16 %v740, %v730
      %v771 = vpack.c.b16 %v741, %v731
      %v772 = vpack.c.b16 %v742, %v732
      %v773 = vpack.c.b16 %v743, %v733
      %v774 = vpack.c.b16 %v744, %v734
      %v775 = vpack.c.b16 %v745, %v735
      %v776 = vpack.c.b16 %v746, %v736
      %v777 = vpack.c.b16 %v747, %v737
      %v778 = vpack.c.b16 %v748, %v738
      %v779 = vpack.c.b16 %v759, %v749
      %v780 = vpack.c.b16 %v760, %v750
      %v781 = vpack.c.b16 %v761, %v751
      %v782 = vpack.c.b16 %v762, %v752
      %v783 = vpack.c.b16 %v763, %v753
      %v784 = vpack.c.b16 %v764, %v754
      %v785 = vpack.c.b16 %v765, %v755
      %v786 = vpack.c.b16 %v766, %v756
      %v787 = vpack.c.b16 %v767, %v757
      %v788 = vpack.c.b16 %v768, %v758
      %vm809 = vcmask 261120
      %v811 = vsel %vm809, %v627, 0
      %v814 = vsel %vm809, %v628, 0
      %v817 = vsel %vm809, %v629, 0
      %v820 = vsel %vm809, %v630, 0
      %v823 = vsel %vm809, %v631, 0
      %v826 = vsel %vm809, %v632, 0
      %v829 = vsel %vm809, %v633, 0
      %v832 = vsel %vm809, %v634, 0
      %834 = vmatprep.subr.bf16.mxu0 %v770
      %835 = vmatpush1.bf16.msra.mxu0 %v769
      %836 = vmatprep.subr.bf16.mxu0 %v780
      %837 = vmatpush1.bf16.msra.mxu0 %v779
      %838 = vmatprep.subr.bf16.mxu0 0
      %839 = vmatpush1.bf16.msra.mxu0 0
      %840 = vmatprep.subr.bf16.mxu0 0
      %841 = vmatpush1.bf16.msra.mxu0 0
      %842 = vmatprep.subr.bf16.mxu0 0
      %843 = vmatpush1.bf16.msra.mxu0 0
      %844 = vmatprep.subr.bf16.mxu0 0
      %845 = vmatpush1.bf16.msra.mxu0 0
      %846 = vmatprep.subr.bf16.mxu0 0
      %847 = vmatpush1.bf16.msra.mxu0 0
      %848 = vmatprep.subr.bf16.mxu0 0
      %849 = vmatpush1.bf16.msra.mxu0 0
      %850 = vmatprep.subr.bf16.mxu0 0
      %851 = vmatpush1.bf16.msra.mxu0 0
      %852 = vmatprep.subr.bf16.mxu0 0
      %853 = vmatpush1.bf16.msra.mxu0 0
      %854 = vmatprep.subr.bf16.mxu0 0
      %855 = vmatpush1.bf16.msra.mxu0 0
      %856 = vmatprep.subr.bf16.mxu0 0
      %857 = vmatpush1.bf16.msra.mxu0 0
      %858 = vmatprep.subr.bf16.mxu0 0
      %859 = vmatpush1.bf16.msra.mxu0 0
      %860 = vmatprep.subr.bf16.mxu0 0
      %861 = vmatpush1.bf16.msra.mxu0 0
      %862 = vmatprep.subr.bf16.mxu0 0
      %863 = vmatpush1.bf16.msra.mxu0 0
      %864 = vmatprep.subr.bf16.mxu0 0
      %865 = vmatpush1.bf16.msra.mxu0 0
      %866 = vmatprep.mubr.bf16.mxu0 0
      %867 = vmatmul.mubr.bf16.gmra.mrb[0].mxu0 %v811
      %v868 = vpop.f32.mrb[0].mxu0
      %v869 = vadd.f32 %v662, %v868
      %v870 = vpop.f32.mrb[0].mxu0
      %v871 = vadd.f32 %v666, %v870
      %v872 = vpop.f32.mrb[0].mxu0
      %v873 = vadd.f32 %v662, %v872
      %v874 = vpop.f32.mrb[0].mxu0
      %v875 = vadd.f32 %v666, %v874
      %876 = vmatprep.mubr.bf16.mxu0 0
      %877 = vmatmul.mubr.bf16.gmra.mrb[0].mxu0 %v814
      %v878 = vpop.f32.mrb[0].mxu0
      %v879 = vadd.f32 %v662, %v878
      %v880 = vpop.f32.mrb[0].mxu0
      %v881 = vadd.f32 %v666, %v880
      %v882 = vpop.f32.mrb[0].mxu0
      %v883 = vadd.f32 %v662, %v882
      %v884 = vpop.f32.mrb[0].mxu0
      %v885 = vadd.f32 %v666, %v884
      %886 = vmatprep.mubr.bf16.mxu0 0
      %887 = vmatmul.mubr.bf16.gmra.mrb[0].mxu0 %v817
      %v888 = vpop.f32.mrb[0].mxu0
      %v889 = vadd.f32 %v662, %v888
      %v890 = vpop.f32.mrb[0].mxu0
      %v891 = vadd.f32 %v666, %v890
      %v892 = vpop.f32.mrb[0].mxu0
      %v893 = vadd.f32 %v662, %v892
      %v894 = vpop.f32.mrb[0].mxu0
      %v895 = vadd.f32 %v666, %v894
      %896 = vmatprep.mubr.bf16.mxu0 0
      %897 = vmatmul.mubr.bf16.gmra.mrb[0].mxu0 %v820
      %v898 = vpop.f32.mrb[0].mxu0
      %v899 = vadd.f32 %v662, %v898
      %v900 = vpop.f32.mrb[0].mxu0
      %v901 = vadd.f32 %v666, %v900
      %v902 = vpop.f32.mrb[0].mxu0
      %v903 = vadd.f32 %v662, %v902
      %v904 = vpop.f32.mrb[0].mxu0
      %v905 = vadd.f32 %v666, %v904
      %906 = vmatprep.mubr.bf16.mxu0 0
      %907 = vmatmul.mubr.bf16.gmra.mrb[0].mxu0 %v823
      %v908 = vpop.f32.mrb[0].mxu0
      %v909 = vadd.f32 %v662, %v908
      %v910 = vpop.f32.mrb[0].mxu0
      %v911 = vadd.f32 %v666, %v910
      %v912 = vpop.f32.mrb[0].mxu0
      %v913 = vadd.f32 %v662, %v912
      %v914 = vpop.f32.mrb[0].mxu0
      %v915 = vadd.f32 %v666, %v914
      %916 = vmatprep.mubr.bf16.mxu0 0
      %917 = vmatmul.mubr.bf16.gmra.mrb[0].mxu0 %v826
      %v918 = vpop.f32.mrb[0].mxu0
      %v919 = vadd.f32 %v662, %v918
      %v920 = vpop.f32.mrb[0].mxu0
      %v921 = vadd.f32 %v666, %v920
      %v922 = vpop.f32.mrb[0].mxu0
      %v923 = vadd.f32 %v662, %v922
      %v924 = vpop.f32.mrb[0].mxu0
      %v925 = vadd.f32 %v666, %v924
      %926 = vmatprep.mubr.bf16.mxu0 0
      %927 = vmatmul.mubr.bf16.gmra.mrb[0].mxu0 %v829
      %v928 = vpop.f32.mrb[0].mxu0
      %v929 = vadd.f32 %v662, %v928
      %v930 = vpop.f32.mrb[0].mxu0
      %v931 = vadd.f32 %v666, %v930
      %v932 = vpop.f32.mrb[0].mxu0
      %v933 = vadd.f32 %v662, %v932
      %v934 = vpop.f32.mrb[0].mxu0
      %v935 = vadd.f32 %v666, %v934
      %936 = vmatprep.mubr.bf16.mxu0 0
      %937 = vmatmul.mubr.bf16.gmra.mrb[0].mxu0 %v832
      %v938 = vpop.f32.mrb[0].mxu0
      %v939 = vadd.f32 %v662, %v938
      %v940 = vpop.f32.mrb[0].mxu0
      %v941 = vadd.f32 %v666, %v940
      %v942 = vpop.f32.mrb[0].mxu0
      %v943 = vadd.f32 %v662, %v942
      %v944 = vpop.f32.mrb[0].mxu0
      %v945 = vadd.f32 %v666, %v944
      %946 = vdwg.mxu0
      %947 = vmatprep.subr.bf16.mxu0 %v772
      %948 = vmatpush1.bf16.msra.mxu0 %v771
      %949 = vmatprep.subr.bf16.mxu0 %v782
      %950 = vmatpush1.bf16.msra.mxu0 %v781
      %951 = vmatprep.subr.bf16.mxu0 0
      %952 = vmatpush1.bf16.msra.mxu0 0
      %953 = vmatprep.subr.bf16.mxu0 0
      %954 = vmatpush1.bf16.msra.mxu0 0
      %955 = vmatprep.subr.bf16.mxu0 0
      %956 = vmatpush1.bf16.msra.mxu0 0
      %957 = vmatprep.subr.bf16.mxu0 0
      %958 = vmatpush1.bf16.msra.mxu0 0
      %959 = vmatprep.subr.bf16.mxu0 0
      %960 = vmatpush1.bf16.msra.mxu0 0
      %961 = vmatprep.subr.bf16.mxu0 0
      %962 = vmatpush1.bf16.msra.mxu0 0
      %963 = vmatprep.subr.bf16.mxu0 0
      %964 = vmatpush1.bf16.msra.mxu0 0
      %965 = vmatprep.subr.bf16.mxu0 0
      %966 = vmatpush1.bf16.msra.mxu0 0
      %967 = vmatprep.subr.bf16.mxu0 0
      %968 = vmatpush1.bf16.msra.mxu0 0
      %969 = vmatprep.subr.bf16.mxu0 0
      %970 = vmatpush1.bf16.msra.mxu0 0
      %971 = vmatprep.subr.bf16.mxu0 0
      %972 = vmatpush1.bf16.msra.mxu0 0
      %973 = vmatprep.subr.bf16.mxu0 0
      %974 = vmatpush1.bf16.msra.mxu0 0
      %975 = vmatprep.subr.bf16.mxu0 0
      %976 = vmatpush1.bf16.msra.mxu0 0
      %977 = vmatprep.subr.bf16.mxu0 0
      %978 = vmatpush1.bf16.msra.mxu0 0
      %979 = vmatprep.mubr.bf16.mxu0 0
      %980 = vmatmul.mubr.bf16.gmra.mrb[0].mxu0 %v811
      %v981 = vpop.f32.mrb[0].mxu0
      %v982 = vadd.f32 %v670, %v981
      %v983 = vpop.f32.mrb[0].mxu0
      %v984 = vadd.f32 %v674, %v983
      %v985 = vpop.f32.mrb[0].mxu0
      %v986 = vadd.f32 %v670, %v985
      %v987 = vpop.f32.mrb[0].mxu0
      %v988 = vadd.f32 %v674, %v987
      %989 = vmatprep.mubr.bf16.mxu0 0
      %990 = vmatmul.mubr.bf16.gmra.mrb[0].mxu0 %v814
      %v991 = vpop.f32.mrb[0].mxu0
      %v992 = vadd.f32 %v670, %v991
      %v993 = vpop.f32.mrb[0].mxu0
      %v994 = vadd.f32 %v674, %v993
      %v995 = vpop.f32.mrb[0].mxu0
      %v996 = vadd.f32 %v670, %v995
      %v997 = vpop.f32.mrb[0].mxu0
      %v998 = vadd.f32 %v674, %v997
      %999 = vmatprep.mubr.bf16.mxu0 0
      %1000 = vmatmul.mubr.bf16.gmra.mrb[0].mxu0 %v817
      %v1001 = vpop.f32.mrb[0].mxu0
      %v1002 = vadd.f32 %v670, %v1001
      %v1003 = vpop.f32.mrb[0].mxu0
      %v1004 = vadd.f32 %v674, %v1003
      %v1005 = vpop.f32.mrb[0].mxu0
      %v1006 = vadd.f32 %v670, %v1005
      %v1007 = vpop.f32.mrb[0].mxu0
      %v1008 = vadd.f32 %v674, %v1007
      %1009 = vmatprep.mubr.bf16.mxu0 0
      %1010 = vmatmul.mubr.bf16.gmra.mrb[0].mxu0 %v820
      %v1011 = vpop.f32.mrb[0].mxu0
      %v1012 = vadd.f32 %v670, %v1011
      %v1013 = vpop.f32.mrb[0].mxu0
      %v1014 = vadd.f32 %v674, %v1013
      %v1015 = vpop.f32.mrb[0].mxu0
      %v1016 = vadd.f32 %v670, %v1015
      %v1017 = vpop.f32.mrb[0].mxu0
      %v1018 = vadd.f32 %v674, %v1017
      %1019 = vmatprep.mubr.bf16.mxu0 0
      %1020 = vmatmul.mubr.bf16.gmra.mrb[0].mxu0 %v823
      %v1021 = vpop.f32.mrb[0].mxu0
      %v1022 = vadd.f32 %v670, %v1021
      %v1023 = vpop.f32.mrb[0].mxu0
      %v1024 = vadd.f32 %v674, %v1023
      %v1025 = vpop.f32.mrb[0].mxu0
      %v1026 = vadd.f32 %v670, %v1025
      %v1027 = vpop.f32.mrb[0].mxu0
      %v1028 = vadd.f32 %v674, %v1027
      %1029 = vmatprep.mubr.bf16.mxu0 0
      %1030 = vmatmul.mubr.bf16.gmra.mrb[0].mxu0 %v826
      %v1031 = vpop.f32.mrb[0].mxu0
      %v1032 = vadd.f32 %v670, %v1031
      %v1033 = vpop.f32.mrb[0].mxu0
      %v1034 = vadd.f32 %v674, %v1033
      %v1035 = vpop.f32.mrb[0].mxu0
      %v1036 = vadd.f32 %v670, %v1035
      %v1037 = vpop.f32.mrb[0].mxu0
      %v1038 = vadd.f32 %v674, %v1037
      %1039 = vmatprep.mubr.bf16.mxu0 0
      %1040 = vmatmul.mubr.bf16.gmra.mrb[0].mxu0 %v829
      %v1041 = vpop.f32.mrb[0].mxu0
      %v1042 = vadd.f32 %v670, %v1041
      %v1043 = vpop.f32.mrb[0].mxu0
      %v1044 = vadd.f32 %v674, %v1043
      %v1045 = vpop.f32.mrb[0].mxu0
      %v1046 = vadd.f32 %v670, %v1045
      %v1047 = vpop.f32.mrb[0].mxu0
      %v1048 = vadd.f32 %v674, %v1047
      %1049 = vmatprep.mubr.bf16.mxu0 0
      %1050 = vmatmul.mubr.bf16.gmra.mrb[0].mxu0 %v832
      %v1051 = vpop.f32.mrb[0].mxu0
      %v1052 = vadd.f32 %v670, %v1051
      %v1053 = vpop.f32.mrb[0].mxu0
      %v1054 = vadd.f32 %v674, %v1053
      %v1055 = vpop.f32.mrb[0].mxu0
      %v1056 = vadd.f32 %v670, %v1055
      %v1057 = vpop.f32.mrb[0].mxu0
      %v1058 = vadd.f32 %v674, %v1057
      %1059 = vdwg.mxu0
      %1060 = vmatprep.subr.bf16.mxu0 %v774
      %1061 = vmatpush1.bf16.msra.mxu0 %v773
      %1062 = vmatprep.subr.bf16.mxu0 %v784
      %1063 = vmatpush1.bf16.msra.mxu0 %v783
      %1064 = vmatprep.subr.bf16.mxu0 0
      %1065 = vmatpush1.bf16.msra.mxu0 0
      %1066 = vmatprep.subr.bf16.mxu0 0
      %1067 = vmatpush1.bf16.msra.mxu0 0
      %1068 = vmatprep.subr.bf16.mxu0 0
      %1069 = vmatpush1.bf16.msra.mxu0 0
      %1070 = vmatprep.subr.bf16.mxu0 0
      %1071 = vmatpush1.bf16.msra.mxu0 0
      %1072 = vmatprep.subr.bf16.mxu0 0
      %1073 = vmatpush1.bf16.msra.mxu0 0
      %1074 = vmatprep.subr.bf16.mxu0 0
      %1075 = vmatpush1.bf16.msra.mxu0 0
      %1076 = vmatprep.subr.bf16.mxu0 0
      %1077 = vmatpush1.bf16.msra.mxu0 0
      %1078 = vmatprep.subr.bf16.mxu0 0
      %1079 = vmatpush1.bf16.msra.mxu0 0
      %1080 = vmatprep.subr.bf16.mxu0 0
      %1081 = vmatpush1.bf16.msra.mxu0 0
      %1082 = vmatprep.subr.bf16.mxu0 0
      %1083 = vmatpush1.bf16.msra.mxu0 0
      %1084 = vmatprep.subr.bf16.mxu0 0
      %1085 = vmatpush1.bf16.msra.mxu0 0
      %1086 = vmatprep.subr.bf16.mxu0 0
      %1087 = vmatpush1.bf16.msra.mxu0 0
      %1088 = vmatprep.subr.bf16.mxu0 0
      %1089 = vmatpush1.bf16.msra.mxu0 0
      %1090 = vmatprep.subr.bf16.mxu0 0
      %1091 = vmatpush1.bf16.msra.mxu0 0
      %1092 = vmatprep.mubr.bf16.mxu0 0
      %1093 = vmatmul.mubr.bf16.gmra.mrb[0].mxu0 %v811
      %v1094 = vpop.f32.mrb[0].mxu0
      %v1095 = vadd.f32 %v678, %v1094
      %v1096 = vpop.f32.mrb[0].mxu0
      %v1097 = vadd.f32 %v682, %v1096
      %v1098 = vpop.f32.mrb[0].mxu0
      %v1099 = vadd.f32 %v678, %v1098
      %v1100 = vpop.f32.mrb[0].mxu0
      %v1101 = vadd.f32 %v682, %v1100
      %1102 = vmatprep.mubr.bf16.mxu0 0
      %1103 = vmatmul.mubr.bf16.gmra.mrb[0].mxu0 %v814
      %v1104 = vpop.f32.mrb[0].mxu0
      %v1105 = vadd.f32 %v678, %v1104
      %v1106 = vpop.f32.mrb[0].mxu0
      %v1107 = vadd.f32 %v682, %v1106
      %v1108 = vpop.f32.mrb[0].mxu0
      %v1109 = vadd.f32 %v678, %v1108
      %v1110 = vpop.f32.mrb[0].mxu0
      %v1111 = vadd.f32 %v682, %v1110
      %1112 = vmatprep.mubr.bf16.mxu0 0
      %1113 = vmatmul.mubr.bf16.gmra.mrb[0].mxu0 %v817
      %v1114 = vpop.f32.mrb[0].mxu0
      %v1115 = vadd.f32 %v678, %v1114
      %v1116 = vpop.f32.mrb[0].mxu0
      %v1117 = vadd.f32 %v682, %v1116
      %v1118 = vpop.f32.mrb[0].mxu0
      %v1119 = vadd.f32 %v678, %v1118
      %v1120 = vpop.f32.mrb[0].mxu0
      %v1121 = vadd.f32 %v682, %v1120
      %1122 = vmatprep.mubr.bf16.mxu0 0
      %1123 = vmatmul.mubr.bf16.gmra.mrb[0].mxu0 %v820
      %v1124 = vpop.f32.mrb[0].mxu0
      %v1125 = vadd.f32 %v678, %v1124
      %v1126 = vpop.f32.mrb[0].mxu0
      %v1127 = vadd.f32 %v682, %v1126
      %v1128 = vpop.f32.mrb[0].mxu0
      %v1129 = vadd.f32 %v678, %v1128
      %v1130 = vpop.f32.mrb[0].mxu0
      %v1131 = vadd.f32 %v682, %v1130
      %1132 = vmatprep.mubr.bf16.mxu0 0
      %1133 = vmatmul.mubr.bf16.gmra.mrb[0].mxu0 %v823
      %v1134 = vpop.f32.mrb[0].mxu0
      %v1135 = vadd.f32 %v678, %v1134
      %v1136 = vpop.f32.mrb[0].mxu0
      %v1137 = vadd.f32 %v682, %v1136
      %v1138 = vpop.f32.mrb[0].mxu0
      %v1139 = vadd.f32 %v678, %v1138
      %v1140 = vpop.f32.mrb[0].mxu0
      %v1141 = vadd.f32 %v682, %v1140
      %1142 = vmatprep.mubr.bf16.mxu0 0
      %1143 = vmatmul.mubr.bf16.gmra.mrb[0].mxu0 %v826
      %v1144 = vpop.f32.mrb[0].mxu0
      %v1145 = vadd.f32 %v678, %v1144
      %v1146 = vpop.f32.mrb[0].mxu0
      %v1147 = vadd.f32 %v682, %v1146
      %v1148 = vpop.f32.mrb[0].mxu0
      %v1149 = vadd.f32 %v678, %v1148
      %v1150 = vpop.f32.mrb[0].mxu0
      %v1151 = vadd.f32 %v682, %v1150
      %1152 = vmatprep.mubr.bf16.mxu0 0
      %1153 = vmatmul.mubr.bf16.gmra.mrb[0].mxu0 %v829
      %v1154 = vpop.f32.mrb[0].mxu0
      %v1155 = vadd.f32 %v678, %v1154
      %v1156 = vpop.f32.mrb[0].mxu0
      %v1157 = vadd.f32 %v682, %v1156
      %v1158 = vpop.f32.mrb[0].mxu0
      %v1159 = vadd.f32 %v678, %v1158
      %v1160 = vpop.f32.mrb[0].mxu0
      %v1161 = vadd.f32 %v682, %v1160
      %1162 = vmatprep.mubr.bf16.mxu0 0
      %1163 = vmatmul.mubr.bf16.gmra.mrb[0].mxu0 %v832
      %v1164 = vpop.f32.mrb[0].mxu0
      %v1165 = vadd.f32 %v678, %v1164
      %v1166 = vpop.f32.mrb[0].mxu0
      %v1167 = vadd.f32 %v682, %v1166
      %v1168 = vpop.f32.mrb[0].mxu0
      %v1169 = vadd.f32 %v678, %v1168
      %v1170 = vpop.f32.mrb[0].mxu0
      %v1171 = vadd.f32 %v682, %v1170
      %1172 = vdwg.mxu0
      %1173 = vmatprep.subr.bf16.mxu0 %v776
      %1174 = vmatpush1.bf16.msra.mxu0 %v775
      %1175 = vmatprep.subr.bf16.mxu0 %v786
      %1176 = vmatpush1.bf16.msra.mxu0 %v785
      %1177 = vmatprep.subr.bf16.mxu0 0
      %1178 = vmatpush1.bf16.msra.mxu0 0
      %1179 = vmatprep.subr.bf16.mxu0 0
      %1180 = vmatpush1.bf16.msra.mxu0 0
      %1181 = vmatprep.subr.bf16.mxu0 0
      %1182 = vmatpush1.bf16.msra.mxu0 0
      %1183 = vmatprep.subr.bf16.mxu0 0
      %1184 = vmatpush1.bf16.msra.mxu0 0
      %1185 = vmatprep.subr.bf16.mxu0 0
      %1186 = vmatpush1.bf16.msra.mxu0 0
      %1187 = vmatprep.subr.bf16.mxu0 0
      %1188 = vmatpush1.bf16.msra.mxu0 0
      %1189 = vmatprep.subr.bf16.mxu0 0
      %1190 = vmatpush1.bf16.msra.mxu0 0
      %1191 = vmatprep.subr.bf16.mxu0 0
      %1192 = vmatpush1.bf16.msra.mxu0 0
      %1193 = vmatprep.subr.bf16.mxu0 0
      %1194 = vmatpush1.bf16.msra.mxu0 0
      %1195 = vmatprep.subr.bf16.mxu0 0
      %1196 = vmatpush1.bf16.msra.mxu0 0
      %1197 = vmatprep.subr.bf16.mxu0 0
      %1198 = vmatpush1.bf16.msra.mxu0 0
      %1199 = vmatprep.subr.bf16.mxu0 0
      %1200 = vmatpush1.bf16.msra.mxu0 0
      %1201 = vmatprep.subr.bf16.mxu0 0
      %1202 = vmatpush1.bf16.msra.mxu0 0
      %1203 = vmatprep.subr.bf16.mxu0 0
      %1204 = vmatpush1.bf16.msra.mxu0 0
      %1205 = vmatprep.mubr.bf16.mxu0 0
      %1206 = vmatmul.mubr.bf16.gmra.mrb[0].mxu0 %v811
      %v1207 = vpop.f32.mrb[0].mxu0
      %v1208 = vadd.f32 %v686, %v1207
      %v1209 = vpop.f32.mrb[0].mxu0
      %v1210 = vadd.f32 %v690, %v1209
      %v1211 = vpop.f32.mrb[0].mxu0
      %v1212 = vadd.f32 %v686, %v1211
      %v1213 = vpop.f32.mrb[0].mxu0
      %v1214 = vadd.f32 %v690, %v1213
      %1215 = vmatprep.mubr.bf16.mxu0 0
      %1216 = vmatmul.mubr.bf16.gmra.mrb[0].mxu0 %v814
      %v1217 = vpop.f32.mrb[0].mxu0
      %v1218 = vadd.f32 %v686, %v1217
      %v1219 = vpop.f32.mrb[0].mxu0
      %v1220 = vadd.f32 %v690, %v1219
      %v1221 = vpop.f32.mrb[0].mxu0
      %v1222 = vadd.f32 %v686, %v1221
      %v1223 = vpop.f32.mrb[0].mxu0
      %v1224 = vadd.f32 %v690, %v1223
      %1225 = vmatprep.mubr.bf16.mxu0 0
      %1226 = vmatmul.mubr.bf16.gmra.mrb[0].mxu0 %v817
      %v1227 = vpop.f32.mrb[0].mxu0
      %v1228 = vadd.f32 %v686, %v1227
      %v1229 = vpop.f32.mrb[0].mxu0
      %v1230 = vadd.f32 %v690, %v1229
      %v1231 = vpop.f32.mrb[0].mxu0
      %v1232 = vadd.f32 %v686, %v1231
      %v1233 = vpop.f32.mrb[0].mxu0
      %v1234 = vadd.f32 %v690, %v1233
      %1235 = vmatprep.mubr.bf16.mxu0 0
      %1236 = vmatmul.mubr.bf16.gmra.mrb[0].mxu0 %v820
      %v1237 = vpop.f32.mrb[0].mxu0
      %v1238 = vadd.f32 %v686, %v1237
      %v1239 = vpop.f32.mrb[0].mxu0
      %v1240 = vadd.f32 %v690, %v1239
      %v1241 = vpop.f32.mrb[0].mxu0
      %v1242 = vadd.f32 %v686, %v1241
      %v1243 = vpop.f32.mrb[0].mxu0
      %v1244 = vadd.f32 %v690, %v1243
      %1245 = vmatprep.mubr.bf16.mxu0 0
      %1246 = vmatmul.mubr.bf16.gmra.mrb[0].mxu0 %v823
      %v1247 = vpop.f32.mrb[0].mxu0
      %v1248 = vadd.f32 %v686, %v1247
      %v1249 = vpop.f32.mrb[0].mxu0
      %v1250 = vadd.f32 %v690, %v1249
      %v1251 = vpop.f32.mrb[0].mxu0
      %v1252 = vadd.f32 %v686, %v1251
      %v1253 = vpop.f32.mrb[0].mxu0
      %v1254 = vadd.f32 %v690, %v1253
      %1255 = vmatprep.mubr.bf16.mxu0 0
      %1256 = vmatmul.mubr.bf16.gmra.mrb[0].mxu0 %v826
      %v1257 = vpop.f32.mrb[0].mxu0
      %v1258 = vadd.f32 %v686, %v1257
      %v1259 = vpop.f32.mrb[0].mxu0
      %v1260 = vadd.f32 %v690, %v1259
      %v1261 = vpop.f32.mrb[0].mxu0
      %v1262 = vadd.f32 %v686, %v1261
      %v1263 = vpop.f32.mrb[0].mxu0
      %v1264 = vadd.f32 %v690, %v1263
      %1265 = vmatprep.mubr.bf16.mxu0 0
      %1266 = vmatmul.mubr.bf16.gmra.mrb[0].mxu0 %v829
      %v1267 = vpop.f32.mrb[0].mxu0
      %v1268 = vadd.f32 %v686, %v1267
      %v1269 = vpop.f32.mrb[0].mxu0
      %v1270 = vadd.f32 %v690, %v1269
      %v1271 = vpop.f32.mrb[0].mxu0
      %v1272 = vadd.f32 %v686, %v1271
      %v1273 = vpop.f32.mrb[0].mxu0
      %v1274 = vadd.f32 %v690, %v1273
      %1275 = vmatprep.mubr.bf16.mxu0 0
      %1276 = vmatmul.mubr.bf16.gmra.mrb[0].mxu0 %v832
      %v1277 = vpop.f32.mrb[0].mxu0
      %v1278 = vadd.f32 %v686, %v1277
      %v1279 = vpop.f32.mrb[0].mxu0
      %v1280 = vadd.f32 %v690, %v1279
      %v1281 = vpop.f32.mrb[0].mxu0
      %v1282 = vadd.f32 %v686, %v1281
      %v1283 = vpop.f32.mrb[0].mxu0
      %v1284 = vadd.f32 %v690, %v1283
      %1285 = vdwg.mxu0
      %1286 = vmatprep.subr.bf16.mxu0 %v778
      %1287 = vmatpush1.bf16.msra.mxu0 %v777
      %1288 = vmatprep.subr.bf16.mxu0 %v788
      %1289 = vmatpush1.bf16.msra.mxu0 %v787
      %1290 = vmatprep.subr.bf16.mxu0 0
      %1291 = vmatpush1.bf16.msra.mxu0 0
      %1292 = vmatprep.subr.bf16.mxu0 0
      %1293 = vmatpush1.bf16.msra.mxu0 0
      %1294 = vmatprep.subr.bf16.mxu0 0
      %1295 = vmatpush1.bf16.msra.mxu0 0
      %1296 = vmatprep.subr.bf16.mxu0 0
      %1297 = vmatpush1.bf16.msra.mxu0 0
      %1298 = vmatprep.subr.bf16.mxu0 0
      %1299 = vmatpush1.bf16.msra.mxu0 0
      %1300 = vmatprep.subr.bf16.mxu0 0
      %1301 = vmatpush1.bf16.msra.mxu0 0
      %1302 = vmatprep.subr.bf16.mxu0 0
      %1303 = vmatpush1.bf16.msra.mxu0 0
      %1304 = vmatprep.subr.bf16.mxu0 0
      %1305 = vmatpush1.bf16.msra.mxu0 0
      %1306 = vmatprep.subr.bf16.mxu0 0
      %1307 = vmatpush1.bf16.msra.mxu0 0
      %1308 = vmatprep.subr.bf16.mxu0 0
      %1309 = vmatpush1.bf16.msra.mxu0 0
      %1310 = vmatprep.subr.bf16.mxu0 0
      %1311 = vmatpush1.bf16.msra.mxu0 0
      %1312 = vmatprep.subr.bf16.mxu0 0
      %1313 = vmatpush1.bf16.msra.mxu0 0
      %1314 = vmatprep.subr.bf16.mxu0 0
      %1315 = vmatpush1.bf16.msra.mxu0 0
      %1316 = vmatprep.subr.bf16.mxu0 0
      %1317 = vmatpush1.bf16.msra.mxu0 0
      %1318 = vmatprep.mubr.bf16.mxu0 0
      %1319 = vmatmul.mubr.bf16.gmra.mrb[0].mxu0 %v811
      %v1320 = vpop.f32.mrb[0].mxu0
      %v1321 = vadd.f32 %v694, %v1320
      %v1322 = vpop.f32.mrb[0].mxu0
      %v1323 = vadd.f32 %v698, %v1322
      %v1324 = vpop.f32.mrb[0].mxu0
      %v1325 = vadd.f32 %v694, %v1324
      %v1326 = vpop.f32.mrb[0].mxu0
      %v1327 = vadd.f32 %v698, %v1326
      %1328 = vmatprep.mubr.bf16.mxu0 0
      %1329 = vmatmul.mubr.bf16.gmra.mrb[0].mxu0 %v814
      %v1330 = vpop.f32.mrb[0].mxu0
      %v1331 = vadd.f32 %v694, %v1330
      %v1332 = vpop.f32.mrb[0].mxu0
      %v1333 = vadd.f32 %v698, %v1332
      %v1334 = vpop.f32.mrb[0].mxu0
      %v1335 = vadd.f32 %v694, %v1334
      %v1336 = vpop.f32.mrb[0].mxu0
      %v1337 = vadd.f32 %v698, %v1336
      %1338 = vmatprep.mubr.bf16.mxu0 0
      %1339 = vmatmul.mubr.bf16.gmra.mrb[0].mxu0 %v817
      %v1340 = vpop.f32.mrb[0].mxu0
      %v1341 = vadd.f32 %v694, %v1340
      %v1342 = vpop.f32.mrb[0].mxu0
      %v1343 = vadd.f32 %v698, %v1342
      %v1344 = vpop.f32.mrb[0].mxu0
      %v1345 = vadd.f32 %v694, %v1344
      %v1346 = vpop.f32.mrb[0].mxu0
      %v1347 = vadd.f32 %v698, %v1346
      %1348 = vmatprep.mubr.bf16.mxu0 0
      %1349 = vmatmul.mubr.bf16.gmra.mrb[0].mxu0 %v820
      %v1350 = vpop.f32.mrb[0].mxu0
      %v1351 = vadd.f32 %v694, %v1350
      %v1352 = vpop.f32.mrb[0].mxu0
      %v1353 = vadd.f32 %v698, %v1352
      %v1354 = vpop.f32.mrb[0].mxu0
      %v1355 = vadd.f32 %v694, %v1354
      %v1356 = vpop.f32.mrb[0].mxu0
      %v1357 = vadd.f32 %v698, %v1356
      %1358 = vmatprep.mubr.bf16.mxu0 0
      %1359 = vmatmul.mubr.bf16.gmra.mrb[0].mxu0 %v823
      %v1360 = vpop.f32.mrb[0].mxu0
      %v1361 = vadd.f32 %v694, %v1360
      %v1362 = vpop.f32.mrb[0].mxu0
      %v1363 = vadd.f32 %v698, %v1362
      %v1364 = vpop.f32.mrb[0].mxu0
      %v1365 = vadd.f32 %v694, %v1364
      %v1366 = vpop.f32.mrb[0].mxu0
      %v1367 = vadd.f32 %v698, %v1366
      %1368 = vmatprep.mubr.bf16.mxu0 0
      %1369 = vmatmul.mubr.bf16.gmra.mrb[0].mxu0 %v826
      %v1370 = vpop.f32.mrb[0].mxu0
      %v1371 = vadd.f32 %v694, %v1370
      %v1372 = vpop.f32.mrb[0].mxu0
      %v1373 = vadd.f32 %v698, %v1372
      %v1374 = vpop.f32.mrb[0].mxu0
      %v1375 = vadd.f32 %v694, %v1374
      %v1376 = vpop.f32.mrb[0].mxu0
      %v1377 = vadd.f32 %v698, %v1376
      %1378 = vmatprep.mubr.bf16.mxu0 0
      %1379 = vmatmul.mubr.bf16.gmra.mrb[0].mxu0 %v829
      %v1380 = vpop.f32.mrb[0].mxu0
      %v1381 = vadd.f32 %v694, %v1380
      %v1382 = vpop.f32.mrb[0].mxu0
      %v1383 = vadd.f32 %v698, %v1382
      %v1384 = vpop.f32.mrb[0].mxu0
      %v1385 = vadd.f32 %v694, %v1384
      %v1386 = vpop.f32.mrb[0].mxu0
      %v1387 = vadd.f32 %v698, %v1386
      %1388 = vmatprep.mubr.bf16.mxu0 0
      %1389 = vmatmul.mubr.bf16.gmra.mrb[0].mxu0 %v832
      %v1390 = vpop.f32.mrb[0].mxu0
      %v1391 = vadd.f32 %v694, %v1390
      %v1392 = vpop.f32.mrb[0].mxu0
      %v1393 = vadd.f32 %v698, %v1392
      %v1394 = vpop.f32.mrb[0].mxu0
      %v1395 = vadd.f32 %v694, %v1394
      %v1396 = vpop.f32.mrb[0].mxu0
      %v1397 = vadd.f32 %v698, %v1396
      %1398 = vdwg.mxu0
      %v1399 = vsub.f32 0.0, %v869
      %v1400 = vsub.f32 0.0, %v871
      %v1401 = vsub.f32 0.0, %v982
      %v1402 = vsub.f32 0.0, %v984
      %v1403 = vsub.f32 0.0, %v1095
      %v1404 = vsub.f32 0.0, %v1097
      %v1405 = vsub.f32 0.0, %v1208
      %v1406 = vsub.f32 0.0, %v1210
      %v1407 = vsub.f32 0.0, %v1321
      %v1408 = vsub.f32 0.0, %v1323
      %v1409 = vsub.f32 0.0, %v873
      %v1410 = vsub.f32 0.0, %v875
      %v1411 = vsub.f32 0.0, %v986
      %v1412 = vsub.f32 0.0, %v988
      %v1413 = vsub.f32 0.0, %v1099
      %v1414 = vsub.f32 0.0, %v1101
      %v1415 = vsub.f32 0.0, %v1212
      %v1416 = vsub.f32 0.0, %v1214
      %v1417 = vsub.f32 0.0, %v1325
      %v1418 = vsub.f32 0.0, %v1327
      %v1419 = vsub.f32 0.0, %v879
      %v1420 = vsub.f32 0.0, %v881
      %v1421 = vsub.f32 0.0, %v992
      %v1422 = vsub.f32 0.0, %v994
      %v1423 = vsub.f32 0.0, %v1105
      %v1424 = vsub.f32 0.0, %v1107
      %v1425 = vsub.f32 0.0, %v1218
      %v1426 = vsub.f32 0.0, %v1220
      %v1427 = vsub.f32 0.0, %v1331
      %v1428 = vsub.f32 0.0, %v1333
      %v1429 = vsub.f32 0.0, %v883
      %v1430 = vsub.f32 0.0, %v885
      %v1431 = vsub.f32 0.0, %v996
      %v1432 = vsub.f32 0.0, %v998
      %v1433 = vsub.f32 0.0, %v1109
      %v1434 = vsub.f32 0.0, %v1111
      %v1435 = vsub.f32 0.0, %v1222
      %v1436 = vsub.f32 0.0, %v1224
      %v1437 = vsub.f32 0.0, %v1335
      %v1438 = vsub.f32 0.0, %v1337
      %v1439 = vsub.f32 0.0, %v889
      %v1440 = vsub.f32 0.0, %v891
      %v1441 = vsub.f32 0.0, %v1002
      %v1442 = vsub.f32 0.0, %v1004
      %v1443 = vsub.f32 0.0, %v1115
      %v1444 = vsub.f32 0.0, %v1117
      %v1445 = vsub.f32 0.0, %v1228
      %v1446 = vsub.f32 0.0, %v1230
      %v1447 = vsub.f32 0.0, %v1341
      %v1448 = vsub.f32 0.0, %v1343
      %v1449 = vsub.f32 0.0, %v893
      %v1450 = vsub.f32 0.0, %v895
      %v1451 = vsub.f32 0.0, %v1006
      %v1452 = vsub.f32 0.0, %v1008
      %v1453 = vsub.f32 0.0, %v1119
      %v1454 = vsub.f32 0.0, %v1121
      %v1455 = vsub.f32 0.0, %v1232
      %v1456 = vsub.f32 0.0, %v1234
      %v1457 = vsub.f32 0.0, %v1345
      %v1458 = vsub.f32 0.0, %v1347
      %v1459 = vsub.f32 0.0, %v899
      %v1460 = vsub.f32 0.0, %v901
      %v1461 = vsub.f32 0.0, %v1012
      %v1462 = vsub.f32 0.0, %v1014
      %v1463 = vsub.f32 0.0, %v1125
      %v1464 = vsub.f32 0.0, %v1127
      %v1465 = vsub.f32 0.0, %v1238
      %v1466 = vsub.f32 0.0, %v1240
      %v1467 = vsub.f32 0.0, %v1351
      %v1468 = vsub.f32 0.0, %v1353
      %v1469 = vsub.f32 0.0, %v903
      %v1470 = vsub.f32 0.0, %v905
      %v1471 = vsub.f32 0.0, %v1016
      %v1472 = vsub.f32 0.0, %v1018
      %v1473 = vsub.f32 0.0, %v1129
      %v1474 = vsub.f32 0.0, %v1131
      %v1475 = vsub.f32 0.0, %v1242
      %v1476 = vsub.f32 0.0, %v1244
      %v1477 = vsub.f32 0.0, %v1355
      %v1478 = vsub.f32 0.0, %v1357
      %v1479 = vsub.f32 0.0, %v909
      %v1480 = vsub.f32 0.0, %v911
      %v1481 = vsub.f32 0.0, %v1022
      %v1482 = vsub.f32 0.0, %v1024
      %v1483 = vsub.f32 0.0, %v1135
      %v1484 = vsub.f32 0.0, %v1137
      %v1485 = vsub.f32 0.0, %v1248
      %v1486 = vsub.f32 0.0, %v1250
      %v1487 = vsub.f32 0.0, %v1361
      %v1488 = vsub.f32 0.0, %v1363
      %v1489 = vsub.f32 0.0, %v913
      %v1490 = vsub.f32 0.0, %v915
      %v1491 = vsub.f32 0.0, %v1026
      %v1492 = vsub.f32 0.0, %v1028
      %v1493 = vsub.f32 0.0, %v1139
      %v1494 = vsub.f32 0.0, %v1141
      %v1495 = vsub.f32 0.0, %v1252
      %v1496 = vsub.f32 0.0, %v1254
      %v1497 = vsub.f32 0.0, %v1365
      %v1498 = vsub.f32 0.0, %v1367
      %v1499 = vsub.f32 0.0, %v919
      %v1500 = vsub.f32 0.0, %v921
      %v1501 = vsub.f32 0.0, %v1032
      %v1502 = vsub.f32 0.0, %v1034
      %v1503 = vsub.f32 0.0, %v1145
      %v1504 = vsub.f32 0.0, %v1147
      %v1505 = vsub.f32 0.0, %v1258
      %v1506 = vsub.f32 0.0, %v1260
      %v1507 = vsub.f32 0.0, %v1371
      %v1508 = vsub.f32 0.0, %v1373
      %v1509 = vsub.f32 0.0, %v923
      %v1510 = vsub.f32 0.0, %v925
      %v1511 = vsub.f32 0.0, %v1036
      %v1512 = vsub.f32 0.0, %v1038
      %v1513 = vsub.f32 0.0, %v1149
      %v1514 = vsub.f32 0.0, %v1151
      %v1515 = vsub.f32 0.0, %v1262
      %v1516 = vsub.f32 0.0, %v1264
      %v1517 = vsub.f32 0.0, %v1375
      %v1518 = vsub.f32 0.0, %v1377
      %v1519 = vsub.f32 0.0, %v929
      %v1520 = vsub.f32 0.0, %v931
      %v1521 = vsub.f32 0.0, %v1042
      %v1522 = vsub.f32 0.0, %v1044
      %v1523 = vsub.f32 0.0, %v1155
      %v1524 = vsub.f32 0.0, %v1157
      %v1525 = vsub.f32 0.0, %v1268
      %v1526 = vsub.f32 0.0, %v1270
      %v1527 = vsub.f32 0.0, %v1381
      %v1528 = vsub.f32 0.0, %v1383
      %v1529 = vsub.f32 0.0, %v933
      %v1530 = vsub.f32 0.0, %v935
      %v1531 = vsub.f32 0.0, %v1046
      %v1532 = vsub.f32 0.0, %v1048
      %v1533 = vsub.f32 0.0, %v1159
      %v1534 = vsub.f32 0.0, %v1161
      %v1535 = vsub.f32 0.0, %v1272
      %v1536 = vsub.f32 0.0, %v1274
      %v1537 = vsub.f32 0.0, %v1385
      %v1538 = vsub.f32 0.0, %v1387
      %v1539 = vsub.f32 0.0, %v939
      %v1540 = vsub.f32 0.0, %v941
      %v1541 = vsub.f32 0.0, %v1052
      %v1542 = vsub.f32 0.0, %v1054
      %v1543 = vsub.f32 0.0, %v1165
      %v1544 = vsub.f32 0.0, %v1167
      %v1545 = vsub.f32 0.0, %v1278
      %v1546 = vsub.f32 0.0, %v1280
      %v1547 = vsub.f32 0.0, %v1391
      %v1548 = vsub.f32 0.0, %v1393
      %v1549 = vsub.f32 0.0, %v943
      %v1550 = vsub.f32 0.0, %v945
      %v1551 = vsub.f32 0.0, %v1056
      %v1552 = vsub.f32 0.0, %v1058
      %v1553 = vsub.f32 0.0, %v1169
      %v1554 = vsub.f32 0.0, %v1171
      %v1555 = vsub.f32 0.0, %v1282
      %v1556 = vsub.f32 0.0, %v1284
      %v1557 = vsub.f32 0.0, %v1395
      %v1558 = vsub.f32 0.0, %v1397
      %v1559 = vmul.f32 %v1399, 1.442695
      %v1560 = vpow.pop %v1559
      %v1561 = vmul.f32 %v1400, 1.442695
      %v1562 = vpow.pop %v1561
      %v1563 = vmul.f32 %v1401, 1.442695
      %v1564 = vpow.pop %v1563
      %v1565 = vmul.f32 %v1402, 1.442695
      %v1566 = vpow.pop %v1565
      %v1567 = vmul.f32 %v1403, 1.442695
      %v1568 = vpow.pop %v1567
      %v1569 = vmul.f32 %v1404, 1.442695
      %v1570 = vpow.pop %v1569
      %v1571 = vmul.f32 %v1405, 1.442695
      %v1572 = vpow.pop %v1571
      %v1573 = vmul.f32 %v1406, 1.442695
      %v1574 = vpow.pop %v1573
      %v1575 = vmul.f32 %v1407, 1.442695
      %v1576 = vpow.pop %v1575
      %v1577 = vmul.f32 %v1408, 1.442695
      %v1578 = vpow.pop %v1577
      %v1579 = vmul.f32 %v1409, 1.442695
      %v1580 = vpow.pop %v1579
      %v1581 = vmul.f32 %v1410, 1.442695
      %v1582 = vpow.pop %v1581
      %v1583 = vmul.f32 %v1411, 1.442695
      %v1584 = vpow.pop %v1583
      %v1585 = vmul.f32 %v1412, 1.442695
      %v1586 = vpow.pop %v1585
      %v1587 = vmul.f32 %v1413, 1.442695
      %v1588 = vpow.pop %v1587
      %v1589 = vmul.f32 %v1414, 1.442695
      %v1590 = vpow.pop %v1589
      %v1591 = vmul.f32 %v1415, 1.442695
      %v1592 = vpow.pop %v1591
      %v1593 = vmul.f32 %v1416, 1.442695
      %v1594 = vpow.pop %v1593
      %v1595 = vmul.f32 %v1417, 1.442695
      %v1596 = vpow.pop %v1595
      %v1597 = vmul.f32 %v1418, 1.442695
      %v1598 = vpow.pop %v1597
      %v1599 = vmul.f32 %v1419, 1.442695
      %v1600 = vpow.pop %v1599
      %v1601 = vmul.f32 %v1420, 1.442695
      %v1602 = vpow.pop %v1601
      %v1603 = vmul.f32 %v1421, 1.442695
      %v1604 = vpow.pop %v1603
      %v1605 = vmul.f32 %v1422, 1.442695
      %v1606 = vpow.pop %v1605
      %v1607 = vmul.f32 %v1423, 1.442695
      %v1608 = vpow.pop %v1607
      %v1609 = vmul.f32 %v1424, 1.442695
      %v1610 = vpow.pop %v1609
      %v1611 = vmul.f32 %v1425, 1.442695
      %v1612 = vpow.pop %v1611
      %v1613 = vmul.f32 %v1426, 1.442695
      %v1614 = vpow.pop %v1613
      %v1615 = vmul.f32 %v1427, 1.442695
      %v1616 = vpow.pop %v1615
      %v1617 = vmul.f32 %v1428, 1.442695
      %v1618 = vpow.pop %v1617
      %v1619 = vmul.f32 %v1429, 1.442695
      %v1620 = vpow.pop %v1619
      %v1621 = vmul.f32 %v1430, 1.442695
      %v1622 = vpow.pop %v1621
      %v1623 = vmul.f32 %v1431, 1.442695
      %v1624 = vpow.pop %v1623
      %v1625 = vmul.f32 %v1432, 1.442695
      %v1626 = vpow.pop %v1625
      %v1627 = vmul.f32 %v1433, 1.442695
      %v1628 = vpow.pop %v1627
      %v1629 = vmul.f32 %v1434, 1.442695
      %v1630 = vpow.pop %v1629
      %v1631 = vmul.f32 %v1435, 1.442695
      %v1632 = vpow.pop %v1631
      %v1633 = vmul.f32 %v1436, 1.442695
      %v1634 = vpow.pop %v1633
      %v1635 = vmul.f32 %v1437, 1.442695
      %v1636 = vpow.pop %v1635
      %v1637 = vmul.f32 %v1438, 1.442695
      %v1638 = vpow.pop %v1637
      %v1639 = vmul.f32 %v1439, 1.442695
      %v1640 = vpow.pop %v1639
      %v1641 = vmul.f32 %v1440, 1.442695
      %v1642 = vpow.pop %v1641
      %v1643 = vmul.f32 %v1441, 1.442695
      %v1644 = vpow.pop %v1643
      %v1645 = vmul.f32 %v1442, 1.442695
      %v1646 = vpow.pop %v1645
      %v1647 = vmul.f32 %v1443, 1.442695
      %v1648 = vpow.pop %v1647
      %v1649 = vmul.f32 %v1444, 1.442695
      %v1650 = vpow.pop %v1649
      %v1651 = vmul.f32 %v1445, 1.442695
      %v1652 = vpow.pop %v1651
      %v1653 = vmul.f32 %v1446, 1.442695
      %v1654 = vpow.pop %v1653
      %v1655 = vmul.f32 %v1447, 1.442695
      %v1656 = vpow.pop %v1655
      %v1657 = vmul.f32 %v1448, 1.442695
      %v1658 = vpow.pop %v1657
      %v1659 = vmul.f32 %v1449, 1.442695
      %v1660 = vpow.pop %v1659
      %v1661 = vmul.f32 %v1450, 1.442695
      %v1662 = vpow.pop %v1661
      %v1663 = vmul.f32 %v1451, 1.442695
      %v1664 = vpow.pop %v1663
      %v1665 = vmul.f32 %v1452, 1.442695
      %v1666 = vpow.pop %v1665
      %v1667 = vmul.f32 %v1453, 1.442695
      %v1668 = vpow.pop %v1667
      %v1669 = vmul.f32 %v1454, 1.442695
      %v1670 = vpow.pop %v1669
      %v1671 = vmul.f32 %v1455, 1.442695
      %v1672 = vpow.pop %v1671
      %v1673 = vmul.f32 %v1456, 1.442695
      %v1674 = vpow.pop %v1673
      %v1675 = vmul.f32 %v1457, 1.442695
      %v1676 = vpow.pop %v1675
      %v1677 = vmul.f32 %v1458, 1.442695
      %v1678 = vpow.pop %v1677
      %v1679 = vmul.f32 %v1459, 1.442695
      %v1680 = vpow.pop %v1679
      %v1681 = vmul.f32 %v1460, 1.442695
      %v1682 = vpow.pop %v1681
      %v1683 = vmul.f32 %v1461, 1.442695
      %v1684 = vpow.pop %v1683
      %v1685 = vmul.f32 %v1462, 1.442695
      %v1686 = vpow.pop %v1685
      %v1687 = vmul.f32 %v1463, 1.442695
      %v1688 = vpow.pop %v1687
      %v1689 = vmul.f32 %v1464, 1.442695
      %v1690 = vpow.pop %v1689
      %v1691 = vmul.f32 %v1465, 1.442695
      %v1692 = vpow.pop %v1691
      %v1693 = vmul.f32 %v1466, 1.442695
      %v1694 = vpow.pop %v1693
      %v1695 = vmul.f32 %v1467, 1.442695
      %v1696 = vpow.pop %v1695
      %v1697 = vmul.f32 %v1468, 1.442695
      %v1698 = vpow.pop %v1697
      %v1699 = vmul.f32 %v1469, 1.442695
      %v1700 = vpow.pop %v1699
      %v1701 = vmul.f32 %v1470, 1.442695
      %v1702 = vpow.pop %v1701
      %v1703 = vmul.f32 %v1471, 1.442695
      %v1704 = vpow.pop %v1703
      %v1705 = vmul.f32 %v1472, 1.442695
      %v1706 = vpow.pop %v1705
      %v1707 = vmul.f32 %v1473, 1.442695
      %v1708 = vpow.pop %v1707
      %v1709 = vmul.f32 %v1474, 1.442695
      %v1710 = vpow.pop %v1709
      %v1711 = vmul.f32 %v1475, 1.442695
      %v1712 = vpow.pop %v1711
      %v1713 = vmul.f32 %v1476, 1.442695
      %v1714 = vpow.pop %v1713
      %v1715 = vmul.f32 %v1477, 1.442695
      %v1716 = vpow.pop %v1715
      %v1717 = vmul.f32 %v1478, 1.442695
      %v1718 = vpow.pop %v1717
      %v1719 = vmul.f32 %v1479, 1.442695
      %v1720 = vpow.pop %v1719
      %v1721 = vmul.f32 %v1480, 1.442695
      %v1722 = vpow.pop %v1721
      %v1723 = vmul.f32 %v1481, 1.442695
      %v1724 = vpow.pop %v1723
      %v1725 = vmul.f32 %v1482, 1.442695
      %v1726 = vpow.pop %v1725
      %v1727 = vmul.f32 %v1483, 1.442695
      %v1728 = vpow.pop %v1727
      %v1729 = vmul.f32 %v1484, 1.442695
      %v1730 = vpow.pop %v1729
      %v1731 = vmul.f32 %v1485, 1.442695
      %v1732 = vpow.pop %v1731
      %v1733 = vmul.f32 %v1486, 1.442695
      %v1734 = vpow.pop %v1733
      %v1735 = vmul.f32 %v1487, 1.442695
      %v1736 = vpow.pop %v1735
      %v1737 = vmul.f32 %v1488, 1.442695
      %v1738 = vpow.pop %v1737
      %v1739 = vmul.f32 %v1489, 1.442695
      %v1740 = vpow.pop %v1739
      %v1741 = vmul.f32 %v1490, 1.442695
      %v1742 = vpow.pop %v1741
      %v1743 = vmul.f32 %v1491, 1.442695
      %v1744 = vpow.pop %v1743
      %v1745 = vmul.f32 %v1492, 1.442695
      %v1746 = vpow.pop %v1745
      %v1747 = vmul.f32 %v1493, 1.442695
      %v1748 = vpow.pop %v1747
      %v1749 = vmul.f32 %v1494, 1.442695
      %v1750 = vpow.pop %v1749
      %v1751 = vmul.f32 %v1495, 1.442695
      %v1752 = vpow.pop %v1751
      %v1753 = vmul.f32 %v1496, 1.442695
      %v1754 = vpow.pop %v1753
      %v1755 = vmul.f32 %v1497, 1.442695
      %v1756 = vpow.pop %v1755
      %v1757 = vmul.f32 %v1498, 1.442695
      %v1758 = vpow.pop %v1757
      %v1759 = vmul.f32 %v1499, 1.442695
      %v1760 = vpow.pop %v1759
      %v1761 = vmul.f32 %v1500, 1.442695
      %v1762 = vpow.pop %v1761
      %v1763 = vmul.f32 %v1501, 1.442695
      %v1764 = vpow.pop %v1763
      %v1765 = vmul.f32 %v1502, 1.442695
      %v1766 = vpow.pop %v1765
      %v1767 = vmul.f32 %v1503, 1.442695
      %v1768 = vpow.pop %v1767
      %v1769 = vmul.f32 %v1504, 1.442695
      %v1770 = vpow.pop %v1769
      %v1771 = vmul.f32 %v1505, 1.442695
      %v1772 = vpow.pop %v1771
      %v1773 = vmul.f32 %v1506, 1.442695
      %v1774 = vpow.pop %v1773
      %v1775 = vmul.f32 %v1507, 1.442695
      %v1776 = vpow.pop %v1775
      %v1777 = vmul.f32 %v1508, 1.442695
      %v1778 = vpow.pop %v1777
      %v1779 = vmul.f32 %v1509, 1.442695
      %v1780 = vpow.pop %v1779
      %v1781 = vmul.f32 %v1510, 1.442695
      %v1782 = vpow.pop %v1781
      %v1783 = vmul.f32 %v1511, 1.442695
      %v1784 = vpow.pop %v1783
      %v1785 = vmul.f32 %v1512, 1.442695
      %v1786 = vpow.pop %v1785
      %v1787 = vmul.f32 %v1513, 1.442695
      %v1788 = vpow.pop %v1787
      %v1789 = vmul.f32 %v1514, 1.442695
      %v1790 = vpow.pop %v1789
      %v1791 = vmul.f32 %v1515, 1.442695
      %v1792 = vpow.pop %v1791
      %v1793 = vmul.f32 %v1516, 1.442695
      %v1794 = vpow.pop %v1793
      %v1795 = vmul.f32 %v1517, 1.442695
      %v1796 = vpow.pop %v1795
      %v1797 = vmul.f32 %v1518, 1.442695
      %v1798 = vpow.pop %v1797
      %v1799 = vmul.f32 %v1519, 1.442695
      %v1800 = vpow.pop %v1799
      %v1801 = vmul.f32 %v1520, 1.442695
      %v1802 = vpow.pop %v1801
      %v1803 = vmul.f32 %v1521, 1.442695
      %v1804 = vpow.pop %v1803
      %v1805 = vmul.f32 %v1522, 1.442695
      %v1806 = vpow.pop %v1805
      %v1807 = vmul.f32 %v1523, 1.442695
      %v1808 = vpow.pop %v1807
      %v1809 = vmul.f32 %v1524, 1.442695
      %v1810 = vpow.pop %v1809
      %v1811 = vmul.f32 %v1525, 1.442695
      %v1812 = vpow.pop %v1811
      %v1813 = vmul.f32 %v1526, 1.442695
      %v1814 = vpow.pop %v1813
      %v1815 = vmul.f32 %v1527, 1.442695
      %v1816 = vpow.pop %v1815
      %v1817 = vmul.f32 %v1528, 1.442695
      %v1818 = vpow.pop %v1817
      %v1819 = vmul.f32 %v1529, 1.442695
      %v1820 = vpow.pop %v1819
      %v1821 = vmul.f32 %v1530, 1.442695
      %v1822 = vpow.pop %v1821
      %v1823 = vmul.f32 %v1531, 1.442695
      %v1824 = vpow.pop %v1823
      %v1825 = vmul.f32 %v1532, 1.442695
      %v1826 = vpow.pop %v1825
      %v1827 = vmul.f32 %v1533, 1.442695
      %v1828 = vpow.pop %v1827
      %v1829 = vmul.f32 %v1534, 1.442695
      %v1830 = vpow.pop %v1829
      %v1831 = vmul.f32 %v1535, 1.442695
      %v1832 = vpow.pop %v1831
      %v1833 = vmul.f32 %v1536, 1.442695
      %v1834 = vpow.pop %v1833
      %v1835 = vmul.f32 %v1537, 1.442695
      %v1836 = vpow.pop %v1835
      %v1837 = vmul.f32 %v1538, 1.442695
      %v1838 = vpow.pop %v1837
      %v1839 = vmul.f32 %v1539, 1.442695
      %v1840 = vpow.pop %v1839
      %v1841 = vmul.f32 %v1540, 1.442695
      %v1842 = vpow.pop %v1841
      %v1843 = vmul.f32 %v1541, 1.442695
      %v1844 = vpow.pop %v1843
      %v1845 = vmul.f32 %v1542, 1.442695
      %v1846 = vpow.pop %v1845
      %v1847 = vmul.f32 %v1543, 1.442695
      %v1848 = vpow.pop %v1847
      %v1849 = vmul.f32 %v1544, 1.442695
      %v1850 = vpow.pop %v1849
      %v1851 = vmul.f32 %v1545, 1.442695
      %v1852 = vpow.pop %v1851
      %v1853 = vmul.f32 %v1546, 1.442695
      %v1854 = vpow.pop %v1853
      %v1855 = vmul.f32 %v1547, 1.442695
      %v1856 = vpow.pop %v1855
      %v1857 = vmul.f32 %v1548, 1.442695
      %v1858 = vpow.pop %v1857
      %v1859 = vmul.f32 %v1549, 1.442695
      %v1860 = vpow.pop %v1859
      %v1861 = vmul.f32 %v1550, 1.442695
      %v1862 = vpow.pop %v1861
      %v1863 = vmul.f32 %v1551, 1.442695
      %v1864 = vpow.pop %v1863
      %v1865 = vmul.f32 %v1552, 1.442695
      %v1866 = vpow.pop %v1865
      %v1867 = vmul.f32 %v1553, 1.442695
      %v1868 = vpow.pop %v1867
      %v1869 = vmul.f32 %v1554, 1.442695
      %v1870 = vpow.pop %v1869
      %v1871 = vmul.f32 %v1555, 1.442695
      %v1872 = vpow.pop %v1871
      %v1873 = vmul.f32 %v1556, 1.442695
      %v1874 = vpow.pop %v1873
      %v1875 = vmul.f32 %v1557, 1.442695
      %v1876 = vpow.pop %v1875
      %v1877 = vmul.f32 %v1558, 1.442695
      %v1878 = vpow.pop %v1877
      %v1879 = vadd.f32 %v1560, 1.0
      %v1880 = vadd.f32 %v1562, 1.0
      %v1881 = vadd.f32 %v1564, 1.0
      %v1882 = vadd.f32 %v1566, 1.0
      %v1883 = vadd.f32 %v1568, 1.0
      %v1884 = vadd.f32 %v1570, 1.0
      %v1885 = vadd.f32 %v1572, 1.0
      %v1886 = vadd.f32 %v1574, 1.0
      %v1887 = vadd.f32 %v1576, 1.0
      %v1888 = vadd.f32 %v1578, 1.0
      %v1889 = vadd.f32 %v1580, 1.0
      %v1890 = vadd.f32 %v1582, 1.0
      %v1891 = vadd.f32 %v1584, 1.0
      %v1892 = vadd.f32 %v1586, 1.0
      %v1893 = vadd.f32 %v1588, 1.0
      %v1894 = vadd.f32 %v1590, 1.0
      %v1895 = vadd.f32 %v1592, 1.0
      %v1896 = vadd.f32 %v1594, 1.0
      %v1897 = vadd.f32 %v1596, 1.0
      %v1898 = vadd.f32 %v1598, 1.0
      %v1899 = vadd.f32 %v1600, 1.0
      %v1900 = vadd.f32 %v1602, 1.0
      %v1901 = vadd.f32 %v1604, 1.0
      %v1902 = vadd.f32 %v1606, 1.0
      %v1903 = vadd.f32 %v1608, 1.0
      %v1904 = vadd.f32 %v1610, 1.0
      %v1905 = vadd.f32 %v1612, 1.0
      %v1906 = vadd.f32 %v1614, 1.0
      %v1907 = vadd.f32 %v1616, 1.0
      %v1908 = vadd.f32 %v1618, 1.0
      %v1909 = vadd.f32 %v1620, 1.0
      %v1910 = vadd.f32 %v1622, 1.0
      %v1911 = vadd.f32 %v1624, 1.0
      %v1912 = vadd.f32 %v1626, 1.0
      %v1913 = vadd.f32 %v1628, 1.0
      %v1914 = vadd.f32 %v1630, 1.0
      %v1915 = vadd.f32 %v1632, 1.0
      %v1916 = vadd.f32 %v1634, 1.0
      %v1917 = vadd.f32 %v1636, 1.0
      %v1918 = vadd.f32 %v1638, 1.0
      %v1919 = vadd.f32 %v1640, 1.0
      %v1920 = vadd.f32 %v1642, 1.0
      %v1921 = vadd.f32 %v1644, 1.0
      %v1922 = vadd.f32 %v1646, 1.0
      %v1923 = vadd.f32 %v1648, 1.0
      %v1924 = vadd.f32 %v1650, 1.0
      %v1925 = vadd.f32 %v1652, 1.0
      %v1926 = vadd.f32 %v1654, 1.0
      %v1927 = vadd.f32 %v1656, 1.0
      %v1928 = vadd.f32 %v1658, 1.0
      %v1929 = vadd.f32 %v1660, 1.0
      %v1930 = vadd.f32 %v1662, 1.0
      %v1931 = vadd.f32 %v1664, 1.0
      %v1932 = vadd.f32 %v1666, 1.0
      %v1933 = vadd.f32 %v1668, 1.0
      %v1934 = vadd.f32 %v1670, 1.0
      %v1935 = vadd.f32 %v1672, 1.0
      %v1936 = vadd.f32 %v1674, 1.0
      %v1937 = vadd.f32 %v1676, 1.0
      %v1938 = vadd.f32 %v1678, 1.0
      %v1939 = vadd.f32 %v1680, 1.0
      %v1940 = vadd.f32 %v1682, 1.0
      %v1941 = vadd.f32 %v1684, 1.0
      %v1942 = vadd.f32 %v1686, 1.0
      %v1943 = vadd.f32 %v1688, 1.0
      %v1944 = vadd.f32 %v1690, 1.0
      %v1945 = vadd.f32 %v1692, 1.0
      %v1946 = vadd.f32 %v1694, 1.0
      %v1947 = vadd.f32 %v1696, 1.0
      %v1948 = vadd.f32 %v1698, 1.0
      %v1949 = vadd.f32 %v1700, 1.0
      %v1950 = vadd.f32 %v1702, 1.0
      %v1951 = vadd.f32 %v1704, 1.0
      %v1952 = vadd.f32 %v1706, 1.0
      %v1953 = vadd.f32 %v1708, 1.0
      %v1954 = vadd.f32 %v1710, 1.0
      %v1955 = vadd.f32 %v1712, 1.0
      %v1956 = vadd.f32 %v1714, 1.0
      %v1957 = vadd.f32 %v1716, 1.0
      %v1958 = vadd.f32 %v1718, 1.0
      %v1959 = vadd.f32 %v1720, 1.0
      %v1960 = vadd.f32 %v1722, 1.0
      %v1961 = vadd.f32 %v1724, 1.0
      %v1962 = vadd.f32 %v1726, 1.0
      %v1963 = vadd.f32 %v1728, 1.0
      %v1964 = vadd.f32 %v1730, 1.0
      %v1965 = vadd.f32 %v1732, 1.0
      %v1966 = vadd.f32 %v1734, 1.0
      %v1967 = vadd.f32 %v1736, 1.0
      %v1968 = vadd.f32 %v1738, 1.0
      %v1969 = vadd.f32 %v1740, 1.0
      %v1970 = vadd.f32 %v1742, 1.0
      %v1971 = vadd.f32 %v1744, 1.0
      %v1972 = vadd.f32 %v1746, 1.0
      %v1973 = vadd.f32 %v1748, 1.0
      %v1974 = vadd.f32 %v1750, 1.0
      %v1975 = vadd.f32 %v1752, 1.0
      %v1976 = vadd.f32 %v1754, 1.0
      %v1977 = vadd.f32 %v1756, 1.0
      %v1978 = vadd.f32 %v1758, 1.0
      %v1979 = vadd.f32 %v1760, 1.0
      %v1980 = vadd.f32 %v1762, 1.0
      %v1981 = vadd.f32 %v1764, 1.0
      %v1982 = vadd.f32 %v1766, 1.0
      %v1983 = vadd.f32 %v1768, 1.0
      %v1984 = vadd.f32 %v1770, 1.0
      %v1985 = vadd.f32 %v1772, 1.0
      %v1986 = vadd.f32 %v1774, 1.0
      %v1987 = vadd.f32 %v1776, 1.0
      %v1988 = vadd.f32 %v1778, 1.0
      %v1989 = vadd.f32 %v1780, 1.0
      %v1990 = vadd.f32 %v1782, 1.0
      %v1991 = vadd.f32 %v1784, 1.0
      %v1992 = vadd.f32 %v1786, 1.0
      %v1993 = vadd.f32 %v1788, 1.0
      %v1994 = vadd.f32 %v1790, 1.0
      %v1995 = vadd.f32 %v1792, 1.0
      %v1996 = vadd.f32 %v1794, 1.0
      %v1997 = vadd.f32 %v1796, 1.0
      %v1998 = vadd.f32 %v1798, 1.0
      %v1999 = vadd.f32 %v1800, 1.0
      %v2000 = vadd.f32 %v1802, 1.0
      %v2001 = vadd.f32 %v1804, 1.0
      %v2002 = vadd.f32 %v1806, 1.0
      %v2003 = vadd.f32 %v1808, 1.0
      %v2004 = vadd.f32 %v1810, 1.0
      %v2005 = vadd.f32 %v1812, 1.0
      %v2006 = vadd.f32 %v1814, 1.0
      %v2007 = vadd.f32 %v1816, 1.0
      %v2008 = vadd.f32 %v1818, 1.0
      %v2009 = vadd.f32 %v1820, 1.0
      %v2010 = vadd.f32 %v1822, 1.0
      %v2011 = vadd.f32 %v1824, 1.0
      %v2012 = vadd.f32 %v1826, 1.0
      %v2013 = vadd.f32 %v1828, 1.0
      %v2014 = vadd.f32 %v1830, 1.0
      %v2015 = vadd.f32 %v1832, 1.0
      %v2016 = vadd.f32 %v1834, 1.0
      %v2017 = vadd.f32 %v1836, 1.0
      %v2018 = vadd.f32 %v1838, 1.0
      %v2019 = vadd.f32 %v1840, 1.0
      %v2020 = vadd.f32 %v1842, 1.0
      %v2021 = vadd.f32 %v1844, 1.0
      %v2022 = vadd.f32 %v1846, 1.0
      %v2023 = vadd.f32 %v1848, 1.0
      %v2024 = vadd.f32 %v1850, 1.0
      %v2025 = vadd.f32 %v1852, 1.0
      %v2026 = vadd.f32 %v1854, 1.0
      %v2027 = vadd.f32 %v1856, 1.0
      %v2028 = vadd.f32 %v1858, 1.0
      %v2029 = vadd.f32 %v1860, 1.0
      %v2030 = vadd.f32 %v1862, 1.0
      %v2031 = vadd.f32 %v1864, 1.0
      %v2032 = vadd.f32 %v1866, 1.0
      %v2033 = vadd.f32 %v1868, 1.0
      %v2034 = vadd.f32 %v1870, 1.0
      %v2035 = vadd.f32 %v1872, 1.0
      %v2036 = vadd.f32 %v1874, 1.0
      %v2037 = vadd.f32 %v1876, 1.0
      %v2038 = vadd.f32 %v1878, 1.0
      %v2039 = vrcp.pop %v1879
      %v2040 = vrcp.pop %v1880
      %v2041 = vrcp.pop %v1881
      %v2042 = vrcp.pop %v1882
      %v2043 = vrcp.pop %v1883
      %v2044 = vrcp.pop %v1884
      %v2045 = vrcp.pop %v1885
      %v2046 = vrcp.pop %v1886
      %v2047 = vrcp.pop %v1887
      %v2048 = vrcp.pop %v1888
      %v2049 = vrcp.pop %v1889
      %v2050 = vrcp.pop %v1890
      %v2051 = vrcp.pop %v1891
      %v2052 = vrcp.pop %v1892
      %v2053 = vrcp.pop %v1893
      %v2054 = vrcp.pop %v1894
      %v2055 = vrcp.pop %v1895
      %v2056 = vrcp.pop %v1896
      %v2057 = vrcp.pop %v1897
      %v2058 = vrcp.pop %v1898
      %v2059 = vrcp.pop %v1899
      %v2060 = vrcp.pop %v1900
      %v2061 = vrcp.pop %v1901
      %v2062 = vrcp.pop %v1902
      %v2063 = vrcp.pop %v1903
      %v2064 = vrcp.pop %v1904
      %v2065 = vrcp.pop %v1905
      %v2066 = vrcp.pop %v1906
      %v2067 = vrcp.pop %v1907
      %v2068 = vrcp.pop %v1908
      %v2069 = vrcp.pop %v1909
      %v2070 = vrcp.pop %v1910
      %v2071 = vrcp.pop %v1911
      %v2072 = vrcp.pop %v1912
      %v2073 = vrcp.pop %v1913
      %v2074 = vrcp.pop %v1914
      %v2075 = vrcp.pop %v1915
      %v2076 = vrcp.pop %v1916
      %v2077 = vrcp.pop %v1917
      %v2078 = vrcp.pop %v1918
      %v2079 = vrcp.pop %v1919
      %v2080 = vrcp.pop %v1920
      %v2081 = vrcp.pop %v1921
      %v2082 = vrcp.pop %v1922
      %v2083 = vrcp.pop %v1923
      %v2084 = vrcp.pop %v1924
      %v2085 = vrcp.pop %v1925
      %v2086 = vrcp.pop %v1926
      %v2087 = vrcp.pop %v1927
      %v2088 = vrcp.pop %v1928
      %v2089 = vrcp.pop %v1929
      %v2090 = vrcp.pop %v1930
      %v2091 = vrcp.pop %v1931
      %v2092 = vrcp.pop %v1932
      %v2093 = vrcp.pop %v1933
      %v2094 = vrcp.pop %v1934
      %v2095 = vrcp.pop %v1935
      %v2096 = vrcp.pop %v1936
      %v2097 = vrcp.pop %v1937
      %v2098 = vrcp.pop %v1938
      %v2099 = vrcp.pop %v1939
      %v2100 = vrcp.pop %v1940
      %v2101 = vrcp.pop %v1941
      %v2102 = vrcp.pop %v1942
      %v2103 = vrcp.pop %v1943
      %v2104 = vrcp.pop %v1944
      %v2105 = vrcp.pop %v1945
      %v2106 = vrcp.pop %v1946
      %v2107 = vrcp.pop %v1947
      %v2108 = vrcp.pop %v1948
      %v2109 = vrcp.pop %v1949
      %v2110 = vrcp.pop %v1950
      %v2111 = vrcp.pop %v1951
      %v2112 = vrcp.pop %v1952
      %v2113 = vrcp.pop %v1953
      %v2114 = vrcp.pop %v1954
      %v2115 = vrcp.pop %v1955
      %v2116 = vrcp.pop %v1956
      %v2117 = vrcp.pop %v1957
      %v2118 = vrcp.pop %v1958
      %v2119 = vrcp.pop %v1959
      %v2120 = vrcp.pop %v1960
      %v2121 = vrcp.pop %v1961
      %v2122 = vrcp.pop %v1962
      %v2123 = vrcp.pop %v1963
      %v2124 = vrcp.pop %v1964
      %v2125 = vrcp.pop %v1965
      %v2126 = vrcp.pop %v1966
      %v2127 = vrcp.pop %v1967
      %v2128 = vrcp.pop %v1968
      %v2129 = vrcp.pop %v1969
      %v2130 = vrcp.pop %v1970
      %v2131 = vrcp.pop %v1971
      %v2132 = vrcp.pop %v1972
      %v2133 = vrcp.pop %v1973
      %v2134 = vrcp.pop %v1974
      %v2135 = vrcp.pop %v1975
      %v2136 = vrcp.pop %v1976
      %v2137 = vrcp.pop %v1977
      %v2138 = vrcp.pop %v1978
      %v2139 = vrcp.pop %v1979
      %v2140 = vrcp.pop %v1980
      %v2141 = vrcp.pop %v1981
      %v2142 = vrcp.pop %v1982
      %v2143 = vrcp.pop %v1983
      %v2144 = vrcp.pop %v1984
      %v2145 = vrcp.pop %v1985
      %v2146 = vrcp.pop %v1986
      %v2147 = vrcp.pop %v1987
      %v2148 = vrcp.pop %v1988
      %v2149 = vrcp.pop %v1989
      %v2150 = vrcp.pop %v1990
      %v2151 = vrcp.pop %v1991
      %v2152 = vrcp.pop %v1992
      %v2153 = vrcp.pop %v1993
      %v2154 = vrcp.pop %v1994
      %v2155 = vrcp.pop %v1995
      %v2156 = vrcp.pop %v1996
      %v2157 = vrcp.pop %v1997
      %v2158 = vrcp.pop %v1998
      %v2159 = vrcp.pop %v1999
      %v2160 = vrcp.pop %v2000
      %v2161 = vrcp.pop %v2001
      %v2162 = vrcp.pop %v2002
      %v2163 = vrcp.pop %v2003
      %v2164 = vrcp.pop %v2004
      %v2165 = vrcp.pop %v2005
      %v2166 = vrcp.pop %v2006
      %v2167 = vrcp.pop %v2007
      %v2168 = vrcp.pop %v2008
      %v2169 = vrcp.pop %v2009
      %v2170 = vrcp.pop %v2010
      %v2171 = vrcp.pop %v2011
      %v2172 = vrcp.pop %v2012
      %v2173 = vrcp.pop %v2013
      %v2174 = vrcp.pop %v2014
      %v2175 = vrcp.pop %v2015
      %v2176 = vrcp.pop %v2016
      %v2177 = vrcp.pop %v2017
      %v2178 = vrcp.pop %v2018
      %v2179 = vrcp.pop %v2019
      %v2180 = vrcp.pop %v2020
      %v2181 = vrcp.pop %v2021
      %v2182 = vrcp.pop %v2022
      %v2183 = vrcp.pop %v2023
      %v2184 = vrcp.pop %v2024
      %v2185 = vrcp.pop %v2025
      %v2186 = vrcp.pop %v2026
      %v2187 = vrcp.pop %v2027
      %v2188 = vrcp.pop %v2028
      %v2189 = vrcp.pop %v2029
      %v2190 = vrcp.pop %v2030
      %v2191 = vrcp.pop %v2031
      %v2192 = vrcp.pop %v2032
      %v2193 = vrcp.pop %v2033
      %v2194 = vrcp.pop %v2034
      %v2195 = vrcp.pop %v2035
      %v2196 = vrcp.pop %v2036
      %v2197 = vrcp.pop %v2037
      %v2198 = vrcp.pop %v2038
      %v2199 = vmul.f32 %v869, %v2039
      %v2200 = vmul.f32 %v871, %v2040
      %v2201 = vmul.f32 %v982, %v2041
      %v2202 = vmul.f32 %v984, %v2042
      %v2203 = vmul.f32 %v1095, %v2043
      %v2204 = vmul.f32 %v1097, %v2044
      %v2205 = vmul.f32 %v1208, %v2045
      %v2206 = vmul.f32 %v1210, %v2046
      %v2207 = vmul.f32 %v1321, %v2047
      %v2208 = vmul.f32 %v1323, %v2048
      %v2209 = vmul.f32 %v873, %v2049
      %v2210 = vmul.f32 %v875, %v2050
      %v2211 = vmul.f32 %v986, %v2051
      %v2212 = vmul.f32 %v988, %v2052
      %v2213 = vmul.f32 %v1099, %v2053
      %v2214 = vmul.f32 %v1101, %v2054
      %v2215 = vmul.f32 %v1212, %v2055
      %v2216 = vmul.f32 %v1214, %v2056
      %v2217 = vmul.f32 %v1325, %v2057
      %v2218 = vmul.f32 %v1327, %v2058
      %v2219 = vmul.f32 %v879, %v2059
      %v2220 = vmul.f32 %v881, %v2060
      %v2221 = vmul.f32 %v992, %v2061
      %v2222 = vmul.f32 %v994, %v2062
      %v2223 = vmul.f32 %v1105, %v2063
      %v2224 = vmul.f32 %v1107, %v2064
      %v2225 = vmul.f32 %v1218, %v2065
      %v2226 = vmul.f32 %v1220, %v2066
      %v2227 = vmul.f32 %v1331, %v2067
      %v2228 = vmul.f32 %v1333, %v2068
      %v2229 = vmul.f32 %v883, %v2069
      %v2230 = vmul.f32 %v885, %v2070
      %v2231 = vmul.f32 %v996, %v2071
      %v2232 = vmul.f32 %v998, %v2072
      %v2233 = vmul.f32 %v1109, %v2073
      %v2234 = vmul.f32 %v1111, %v2074
      %v2235 = vmul.f32 %v1222, %v2075
      %v2236 = vmul.f32 %v1224, %v2076
      %v2237 = vmul.f32 %v1335, %v2077
      %v2238 = vmul.f32 %v1337, %v2078
      %v2239 = vmul.f32 %v889, %v2079
      %v2240 = vmul.f32 %v891, %v2080
      %v2241 = vmul.f32 %v1002, %v2081
      %v2242 = vmul.f32 %v1004, %v2082
      %v2243 = vmul.f32 %v1115, %v2083
      %v2244 = vmul.f32 %v1117, %v2084
      %v2245 = vmul.f32 %v1228, %v2085
      %v2246 = vmul.f32 %v1230, %v2086
      %v2247 = vmul.f32 %v1341, %v2087
      %v2248 = vmul.f32 %v1343, %v2088
      %v2249 = vmul.f32 %v893, %v2089
      %v2250 = vmul.f32 %v895, %v2090
      %v2251 = vmul.f32 %v1006, %v2091
      %v2252 = vmul.f32 %v1008, %v2092
      %v2253 = vmul.f32 %v1119, %v2093
      %v2254 = vmul.f32 %v1121, %v2094
      %v2255 = vmul.f32 %v1232, %v2095
      %v2256 = vmul.f32 %v1234, %v2096
      %v2257 = vmul.f32 %v1345, %v2097
      %v2258 = vmul.f32 %v1347, %v2098
      %v2259 = vmul.f32 %v899, %v2099
      %v2260 = vmul.f32 %v901, %v2100
      %v2261 = vmul.f32 %v1012, %v2101
      %v2262 = vmul.f32 %v1014, %v2102
      %v2263 = vmul.f32 %v1125, %v2103
      %v2264 = vmul.f32 %v1127, %v2104
      %v2265 = vmul.f32 %v1238, %v2105
      %v2266 = vmul.f32 %v1240, %v2106
      %v2267 = vmul.f32 %v1351, %v2107
      %v2268 = vmul.f32 %v1353, %v2108
      %v2269 = vmul.f32 %v903, %v2109
      %v2270 = vmul.f32 %v905, %v2110
      %v2271 = vmul.f32 %v1016, %v2111
      %v2272 = vmul.f32 %v1018, %v2112
      %v2273 = vmul.f32 %v1129, %v2113
      %v2274 = vmul.f32 %v1131, %v2114
      %v2275 = vmul.f32 %v1242, %v2115
      %v2276 = vmul.f32 %v1244, %v2116
      %v2277 = vmul.f32 %v1355, %v2117
      %v2278 = vmul.f32 %v1357, %v2118
      %v2279 = vmul.f32 %v909, %v2119
      %v2280 = vmul.f32 %v911, %v2120
      %v2281 = vmul.f32 %v1022, %v2121
      %v2282 = vmul.f32 %v1024, %v2122
      %v2283 = vmul.f32 %v1135, %v2123
      %v2284 = vmul.f32 %v1137, %v2124
      %v2285 = vmul.f32 %v1248, %v2125
      %v2286 = vmul.f32 %v1250, %v2126
      %v2287 = vmul.f32 %v1361, %v2127
      %v2288 = vmul.f32 %v1363, %v2128
      %v2289 = vmul.f32 %v913, %v2129
      %v2290 = vmul.f32 %v915, %v2130
      %v2291 = vmul.f32 %v1026, %v2131
      %v2292 = vmul.f32 %v1028, %v2132
      %v2293 = vmul.f32 %v1139, %v2133
      %v2294 = vmul.f32 %v1141, %v2134
      %v2295 = vmul.f32 %v1252, %v2135
      %v2296 = vmul.f32 %v1254, %v2136
      %v2297 = vmul.f32 %v1365, %v2137
      %v2298 = vmul.f32 %v1367, %v2138
      %v2299 = vmul.f32 %v919, %v2139
      %v2300 = vmul.f32 %v921, %v2140
      %v2301 = vmul.f32 %v1032, %v2141
      %v2302 = vmul.f32 %v1034, %v2142
      %v2303 = vmul.f32 %v1145, %v2143
      %v2304 = vmul.f32 %v1147, %v2144
      %v2305 = vmul.f32 %v1258, %v2145
      %v2306 = vmul.f32 %v1260, %v2146
      %v2307 = vmul.f32 %v1371, %v2147
      %v2308 = vmul.f32 %v1373, %v2148
      %v2309 = vmul.f32 %v923, %v2149
      %v2310 = vmul.f32 %v925, %v2150
      %v2311 = vmul.f32 %v1036, %v2151
      %v2312 = vmul.f32 %v1038, %v2152
      %v2313 = vmul.f32 %v1149, %v2153
      %v2314 = vmul.f32 %v1151, %v2154
      %v2315 = vmul.f32 %v1262, %v2155
      %v2316 = vmul.f32 %v1264, %v2156
      %v2317 = vmul.f32 %v1375, %v2157
      %v2318 = vmul.f32 %v1377, %v2158
      %v2319 = vmul.f32 %v929, %v2159
      %v2320 = vmul.f32 %v931, %v2160
      %v2321 = vmul.f32 %v1042, %v2161
      %v2322 = vmul.f32 %v1044, %v2162
      %v2323 = vmul.f32 %v1155, %v2163
      %v2324 = vmul.f32 %v1157, %v2164
      %v2325 = vmul.f32 %v1268, %v2165
      %v2326 = vmul.f32 %v1270, %v2166
      %v2327 = vmul.f32 %v1381, %v2167
      %v2328 = vmul.f32 %v1383, %v2168
      %v2329 = vmul.f32 %v933, %v2169
      %v2330 = vmul.f32 %v935, %v2170
      %v2331 = vmul.f32 %v1046, %v2171
      %v2332 = vmul.f32 %v1048, %v2172
      %v2333 = vmul.f32 %v1159, %v2173
      %v2334 = vmul.f32 %v1161, %v2174
      %v2335 = vmul.f32 %v1272, %v2175
      %v2336 = vmul.f32 %v1274, %v2176
      %v2337 = vmul.f32 %v1385, %v2177
      %v2338 = vmul.f32 %v1387, %v2178
      %v2339 = vmul.f32 %v939, %v2179
      %v2340 = vmul.f32 %v941, %v2180
      %v2341 = vmul.f32 %v1052, %v2181
      %v2342 = vmul.f32 %v1054, %v2182
      %v2343 = vmul.f32 %v1165, %v2183
      %v2344 = vmul.f32 %v1167, %v2184
      %v2345 = vmul.f32 %v1278, %v2185
      %v2346 = vmul.f32 %v1280, %v2186
      %v2347 = vmul.f32 %v1391, %v2187
      %v2348 = vmul.f32 %v1393, %v2188
      %v2349 = vmul.f32 %v943, %v2189
      %v2350 = vmul.f32 %v945, %v2190
      %v2351 = vmul.f32 %v1056, %v2191
      %v2352 = vmul.f32 %v1058, %v2192
      %v2353 = vmul.f32 %v1169, %v2193
      %v2354 = vmul.f32 %v1171, %v2194
      %v2355 = vmul.f32 %v1282, %v2195
      %v2356 = vmul.f32 %v1284, %v2196
      %v2357 = vmul.f32 %v1395, %v2197
      %v2358 = vmul.f32 %v1397, %v2198
      %v2359 = vadd.f32 %v2199, %v2209
      %v2360 = vadd.f32 %v2359, %v2219
      %v2361 = vadd.f32 %v2360, %v2229
      %v2362 = vadd.f32 %v2361, %v2239
      %v2363 = vadd.f32 %v2362, %v2249
      %v2364 = vadd.f32 %v2363, %v2259
      %v2365 = vadd.f32 %v2364, %v2269
      %v2366 = vrot.slane %v2365, 4
      %v2367 = vadd.f32 %v2365, %v2366
      %v2368 = vrot.slane %v2367, 2
      %v2369 = vadd.f32 %v2367, %v2368
      %v2370 = vrot.slane %v2369, 1
      %v2371 = vadd.f32 %v2369, %v2370
      %v2372 = vadd.f32 %v2200, %v2210
      %v2373 = vadd.f32 %v2372, %v2220
      %v2374 = vadd.f32 %v2373, %v2230
      %v2375 = vadd.f32 %v2374, %v2240
      %v2376 = vadd.f32 %v2375, %v2250
      %v2377 = vadd.f32 %v2376, %v2260
      %v2378 = vadd.f32 %v2377, %v2270
      %v2379 = vrot.slane %v2378, 4
      %v2380 = vadd.f32 %v2378, %v2379
      %v2381 = vrot.slane %v2380, 2
      %v2382 = vadd.f32 %v2380, %v2381
      %v2383 = vrot.slane %v2382, 1
      %v2384 = vadd.f32 %v2382, %v2383
      %v2385 = vadd.f32 %v2201, %v2211
      %v2386 = vadd.f32 %v2385, %v2221
      %v2387 = vadd.f32 %v2386, %v2231
      %v2388 = vadd.f32 %v2387, %v2241
      %v2389 = vadd.f32 %v2388, %v2251
      %v2390 = vadd.f32 %v2389, %v2261
      %v2391 = vadd.f32 %v2390, %v2271
      %v2392 = vrot.slane %v2391, 4
      %v2393 = vadd.f32 %v2391, %v2392
      %v2394 = vrot.slane %v2393, 2
      %v2395 = vadd.f32 %v2393, %v2394
      %v2396 = vrot.slane %v2395, 1
      %v2397 = vadd.f32 %v2395, %v2396
      %v2398 = vadd.f32 %v2202, %v2212
      %v2399 = vadd.f32 %v2398, %v2222
      %v2400 = vadd.f32 %v2399, %v2232
      %v2401 = vadd.f32 %v2400, %v2242
      %v2402 = vadd.f32 %v2401, %v2252
      %v2403 = vadd.f32 %v2402, %v2262
      %v2404 = vadd.f32 %v2403, %v2272
      %v2405 = vrot.slane %v2404, 4
      %v2406 = vadd.f32 %v2404, %v2405
      %v2407 = vrot.slane %v2406, 2
      %v2408 = vadd.f32 %v2406, %v2407
      %v2409 = vrot.slane %v2408, 1
      %v2410 = vadd.f32 %v2408, %v2409
      %v2411 = vadd.f32 %v2203, %v2213
      %v2412 = vadd.f32 %v2411, %v2223
      %v2413 = vadd.f32 %v2412, %v2233
      %v2414 = vadd.f32 %v2413, %v2243
      %v2415 = vadd.f32 %v2414, %v2253
      %v2416 = vadd.f32 %v2415, %v2263
      %v2417 = vadd.f32 %v2416, %v2273
      %v2418 = vrot.slane %v2417, 4
      %v2419 = vadd.f32 %v2417, %v2418
      %v2420 = vrot.slane %v2419, 2
      %v2421 = vadd.f32 %v2419, %v2420
      %v2422 = vrot.slane %v2421, 1
      %v2423 = vadd.f32 %v2421, %v2422
      %v2424 = vadd.f32 %v2204, %v2214
      %v2425 = vadd.f32 %v2424, %v2224
      %v2426 = vadd.f32 %v2425, %v2234
      %v2427 = vadd.f32 %v2426, %v2244
      %v2428 = vadd.f32 %v2427, %v2254
      %v2429 = vadd.f32 %v2428, %v2264
      %v2430 = vadd.f32 %v2429, %v2274
      %v2431 = vrot.slane %v2430, 4
      %v2432 = vadd.f32 %v2430, %v2431
      %v2433 = vrot.slane %v2432, 2
      %v2434 = vadd.f32 %v2432, %v2433
      %v2435 = vrot.slane %v2434, 1
      %v2436 = vadd.f32 %v2434, %v2435
      %v2437 = vadd.f32 %v2205, %v2215
      %v2438 = vadd.f32 %v2437, %v2225
      %v2439 = vadd.f32 %v2438, %v2235
      %v2440 = vadd.f32 %v2439, %v2245
      %v2441 = vadd.f32 %v2440, %v2255
      %v2442 = vadd.f32 %v2441, %v2265
      %v2443 = vadd.f32 %v2442, %v2275
      %v2444 = vrot.slane %v2443, 4
      %v2445 = vadd.f32 %v2443, %v2444
      %v2446 = vrot.slane %v2445, 2
      %v2447 = vadd.f32 %v2445, %v2446
      %v2448 = vrot.slane %v2447, 1
      %v2449 = vadd.f32 %v2447, %v2448
      %v2450 = vadd.f32 %v2206, %v2216
      %v2451 = vadd.f32 %v2450, %v2226
      %v2452 = vadd.f32 %v2451, %v2236
      %v2453 = vadd.f32 %v2452, %v2246
      %v2454 = vadd.f32 %v2453, %v2256
      %v2455 = vadd.f32 %v2454, %v2266
      %v2456 = vadd.f32 %v2455, %v2276
      %v2457 = vrot.slane %v2456, 4
      %v2458 = vadd.f32 %v2456, %v2457
      %v2459 = vrot.slane %v2458, 2
      %v2460 = vadd.f32 %v2458, %v2459
      %v2461 = vrot.slane %v2460, 1
      %v2462 = vadd.f32 %v2460, %v2461
      %v2463 = vadd.f32 %v2207, %v2217
      %v2464 = vadd.f32 %v2463, %v2227
      %v2465 = vadd.f32 %v2464, %v2237
      %v2466 = vadd.f32 %v2465, %v2247
      %v2467 = vadd.f32 %v2466, %v2257
      %v2468 = vadd.f32 %v2467, %v2267
      %v2469 = vadd.f32 %v2468, %v2277
      %v2470 = vrot.slane %v2469, 4
      %v2471 = vadd.f32 %v2469, %v2470
      %v2472 = vrot.slane %v2471, 2
      %v2473 = vadd.f32 %v2471, %v2472
      %v2474 = vrot.slane %v2473, 1
      %v2475 = vadd.f32 %v2473, %v2474
      %v2476 = vadd.f32 %v2208, %v2218
      %v2477 = vadd.f32 %v2476, %v2228
      %v2478 = vadd.f32 %v2477, %v2238
      %v2479 = vadd.f32 %v2478, %v2248
      %v2480 = vadd.f32 %v2479, %v2258
      %v2481 = vadd.f32 %v2480, %v2268
      %v2482 = vadd.f32 %v2481, %v2278
      %v2483 = vrot.slane %v2482, 4
      %v2484 = vadd.f32 %v2482, %v2483
      %v2485 = vrot.slane %v2484, 2
      %v2486 = vadd.f32 %v2484, %v2485
      %v2487 = vrot.slane %v2486, 1
      %v2488 = vadd.f32 %v2486, %v2487
      %v2489 = vadd.f32 %v2279, %v2289
      %v2490 = vadd.f32 %v2489, %v2299
      %v2491 = vadd.f32 %v2490, %v2309
      %v2492 = vadd.f32 %v2491, %v2319
      %v2493 = vadd.f32 %v2492, %v2329
      %v2494 = vadd.f32 %v2493, %v2339
      %v2495 = vadd.f32 %v2494, %v2349
      %v2496 = vrot.slane %v2495, 4
      %v2497 = vadd.f32 %v2495, %v2496
      %v2498 = vrot.slane %v2497, 2
      %v2499 = vadd.f32 %v2497, %v2498
      %v2500 = vrot.slane %v2499, 1
      %v2501 = vadd.f32 %v2499, %v2500
      %v2502 = vadd.f32 %v2280, %v2290
      %v2503 = vadd.f32 %v2502, %v2300
      %v2504 = vadd.f32 %v2503, %v2310
      %v2505 = vadd.f32 %v2504, %v2320
      %v2506 = vadd.f32 %v2505, %v2330
      %v2507 = vadd.f32 %v2506, %v2340
      %v2508 = vadd.f32 %v2507, %v2350
      %v2509 = vrot.slane %v2508, 4
      %v2510 = vadd.f32 %v2508, %v2509
      %v2511 = vrot.slane %v2510, 2
      %v2512 = vadd.f32 %v2510, %v2511
      %v2513 = vrot.slane %v2512, 1
      %v2514 = vadd.f32 %v2512, %v2513
      %v2515 = vadd.f32 %v2281, %v2291
      %v2516 = vadd.f32 %v2515, %v2301
      %v2517 = vadd.f32 %v2516, %v2311
      %v2518 = vadd.f32 %v2517, %v2321
      %v2519 = vadd.f32 %v2518, %v2331
      %v2520 = vadd.f32 %v2519, %v2341
      %v2521 = vadd.f32 %v2520, %v2351
      %v2522 = vrot.slane %v2521, 4
      %v2523 = vadd.f32 %v2521, %v2522
      %v2524 = vrot.slane %v2523, 2
      %v2525 = vadd.f32 %v2523, %v2524
      %v2526 = vrot.slane %v2525, 1
      %v2527 = vadd.f32 %v2525, %v2526
      %v2528 = vadd.f32 %v2282, %v2292
      %v2529 = vadd.f32 %v2528, %v2302
      %v2530 = vadd.f32 %v2529, %v2312
      %v2531 = vadd.f32 %v2530, %v2322
      %v2532 = vadd.f32 %v2531, %v2332
      %v2533 = vadd.f32 %v2532, %v2342
      %v2534 = vadd.f32 %v2533, %v2352
      %v2535 = vrot.slane %v2534, 4
      %v2536 = vadd.f32 %v2534, %v2535
      %v2537 = vrot.slane %v2536, 2
      %v2538 = vadd.f32 %v2536, %v2537
      %v2539 = vrot.slane %v2538, 1
      %v2540 = vadd.f32 %v2538, %v2539
      %v2541 = vadd.f32 %v2283, %v2293
      %v2542 = vadd.f32 %v2541, %v2303
      %v2543 = vadd.f32 %v2542, %v2313
      %v2544 = vadd.f32 %v2543, %v2323
      %v2545 = vadd.f32 %v2544, %v2333
      %v2546 = vadd.f32 %v2545, %v2343
      %v2547 = vadd.f32 %v2546, %v2353
      %v2548 = vrot.slane %v2547, 4
      %v2549 = vadd.f32 %v2547, %v2548
      %v2550 = vrot.slane %v2549, 2
      %v2551 = vadd.f32 %v2549, %v2550
      %v2552 = vrot.slane %v2551, 1
      %v2553 = vadd.f32 %v2551, %v2552
      %v2554 = vadd.f32 %v2284, %v2294
      %v2555 = vadd.f32 %v2554, %v2304
      %v2556 = vadd.f32 %v2555, %v2314
      %v2557 = vadd.f32 %v2556, %v2324
      %v2558 = vadd.f32 %v2557, %v2334
      %v2559 = vadd.f32 %v2558, %v2344
      %v2560 = vadd.f32 %v2559, %v2354
      %v2561 = vrot.slane %v2560, 4
      %v2562 = vadd.f32 %v2560, %v2561
      %v2563 = vrot.slane %v2562, 2
      %v2564 = vadd.f32 %v2562, %v2563
      %v2565 = vrot.slane %v2564, 1
      %v2566 = vadd.f32 %v2564, %v2565
      %v2567 = vadd.f32 %v2285, %v2295
      %v2568 = vadd.f32 %v2567, %v2305
      %v2569 = vadd.f32 %v2568, %v2315
      %v2570 = vadd.f32 %v2569, %v2325
      %v2571 = vadd.f32 %v2570, %v2335
      %v2572 = vadd.f32 %v2571, %v2345
      %v2573 = vadd.f32 %v2572, %v2355
      %v2574 = vrot.slane %v2573, 4
      %v2575 = vadd.f32 %v2573, %v2574
      %v2576 = vrot.slane %v2575, 2
      %v2577 = vadd.f32 %v2575, %v2576
      %v2578 = vrot.slane %v2577, 1
      %v2579 = vadd.f32 %v2577, %v2578
      %v2580 = vadd.f32 %v2286, %v2296
      %v2581 = vadd.f32 %v2580, %v2306
      %v2582 = vadd.f32 %v2581, %v2316
      %v2583 = vadd.f32 %v2582, %v2326
      %v2584 = vadd.f32 %v2583, %v2336
      %v2585 = vadd.f32 %v2584, %v2346
      %v2586 = vadd.f32 %v2585, %v2356
      %v2587 = vrot.slane %v2586, 4
      %v2588 = vadd.f32 %v2586, %v2587
      %v2589 = vrot.slane %v2588, 2
      %v2590 = vadd.f32 %v2588, %v2589
      %v2591 = vrot.slane %v2590, 1
      %v2592 = vadd.f32 %v2590, %v2591
      %v2593 = vadd.f32 %v2287, %v2297
      %v2594 = vadd.f32 %v2593, %v2307
      %v2595 = vadd.f32 %v2594, %v2317
      %v2596 = vadd.f32 %v2595, %v2327
      %v2597 = vadd.f32 %v2596, %v2337
      %v2598 = vadd.f32 %v2597, %v2347
      %v2599 = vadd.f32 %v2598, %v2357
      %v2600 = vrot.slane %v2599, 4
      %v2601 = vadd.f32 %v2599, %v2600
      %v2602 = vrot.slane %v2601, 2
      %v2603 = vadd.f32 %v2601, %v2602
      %v2604 = vrot.slane %v2603, 1
      %v2605 = vadd.f32 %v2603, %v2604
      %v2606 = vadd.f32 %v2288, %v2298
      %v2607 = vadd.f32 %v2606, %v2308
      %v2608 = vadd.f32 %v2607, %v2318
      %v2609 = vadd.f32 %v2608, %v2328
      %v2610 = vadd.f32 %v2609, %v2338
      %v2611 = vadd.f32 %v2610, %v2348
      %v2612 = vadd.f32 %v2611, %v2358
      %v2613 = vrot.slane %v2612, 4
      %v2614 = vadd.f32 %v2612, %v2613
      %v2615 = vrot.slane %v2614, 2
      %v2616 = vadd.f32 %v2614, %v2615
      %v2617 = vrot.slane %v2616, 1
      %v2618 = vadd.f32 %v2616, %v2617
      %v2619 = vrcp.pop 64.0
      %v2620 = vmul.f32 %v2371, %v2619
      %v2621 = vmul.f32 %v2384, %v2619
      %v2622 = vmul.f32 %v2397, %v2619
      %v2623 = vmul.f32 %v2410, %v2619
      %v2624 = vmul.f32 %v2423, %v2619
      %v2625 = vmul.f32 %v2436, %v2619
      %v2626 = vmul.f32 %v2449, %v2619
      %v2627 = vmul.f32 %v2462, %v2619
      %v2628 = vmul.f32 %v2475, %v2619
      %v2629 = vmul.f32 %v2488, %v2619
      %v2630 = vmul.f32 %v2501, %v2619
      %v2631 = vmul.f32 %v2514, %v2619
      %v2632 = vmul.f32 %v2527, %v2619
      %v2633 = vmul.f32 %v2540, %v2619
      %v2634 = vmul.f32 %v2553, %v2619
      %v2635 = vmul.f32 %v2566, %v2619
      %v2636 = vmul.f32 %v2579, %v2619
      %v2637 = vmul.f32 %v2592, %v2619
      %v2638 = vmul.f32 %v2605, %v2619
      %v2639 = vmul.f32 %v2618, %v2619
      %v2640 = vpack.c.bf16 %v2620, %v2620
      %v2641 = vpack.c.bf16 %v2621, %v2621
      %v2642 = vpack.c.bf16 %v2622, %v2622
      %v2643 = vpack.c.bf16 %v2623, %v2623
      %v2644 = vpack.c.bf16 %v2624, %v2624
      %v2645 = vpack.c.bf16 %v2625, %v2625
      %v2646 = vpack.c.bf16 %v2626, %v2626
      %v2647 = vpack.c.bf16 %v2627, %v2627
      %v2648 = vpack.c.bf16 %v2628, %v2628
      %v2649 = vpack.c.bf16 %v2629, %v2629
      %v2650 = vpack.c.bf16 %v2630, %v2630
      %v2651 = vpack.c.bf16 %v2631, %v2631
      %v2652 = vpack.c.bf16 %v2632, %v2632
      %v2653 = vpack.c.bf16 %v2633, %v2633
      %v2654 = vpack.c.bf16 %v2634, %v2634
      %v2655 = vpack.c.bf16 %v2635, %v2635
      %v2656 = vpack.c.bf16 %v2636, %v2636
      %v2657 = vpack.c.bf16 %v2637, %v2637
      %v2658 = vpack.c.bf16 %v2638, %v2638
      %v2659 = vpack.c.bf16 %v2639, %v2639
      %v2660 = vld [vmem:[%s5] sm:$0xff]
      %v2661 = vld [vmem:[%s5 + $0x8] sm:$0xff]
      %v2662 = vld [vmem:[%s5 + $0x10] sm:$0xff]
      %v2663 = vld [vmem:[%s5 + $0x18] sm:$0xff]
      %v2664 = vld [vmem:[%s5 + $0x20] sm:$0xff]
      %v2665 = vld [vmem:[%s5 + $0x28] sm:$0xff]
      %v2666 = vld [vmem:[%s5 + $0x30] sm:$0xff]
      %v2667 = vld [vmem:[%s5 + $0x38] sm:$0xff]
      %v2668 = vld [vmem:[%s5 + $0x40] sm:$0xff]
      %v2669 = vld [vmem:[%s5 + $0x48] sm:$0xff]
      %v2670 = vld [vmem:[%s5 + $0x50] sm:$0xff]
      %v2671 = vld [vmem:[%s5 + $0x58] sm:$0xff]
      %v2672 = vld [vmem:[%s5 + $0x60] sm:$0xff]
      %v2673 = vld [vmem:[%s5 + $0x68] sm:$0xff]
      %v2674 = vld [vmem:[%s5 + $0x70] sm:$0xff]
      %v2675 = vld [vmem:[%s5 + $0x78] sm:$0xff]
      %v2676 = vld [vmem:[%s5 + $0x80] sm:$0xff]
      %v2677 = vld [vmem:[%s5 + $0x88] sm:$0xff]
      %v2678 = vld [vmem:[%s5 + $0x90] sm:$0xff]
      %v2679 = vld [vmem:[%s5 + $0x98] sm:$0xff]
      %v2680 = vld [vmem:[%s5 + $0xa0] sm:$0xff]
      %v2681 = vld [vmem:[%s5 + $0xa8] sm:$0xff]
      %v2682 = vld [vmem:[%s5 + $0xb0] sm:$0xff]
      %v2683 = vld [vmem:[%s5 + $0xb8] sm:$0xff]
      %v2684 = vld [vmem:[%s5 + $0xc0] sm:$0xff]
      %v2685 = vld [vmem:[%s5 + $0xc8] sm:$0xff]
      %v2686 = vld [vmem:[%s5 + $0xd0] sm:$0xff]
      %v2687 = vld [vmem:[%s5 + $0xd8] sm:$0xff]
      %v2688 = vld [vmem:[%s5 + $0xe0] sm:$0xff]
      %v2689 = vld [vmem:[%s5 + $0xe8] sm:$0xff]
      %v2690 = vld [vmem:[%s5 + $0xf0] sm:$0xff]
      %v2691 = vld [vmem:[%s5 + $0xf8] sm:$0xff]
      %v2692 = vld [vmem:[%s5 + $0x100] sm:$0xff]
      %v2693 = vld [vmem:[%s5 + $0x108] sm:$0xff]
      %v2694 = vld [vmem:[%s5 + $0x110] sm:$0xff]
      %v2695 = vld [vmem:[%s5 + $0x118] sm:$0xff]
      %v2696 = vld [vmem:[%s5 + $0x120] sm:$0xff]
      %v2697 = vld [vmem:[%s5 + $0x128] sm:$0xff]
      %v2698 = vld [vmem:[%s5 + $0x130] sm:$0xff]
      %v2699 = vld [vmem:[%s5 + $0x138] sm:$0xff]
      %v2700 = vld [vmem:[%s5 + $0x140] sm:$0xff]
      %v2701 = vld [vmem:[%s5 + $0x148] sm:$0xff]
      %v2702 = vld [vmem:[%s5 + $0x150] sm:$0xff]
      %v2703 = vld [vmem:[%s5 + $0x158] sm:$0xff]
      %v2704 = vld [vmem:[%s5 + $0x160] sm:$0xff]
      %v2705 = vld [vmem:[%s5 + $0x168] sm:$0xff]
      %v2706 = vld [vmem:[%s5 + $0x170] sm:$0xff]
      %v2707 = vld [vmem:[%s5 + $0x178] sm:$0xff]
      %v2708 = vld [vmem:[%s5 + $0x180] sm:$0xff]
      %v2709 = vld [vmem:[%s5 + $0x188] sm:$0xff]
      %v2710 = vld [vmem:[%s5 + $0x190] sm:$0xff]
      %v2711 = vld [vmem:[%s5 + $0x198] sm:$0xff]
      %v2712 = vld [vmem:[%s5 + $0x1a0] sm:$0xff]
      %v2713 = vld [vmem:[%s5 + $0x1a8] sm:$0xff]
      %v2714 = vld [vmem:[%s5 + $0x1b0] sm:$0xff]
      %v2715 = vld [vmem:[%s5 + $0x1b8] sm:$0xff]
      %v2716 = vld [vmem:[%s5 + $0x1c0] sm:$0xff]
      %v2717 = vld [vmem:[%s5 + $0x1c8] sm:$0xff]
      %v2718 = vld [vmem:[%s5 + $0x1d0] sm:$0xff]
      %v2719 = vld [vmem:[%s5 + $0x1d8] sm:$0xff]
      %v2720 = vld [vmem:[%s5 + $0x1e0] sm:$0xff]
      %v2721 = vld [vmem:[%s5 + $0x1e8] sm:$0xff]
      %v2722 = vld [vmem:[%s5 + $0x1f0] sm:$0xff]
      %v2723 = vld [vmem:[%s5 + $0x1f8] sm:$0xff]
      %v2724 = vld [vmem:[%s5 + $0x200] sm:$0xff]
      %v2725 = vld [vmem:[%s5 + $0x208] sm:$0xff]
      %v2726 = vld [vmem:[%s5 + $0x210] sm:$0xff]
      %v2727 = vld [vmem:[%s5 + $0x218] sm:$0xff]
      %v2728 = vld [vmem:[%s5 + $0x220] sm:$0xff]
      %v2729 = vld [vmem:[%s5 + $0x228] sm:$0xff]
      %v2730 = vld [vmem:[%s5 + $0x230] sm:$0xff]
      %v2731 = vld [vmem:[%s5 + $0x238] sm:$0xff]
      %v2732 = vld [vmem:[%s5 + $0x240] sm:$0xff]
      %v2733 = vld [vmem:[%s5 + $0x248] sm:$0xff]
      %v2734 = vld [vmem:[%s5 + $0x250] sm:$0xff]
      %v2735 = vld [vmem:[%s5 + $0x258] sm:$0xff]
      %v2736 = vld [vmem:[%s5 + $0x260] sm:$0xff]
      %v2737 = vld [vmem:[%s5 + $0x268] sm:$0xff]
      %v2738 = vld [vmem:[%s5 + $0x270] sm:$0xff]
      %v2739 = vld [vmem:[%s5 + $0x278] sm:$0xff]
      %v2740 = vld [vmem:[%s5 + $0x280] sm:$0xff]
      %v2741 = vld [vmem:[%s5 + $0x288] sm:$0xff]
      %v2742 = vld [vmem:[%s5 + $0x290] sm:$0xff]
      %v2743 = vld [vmem:[%s5 + $0x298] sm:$0xff]
      %v2744 = vld [vmem:[%s5 + $0x2a0] sm:$0xff]
      %v2745 = vld [vmem:[%s5 + $0x2a8] sm:$0xff]
      %v2746 = vld [vmem:[%s5 + $0x2b0] sm:$0xff]
      %v2747 = vld [vmem:[%s5 + $0x2b8] sm:$0xff]
      %v2748 = vld [vmem:[%s5 + $0x2c0] sm:$0xff]
      %v2749 = vld [vmem:[%s5 + $0x2c8] sm:$0xff]
      %v2750 = vld [vmem:[%s5 + $0x2d0] sm:$0xff]
      %v2751 = vld [vmem:[%s5 + $0x2d8] sm:$0xff]
      %v2752 = vld [vmem:[%s5 + $0x2e0] sm:$0xff]
      %v2753 = vld [vmem:[%s5 + $0x2e8] sm:$0xff]
      %v2754 = vld [vmem:[%s5 + $0x2f0] sm:$0xff]
      %v2755 = vld [vmem:[%s5 + $0x2f8] sm:$0xff]
      %v2756 = vld [vmem:[%s5 + $0x300] sm:$0xff]
      %v2757 = vld [vmem:[%s5 + $0x308] sm:$0xff]
      %v2758 = vld [vmem:[%s5 + $0x310] sm:$0xff]
      %v2759 = vld [vmem:[%s5 + $0x318] sm:$0xff]
      %v2760 = vld [vmem:[%s5 + $0x320] sm:$0xff]
      %v2761 = vld [vmem:[%s5 + $0x328] sm:$0xff]
      %v2762 = vld [vmem:[%s5 + $0x330] sm:$0xff]
      %v2763 = vld [vmem:[%s5 + $0x338] sm:$0xff]
      %v2764 = vld [vmem:[%s5 + $0x340] sm:$0xff]
      %v2765 = vld [vmem:[%s5 + $0x348] sm:$0xff]
      %v2766 = vld [vmem:[%s5 + $0x350] sm:$0xff]
      %v2767 = vld [vmem:[%s5 + $0x358] sm:$0xff]
      %v2768 = vld [vmem:[%s5 + $0x360] sm:$0xff]
      %v2769 = vld [vmem:[%s5 + $0x368] sm:$0xff]
      %v2770 = vld [vmem:[%s5 + $0x370] sm:$0xff]
      %v2771 = vld [vmem:[%s5 + $0x378] sm:$0xff]
      %v2772 = vld [vmem:[%s5 + $0x380] sm:$0xff]
      %v2773 = vld [vmem:[%s5 + $0x388] sm:$0xff]
      %v2774 = vld [vmem:[%s5 + $0x390] sm:$0xff]
      %v2775 = vld [vmem:[%s5 + $0x398] sm:$0xff]
      %v2776 = vld [vmem:[%s5 + $0x3a0] sm:$0xff]
      %v2777 = vld [vmem:[%s5 + $0x3a8] sm:$0xff]
      %v2778 = vld [vmem:[%s5 + $0x3b0] sm:$0xff]
      %v2779 = vld [vmem:[%s5 + $0x3b8] sm:$0xff]
      %v2780 = vld [vmem:[%s5 + $0x3c0] sm:$0xff]
      %v2781 = vld [vmem:[%s5 + $0x3c8] sm:$0xff]
      %v2782 = vld [vmem:[%s5 + $0x3d0] sm:$0xff]
      %v2783 = vld [vmem:[%s5 + $0x3d8] sm:$0xff]
      %v2784 = vld [vmem:[%s5 + $0x3e0] sm:$0xff]
      %v2785 = vld [vmem:[%s5 + $0x3e8] sm:$0xff]
      %v2786 = vld [vmem:[%s5 + $0x3f0] sm:$0xff]
      %v2787 = vld [vmem:[%s5 + $0x3f8] sm:$0xff]
      %v2788 = vld [vmem:[%s5 + $0x400] sm:$0xff]
      %v2789 = vld [vmem:[%s5 + $0x408] sm:$0xff]
      %v2790 = vld [vmem:[%s5 + $0x410] sm:$0xff]
      %v2791 = vld [vmem:[%s5 + $0x418] sm:$0xff]
      %v2792 = vld [vmem:[%s5 + $0x420] sm:$0xff]
      %v2793 = vld [vmem:[%s5 + $0x428] sm:$0xff]
      %v2794 = vld [vmem:[%s5 + $0x430] sm:$0xff]
      %v2795 = vld [vmem:[%s5 + $0x438] sm:$0xff]
      %v2796 = vld [vmem:[%s5 + $0x440] sm:$0xff]
      %v2797 = vld [vmem:[%s5 + $0x448] sm:$0xff]
      %v2798 = vld [vmem:[%s5 + $0x450] sm:$0xff]
      %v2799 = vld [vmem:[%s5 + $0x458] sm:$0xff]
      %v2800 = vld [vmem:[%s5 + $0x460] sm:$0xff]
      %v2801 = vld [vmem:[%s5 + $0x468] sm:$0xff]
      %v2802 = vld [vmem:[%s5 + $0x470] sm:$0xff]
      %v2803 = vld [vmem:[%s5 + $0x478] sm:$0xff]
      %v2804 = vld [vmem:[%s5 + $0x480] sm:$0xff]
      %v2805 = vld [vmem:[%s5 + $0x488] sm:$0xff]
      %v2806 = vld [vmem:[%s5 + $0x490] sm:$0xff]
      %v2807 = vld [vmem:[%s5 + $0x498] sm:$0xff]
      %v2808 = vld [vmem:[%s5 + $0x4a0] sm:$0xff]
      %v2809 = vld [vmem:[%s5 + $0x4a8] sm:$0xff]
      %v2810 = vld [vmem:[%s5 + $0x4b0] sm:$0xff]
      %v2811 = vld [vmem:[%s5 + $0x4b8] sm:$0xff]
      %v2812 = vld [vmem:[%s5 + $0x4c0] sm:$0xff]
      %v2813 = vld [vmem:[%s5 + $0x4c8] sm:$0xff]
      %v2814 = vld [vmem:[%s5 + $0x4d0] sm:$0xff]
      %v2815 = vld [vmem:[%s5 + $0x4d8] sm:$0xff]
      %v2816 = vld [vmem:[%s5 + $0x4e0] sm:$0xff]
      %v2817 = vld [vmem:[%s5 + $0x4e8] sm:$0xff]
      %v2818 = vld [vmem:[%s5 + $0x4f0] sm:$0xff]
      %v2819 = vld [vmem:[%s5 + $0x4f8] sm:$0xff]
      %v2820 = vld [vmem:[%s5 + $0x500] sm:$0xff]
      %v2821 = vld [vmem:[%s5 + $0x508] sm:$0xff]
      %v2822 = vld [vmem:[%s5 + $0x510] sm:$0xff]
      %v2823 = vld [vmem:[%s5 + $0x518] sm:$0xff]
      %v2824 = vld [vmem:[%s5 + $0x520] sm:$0xff]
      %v2825 = vld [vmem:[%s5 + $0x528] sm:$0xff]
      %v2826 = vld [vmem:[%s5 + $0x530] sm:$0xff]
      %v2827 = vld [vmem:[%s5 + $0x538] sm:$0xff]
      %v2828 = vld [vmem:[%s5 + $0x540] sm:$0xff]
      %v2829 = vld [vmem:[%s5 + $0x548] sm:$0xff]
      %v2830 = vld [vmem:[%s5 + $0x550] sm:$0xff]
      %v2831 = vld [vmem:[%s5 + $0x558] sm:$0xff]
      %v2832 = vld [vmem:[%s5 + $0x560] sm:$0xff]
      %v2833 = vld [vmem:[%s5 + $0x568] sm:$0xff]
      %v2834 = vld [vmem:[%s5 + $0x570] sm:$0xff]
      %v2835 = vld [vmem:[%s5 + $0x578] sm:$0xff]
      %v2836 = vld [vmem:[%s5 + $0x580] sm:$0xff]
      %v2837 = vld [vmem:[%s5 + $0x588] sm:$0xff]
      %v2838 = vld [vmem:[%s5 + $0x590] sm:$0xff]
      %v2839 = vld [vmem:[%s5 + $0x598] sm:$0xff]
      %v2840 = vld [vmem:[%s5 + $0x5a0] sm:$0xff]
      %v2841 = vld [vmem:[%s5 + $0x5a8] sm:$0xff]
      %v2842 = vld [vmem:[%s5 + $0x5b0] sm:$0xff]
      %v2843 = vld [vmem:[%s5 + $0x5b8] sm:$0xff]
      %v2844 = vld [vmem:[%s5 + $0x5c0] sm:$0xff]
      %v2845 = vld [vmem:[%s5 + $0x5c8] sm:$0xff]
      %v2846 = vld [vmem:[%s5 + $0x5d0] sm:$0xff]
      %v2847 = vld [vmem:[%s5 + $0x5d8] sm:$0xff]
      %v2848 = vld [vmem:[%s5 + $0x5e0] sm:$0xff]
      %v2849 = vld [vmem:[%s5 + $0x5e8] sm:$0xff]
      %v2850 = vld [vmem:[%s5 + $0x5f0] sm:$0xff]
      %v2851 = vld [vmem:[%s5 + $0x5f8] sm:$0xff]
      %v2852 = vld [vmem:[%s5 + $0x600] sm:$0xff]
      %v2853 = vld [vmem:[%s5 + $0x608] sm:$0xff]
      %v2854 = vld [vmem:[%s5 + $0x610] sm:$0xff]
      %v2855 = vld [vmem:[%s5 + $0x618] sm:$0xff]
      %v2856 = vld [vmem:[%s5 + $0x620] sm:$0xff]
      %v2857 = vld [vmem:[%s5 + $0x628] sm:$0xff]
      %v2858 = vld [vmem:[%s5 + $0x630] sm:$0xff]
      %v2859 = vld [vmem:[%s5 + $0x638] sm:$0xff]
      %v2860 = vld [vmem:[%s5 + $0x640] sm:$0xff]
      %v2861 = vld [vmem:[%s5 + $0x648] sm:$0xff]
      %v2862 = vld [vmem:[%s5 + $0x650] sm:$0xff]
      %v2863 = vld [vmem:[%s5 + $0x658] sm:$0xff]
      %v2864 = vld [vmem:[%s5 + $0x660] sm:$0xff]
      %v2865 = vld [vmem:[%s5 + $0x668] sm:$0xff]
      %v2866 = vld [vmem:[%s5 + $0x670] sm:$0xff]
      %v2867 = vld [vmem:[%s5 + $0x678] sm:$0xff]
      %v2868 = vld [vmem:[%s5 + $0x680] sm:$0xff]
      %v2869 = vld [vmem:[%s5 + $0x688] sm:$0xff]
      %v2870 = vld [vmem:[%s5 + $0x690] sm:$0xff]
      %v2871 = vld [vmem:[%s5 + $0x698] sm:$0xff]
      %v2872 = vld [vmem:[%s5 + $0x6a0] sm:$0xff]
      %v2873 = vld [vmem:[%s5 + $0x6a8] sm:$0xff]
      %v2874 = vld [vmem:[%s5 + $0x6b0] sm:$0xff]
      %v2875 = vld [vmem:[%s5 + $0x6b8] sm:$0xff]
      %v2876 = vld [vmem:[%s5 + $0x6c0] sm:$0xff]
      %v2877 = vld [vmem:[%s5 + $0x6c8] sm:$0xff]
      %v2878 = vld [vmem:[%s5 + $0x6d0] sm:$0xff]
      %v2879 = vld [vmem:[%s5 + $0x6d8] sm:$0xff]
      %v2880 = vld [vmem:[%s5 + $0x6e0] sm:$0xff]
      %v2881 = vld [vmem:[%s5 + $0x6e8] sm:$0xff]
      %v2882 = vld [vmem:[%s5 + $0x6f0] sm:$0xff]
      %v2883 = vld [vmem:[%s5 + $0x6f8] sm:$0xff]
      %v2884 = vld [vmem:[%s5 + $0x700] sm:$0xff]
      %v2885 = vld [vmem:[%s5 + $0x708] sm:$0xff]
      %v2886 = vld [vmem:[%s5 + $0x710] sm:$0xff]
      %v2887 = vld [vmem:[%s5 + $0x718] sm:$0xff]
      %v2888 = vld [vmem:[%s5 + $0x720] sm:$0xff]
      %v2889 = vld [vmem:[%s5 + $0x728] sm:$0xff]
      %v2890 = vld [vmem:[%s5 + $0x730] sm:$0xff]
      %v2891 = vld [vmem:[%s5 + $0x738] sm:$0xff]
      %v2892 = vld [vmem:[%s5 + $0x740] sm:$0xff]
      %v2893 = vld [vmem:[%s5 + $0x748] sm:$0xff]
      %v2894 = vld [vmem:[%s5 + $0x750] sm:$0xff]
      %v2895 = vld [vmem:[%s5 + $0x758] sm:$0xff]
      %v2896 = vld [vmem:[%s5 + $0x760] sm:$0xff]
      %v2897 = vld [vmem:[%s5 + $0x768] sm:$0xff]
      %v2898 = vld [vmem:[%s5 + $0x770] sm:$0xff]
      %v2899 = vld [vmem:[%s5 + $0x778] sm:$0xff]
      %v2900 = vld [vmem:[%s5 + $0x780] sm:$0xff]
      %v2901 = vld [vmem:[%s5 + $0x788] sm:$0xff]
      %v2902 = vld [vmem:[%s5 + $0x790] sm:$0xff]
      %v2903 = vld [vmem:[%s5 + $0x798] sm:$0xff]
      %v2904 = vld [vmem:[%s5 + $0x7a0] sm:$0xff]
      %v2905 = vld [vmem:[%s5 + $0x7a8] sm:$0xff]
      %v2906 = vld [vmem:[%s5 + $0x7b0] sm:$0xff]
      %v2907 = vld [vmem:[%s5 + $0x7b8] sm:$0xff]
      %v2908 = vld [vmem:[%s5 + $0x7c0] sm:$0xff]
      %v2909 = vld [vmem:[%s5 + $0x7c8] sm:$0xff]
      %v2910 = vld [vmem:[%s5 + $0x7d0] sm:$0xff]
      %v2911 = vld [vmem:[%s5 + $0x7d8] sm:$0xff]
      %v2912 = vld [vmem:[%s5 + $0x7e0] sm:$0xff]
      %v2913 = vld [vmem:[%s5 + $0x7e8] sm:$0xff]
      %v2914 = vld [vmem:[%s5 + $0x7f0] sm:$0xff]
      %v2915 = vld [vmem:[%s5 + $0x7f8] sm:$0xff]
      %v2916 = vld [vmem:[%s5 + $0x800] sm:$0xff]
      %v2917 = vld [vmem:[%s5 + $0x808] sm:$0xff]
      %v2918 = vld [vmem:[%s5 + $0x810] sm:$0xff]
      %v2919 = vld [vmem:[%s5 + $0x818] sm:$0xff]
      %v2920 = vld [vmem:[%s5 + $0x820] sm:$0xff]
      %v2921 = vld [vmem:[%s5 + $0x828] sm:$0xff]
      %v2922 = vld [vmem:[%s5 + $0x830] sm:$0xff]
      %v2923 = vld [vmem:[%s5 + $0x838] sm:$0xff]
      %v2924 = vld [vmem:[%s5 + $0x840] sm:$0xff]
      %v2925 = vld [vmem:[%s5 + $0x848] sm:$0xff]
      %v2926 = vld [vmem:[%s5 + $0x850] sm:$0xff]
      %v2927 = vld [vmem:[%s5 + $0x858] sm:$0xff]
      %v2928 = vld [vmem:[%s5 + $0x860] sm:$0xff]
      %v2929 = vld [vmem:[%s5 + $0x868] sm:$0xff]
      %v2930 = vld [vmem:[%s5 + $0x870] sm:$0xff]
      %v2931 = vld [vmem:[%s5 + $0x878] sm:$0xff]
      %v2932 = vld [vmem:[%s5 + $0x880] sm:$0xff]
      %v2933 = vld [vmem:[%s5 + $0x888] sm:$0xff]
      %v2934 = vld [vmem:[%s5 + $0x890] sm:$0xff]
      %v2935 = vld [vmem:[%s5 + $0x898] sm:$0xff]
      %v2936 = vld [vmem:[%s5 + $0x8a0] sm:$0xff]
      %v2937 = vld [vmem:[%s5 + $0x8a8] sm:$0xff]
      %v2938 = vld [vmem:[%s5 + $0x8b0] sm:$0xff]
      %v2939 = vld [vmem:[%s5 + $0x8b8] sm:$0xff]
      %v2940 = vld [vmem:[%s5 + $0x8c0] sm:$0xff]
      %v2941 = vld [vmem:[%s5 + $0x8c8] sm:$0xff]
      %v2942 = vld [vmem:[%s5 + $0x8d0] sm:$0xff]
      %v2943 = vld [vmem:[%s5 + $0x8d8] sm:$0xff]
      %v2944 = vld [vmem:[%s5 + $0x8e0] sm:$0xff]
      %v2945 = vld [vmem:[%s5 + $0x8e8] sm:$0xff]
      %v2946 = vld [vmem:[%s5 + $0x8f0] sm:$0xff]
      %v2947 = vld [vmem:[%s5 + $0x8f8] sm:$0xff]
      %v2948 = vld [vmem:[%s5 + $0x900] sm:$0xff]
      %v2949 = vld [vmem:[%s5 + $0x908] sm:$0xff]
      %v2950 = vld [vmem:[%s5 + $0x910] sm:$0xff]
      %v2951 = vld [vmem:[%s5 + $0x918] sm:$0xff]
      %v2952 = vld [vmem:[%s5 + $0x920] sm:$0xff]
      %v2953 = vld [vmem:[%s5 + $0x928] sm:$0xff]
      %v2954 = vld [vmem:[%s5 + $0x930] sm:$0xff]
      %v2955 = vld [vmem:[%s5 + $0x938] sm:$0xff]
      %v2956 = vld [vmem:[%s5 + $0x940] sm:$0xff]
      %v2957 = vld [vmem:[%s5 + $0x948] sm:$0xff]
      %v2958 = vld [vmem:[%s5 + $0x950] sm:$0xff]
      %v2959 = vld [vmem:[%s5 + $0x958] sm:$0xff]
      %v2960 = vld [vmem:[%s5 + $0x960] sm:$0xff]
      %v2961 = vld [vmem:[%s5 + $0x968] sm:$0xff]
      %v2962 = vld [vmem:[%s5 + $0x970] sm:$0xff]
      %v2963 = vld [vmem:[%s5 + $0x978] sm:$0xff]
      %v2964 = vld [vmem:[%s5 + $0x980] sm:$0xff]
      %v2965 = vld [vmem:[%s5 + $0x988] sm:$0xff]
      %v2966 = vld [vmem:[%s5 + $0x990] sm:$0xff]
      %v2967 = vld [vmem:[%s5 + $0x998] sm:$0xff]
      %v2968 = vld [vmem:[%s5 + $0x9a0] sm:$0xff]
      %v2969 = vld [vmem:[%s5 + $0x9a8] sm:$0xff]
      %v2970 = vld [vmem:[%s5 + $0x9b0] sm:$0xff]
      %v2971 = vld [vmem:[%s5 + $0x9b8] sm:$0xff]
      %v2972 = vld [vmem:[%s5 + $0x9c0] sm:$0xff]
      %v2973 = vld [vmem:[%s5 + $0x9c8] sm:$0xff]
      %v2974 = vld [vmem:[%s5 + $0x9d0] sm:$0xff]
      %v2975 = vld [vmem:[%s5 + $0x9d8] sm:$0xff]
      %v2976 = vld [vmem:[%s5 + $0x9e0] sm:$0xff]
      %v2977 = vld [vmem:[%s5 + $0x9e8] sm:$0xff]
      %v2978 = vld [vmem:[%s5 + $0x9f0] sm:$0xff]
      %v2979 = vld [vmem:[%s5 + $0x9f8] sm:$0xff]
      %v2980 = vld [vmem:[%s6] sm:$0xf]
      %v2982 = vlaneseq
      %v2983 = vshrl.u32 %v2982, 7
      %v2984 = vsub.s32 0, %v2983
      %v2985 = vrot.slane %v2980, %v2984
      %v2986 = vlaneseq
      %v2987 = vshrl.u32 %v2986, 7
      %v2988 = vsub.s32 1, %v2987
      %v2989 = vrot.slane %v2980, %v2988
      %v2990 = vlaneseq
      %v2991 = vshrl.u32 %v2990, 7
      %v2992 = vsub.s32 2, %v2991
      %v2993 = vrot.slane %v2980, %v2992
      %v2994 = vlaneseq
      %v2995 = vshrl.u32 %v2994, 7
      %v2996 = vsub.s32 3, %v2995
      %v2997 = vrot.slane %v2980, %v2996
      %v3022 = vunpack.c.l.b16 %v2640
      %v3023 = vunpack.c.l.b16 %v2641
      %v3024 = vunpack.c.l.b16 %v2642
      %v3025 = vunpack.c.l.b16 %v2643
      %v3026 = vunpack.c.l.b16 %v2644
      %v3027 = vunpack.c.l.b16 %v2645
      %v3028 = vunpack.c.l.b16 %v2646
      %v3029 = vunpack.c.l.b16 %v2647
      %v3030 = vunpack.c.l.b16 %v2648
      %v3031 = vunpack.c.l.b16 %v2649
      %v3032 = vunpack.c.l.b16 %v2650
      %v3033 = vunpack.c.l.b16 %v2651
      %v3034 = vunpack.c.l.b16 %v2652
      %v3035 = vunpack.c.l.b16 %v2653
      %v3036 = vunpack.c.l.b16 %v2654
      %v3037 = vunpack.c.l.b16 %v2655
      %v3038 = vunpack.c.l.b16 %v2656
      %v3039 = vunpack.c.l.b16 %v2657
      %v3040 = vunpack.c.l.b16 %v2658
      %v3041 = vunpack.c.l.b16 %v2659
      %vm3042 = vcmask 1041409
      %v3043 = vsel %vm3042, %v3032, %v3022
      %v3044 = vsel %vm3042, %v3033, %v3023
      %v3045 = vsel %vm3042, %v3034, %v3024
      %v3046 = vsel %vm3042, %v3035, %v3025
      %v3047 = vsel %vm3042, %v3036, %v3026
      %v3048 = vsel %vm3042, %v3037, %v3027
      %v3049 = vsel %vm3042, %v3038, %v3028
      %v3050 = vsel %vm3042, %v3039, %v3029
      %v3051 = vsel %vm3042, %v3040, %v3030
      %v3052 = vsel %vm3042, %v3041, %v3031
      %v3053 = vpack.c.b16 %v3043, %v3043
      %v3054 = vpack.c.b16 %v3044, %v3044
      %v3055 = vpack.c.b16 %v3045, %v3045
      %v3056 = vpack.c.b16 %v3046, %v3046
      %v3057 = vpack.c.b16 %v3047, %v3047
      %v3058 = vpack.c.b16 %v3048, %v3048
      %v3059 = vpack.c.b16 %v3049, %v3049
      %v3060 = vpack.c.b16 %v3050, %v3050
      %v3061 = vpack.c.b16 %v3051, %v3051
      %v3062 = vpack.c.b16 %v3052, %v3052
      %v3393 = vunpack.c.l.b16 %v2660
      %v3394 = vunpack.c.h.b16 %v2660
      %v3395 = vunpack.c.l.b16 %v2661
      %v3396 = vunpack.c.h.b16 %v2661
      %v3397 = vunpack.c.l.b16 %v2662
      %v3398 = vunpack.c.h.b16 %v2662
      %v3399 = vunpack.c.l.b16 %v2663
      %v3400 = vunpack.c.h.b16 %v2663
      %v3401 = vunpack.c.l.b16 %v2664
      %v3402 = vunpack.c.h.b16 %v2664
      %v3403 = vunpack.c.l.b16 %v2665
      %v3404 = vunpack.c.h.b16 %v2665
      %v3405 = vunpack.c.l.b16 %v2666
      %v3406 = vunpack.c.h.b16 %v2666
      %v3407 = vunpack.c.l.b16 %v2667
      %v3408 = vunpack.c.h.b16 %v2667
      %v3409 = vunpack.c.l.b16 %v2668
      %v3410 = vunpack.c.h.b16 %v2668
      %v3411 = vunpack.c.l.b16 %v2669
      %v3412 = vunpack.c.h.b16 %v2669
      %v3413 = vunpack.c.l.b16 %v2670
      %v3414 = vunpack.c.h.b16 %v2670
      %v3415 = vunpack.c.l.b16 %v2671
      %v3416 = vunpack.c.h.b16 %v2671
      %v3417 = vunpack.c.l.b16 %v2672
      %v3418 = vunpack.c.h.b16 %v2672
      %v3419 = vunpack.c.l.b16 %v2673
      %v3420 = vunpack.c.h.b16 %v2673
      %v3421 = vunpack.c.l.b16 %v2674
      %v3422 = vunpack.c.h.b16 %v2674
      %v3423 = vunpack.c.l.b16 %v2675
      %v3424 = vunpack.c.h.b16 %v2675
      %v3425 = vunpack.c.l.b16 %v2676
      %v3426 = vunpack.c.h.b16 %v2676
      %v3427 = vunpack.c.l.b16 %v2677
      %v3428 = vunpack.c.h.b16 %v2677
      %v3429 = vunpack.c.l.b16 %v2678
      %v3430 = vunpack.c.h.b16 %v2678
      %v3431 = vunpack.c.l.b16 %v2679
      %v3432 = vunpack.c.h.b16 %v2679
      %v3433 = vunpack.c.l.b16 %v2680
      %v3434 = vunpack.c.h.b16 %v2680
      %v3435 = vunpack.c.l.b16 %v2681
      %v3436 = vunpack.c.h.b16 %v2681
      %v3437 = vunpack.c.l.b16 %v2682
      %v3438 = vunpack.c.h.b16 %v2682
      %v3439 = vunpack.c.l.b16 %v2683
      %v3440 = vunpack.c.h.b16 %v2683
      %v3441 = vunpack.c.l.b16 %v2684
      %v3442 = vunpack.c.h.b16 %v2684
      %v3443 = vunpack.c.l.b16 %v2685
      %v3444 = vunpack.c.h.b16 %v2685
      %v3445 = vunpack.c.l.b16 %v2686
      %v3446 = vunpack.c.h.b16 %v2686
      %v3447 = vunpack.c.l.b16 %v2687
      %v3448 = vunpack.c.h.b16 %v2687
      %v3449 = vunpack.c.l.b16 %v2688
      %v3450 = vunpack.c.h.b16 %v2688
      %v3451 = vunpack.c.l.b16 %v2689
      %v3452 = vunpack.c.h.b16 %v2689
      %v3453 = vunpack.c.l.b16 %v2690
      %v3454 = vunpack.c.h.b16 %v2690
      %v3455 = vunpack.c.l.b16 %v2691
      %v3456 = vunpack.c.h.b16 %v2691
      %v3457 = vunpack.c.l.b16 %v2692
      %v3458 = vunpack.c.h.b16 %v2692
      %v3459 = vunpack.c.l.b16 %v2693
      %v3460 = vunpack.c.h.b16 %v2693
      %v3461 = vunpack.c.l.b16 %v2694
      %v3462 = vunpack.c.h.b16 %v2694
      %v3463 = vunpack.c.l.b16 %v2695
      %v3464 = vunpack.c.h.b16 %v2695
      %v3465 = vunpack.c.l.b16 %v2696
      %v3466 = vunpack.c.h.b16 %v2696
      %v3467 = vunpack.c.l.b16 %v2697
      %v3468 = vunpack.c.h.b16 %v2697
      %v3469 = vunpack.c.l.b16 %v2698
      %v3470 = vunpack.c.h.b16 %v2698
      %v3471 = vunpack.c.l.b16 %v2699
      %v3472 = vunpack.c.h.b16 %v2699
      %v3473 = vunpack.c.l.b16 %v2700
      %v3474 = vunpack.c.h.b16 %v2700
      %v3475 = vunpack.c.l.b16 %v2701
      %v3476 = vunpack.c.h.b16 %v2701
      %v3477 = vunpack.c.l.b16 %v2702
      %v3478 = vunpack.c.h.b16 %v2702
      %v3479 = vunpack.c.l.b16 %v2703
      %v3480 = vunpack.c.h.b16 %v2703
      %v3481 = vunpack.c.l.b16 %v2704
      %v3482 = vunpack.c.h.b16 %v2704
      %v3483 = vunpack.c.l.b16 %v2705
      %v3484 = vunpack.c.h.b16 %v2705
      %v3485 = vunpack.c.l.b16 %v2706
      %v3486 = vunpack.c.h.b16 %v2706
      %v3487 = vunpack.c.l.b16 %v2707
      %v3488 = vunpack.c.h.b16 %v2707
      %v3489 = vunpack.c.l.b16 %v2708
      %v3490 = vunpack.c.h.b16 %v2708
      %v3491 = vunpack.c.l.b16 %v2709
      %v3492 = vunpack.c.h.b16 %v2709
      %v3493 = vunpack.c.l.b16 %v2710
      %v3494 = vunpack.c.h.b16 %v2710
      %v3495 = vunpack.c.l.b16 %v2711
      %v3496 = vunpack.c.h.b16 %v2711
      %v3497 = vunpack.c.l.b16 %v2712
      %v3498 = vunpack.c.h.b16 %v2712
      %v3499 = vunpack.c.l.b16 %v2713
      %v3500 = vunpack.c.h.b16 %v2713
      %v3501 = vunpack.c.l.b16 %v2714
      %v3502 = vunpack.c.h.b16 %v2714
      %v3503 = vunpack.c.l.b16 %v2715
      %v3504 = vunpack.c.h.b16 %v2715
      %v3505 = vunpack.c.l.b16 %v2716
      %v3506 = vunpack.c.h.b16 %v2716
      %v3507 = vunpack.c.l.b16 %v2717
      %v3508 = vunpack.c.h.b16 %v2717
      %v3509 = vunpack.c.l.b16 %v2718
      %v3510 = vunpack.c.h.b16 %v2718
      %v3511 = vunpack.c.l.b16 %v2719
      %v3512 = vunpack.c.h.b16 %v2719
      %v3513 = vunpack.c.l.b16 %v2720
      %v3514 = vunpack.c.h.b16 %v2720
      %v3515 = vunpack.c.l.b16 %v2721
      %v3516 = vunpack.c.h.b16 %v2721
      %v3517 = vunpack.c.l.b16 %v2722
      %v3518 = vunpack.c.h.b16 %v2722
      %v3519 = vunpack.c.l.b16 %v2723
      %v3520 = vunpack.c.h.b16 %v2723
      %v3521 = vunpack.c.l.b16 %v2724
      %v3522 = vunpack.c.h.b16 %v2724
      %v3523 = vunpack.c.l.b16 %v2725
      %v3524 = vunpack.c.h.b16 %v2725
      %v3525 = vunpack.c.l.b16 %v2726
      %v3526 = vunpack.c.h.b16 %v2726
      %v3527 = vunpack.c.l.b16 %v2727
      %v3528 = vunpack.c.h.b16 %v2727
      %v3529 = vunpack.c.l.b16 %v2728
      %v3530 = vunpack.c.h.b16 %v2728
      %v3531 = vunpack.c.l.b16 %v2729
      %v3532 = vunpack.c.h.b16 %v2729
      %v3533 = vunpack.c.l.b16 %v2730
      %v3534 = vunpack.c.h.b16 %v2730
      %v3535 = vunpack.c.l.b16 %v2731
      %v3536 = vunpack.c.h.b16 %v2731
      %v3537 = vunpack.c.l.b16 %v2732
      %v3538 = vunpack.c.h.b16 %v2732
      %v3539 = vunpack.c.l.b16 %v2733
      %v3540 = vunpack.c.h.b16 %v2733
      %v3541 = vunpack.c.l.b16 %v2734
      %v3542 = vunpack.c.h.b16 %v2734
      %v3543 = vunpack.c.l.b16 %v2735
      %v3544 = vunpack.c.h.b16 %v2735
      %v3545 = vunpack.c.l.b16 %v2736
      %v3546 = vunpack.c.h.b16 %v2736
      %v3547 = vunpack.c.l.b16 %v2737
      %v3548 = vunpack.c.h.b16 %v2737
      %v3549 = vunpack.c.l.b16 %v2738
      %v3550 = vunpack.c.h.b16 %v2738
      %v3551 = vunpack.c.l.b16 %v2739
      %v3552 = vunpack.c.h.b16 %v2739
      %v3553 = vunpack.c.l.b16 %v2740
      %v3554 = vunpack.c.h.b16 %v2740
      %v3555 = vunpack.c.l.b16 %v2741
      %v3556 = vunpack.c.h.b16 %v2741
      %v3557 = vunpack.c.l.b16 %v2742
      %v3558 = vunpack.c.h.b16 %v2742
      %v3559 = vunpack.c.l.b16 %v2743
      %v3560 = vunpack.c.h.b16 %v2743
      %v3561 = vunpack.c.l.b16 %v2744
      %v3562 = vunpack.c.h.b16 %v2744
      %v3563 = vunpack.c.l.b16 %v2745
      %v3564 = vunpack.c.h.b16 %v2745
      %v3565 = vunpack.c.l.b16 %v2746
      %v3566 = vunpack.c.h.b16 %v2746
      %v3567 = vunpack.c.l.b16 %v2747
      %v3568 = vunpack.c.h.b16 %v2747
      %v3569 = vunpack.c.l.b16 %v2748
      %v3570 = vunpack.c.h.b16 %v2748
      %v3571 = vunpack.c.l.b16 %v2749
      %v3572 = vunpack.c.h.b16 %v2749
      %v3573 = vunpack.c.l.b16 %v2750
      %v3574 = vunpack.c.h.b16 %v2750
      %v3575 = vunpack.c.l.b16 %v2751
      %v3576 = vunpack.c.h.b16 %v2751
      %v3577 = vunpack.c.l.b16 %v2752
      %v3578 = vunpack.c.h.b16 %v2752
      %v3579 = vunpack.c.l.b16 %v2753
      %v3580 = vunpack.c.h.b16 %v2753
      %v3581 = vunpack.c.l.b16 %v2754
      %v3582 = vunpack.c.h.b16 %v2754
      %v3583 = vunpack.c.l.b16 %v2755
      %v3584 = vunpack.c.h.b16 %v2755
      %v3585 = vunpack.c.l.b16 %v2756
      %v3586 = vunpack.c.h.b16 %v2756
      %v3587 = vunpack.c.l.b16 %v2757
      %v3588 = vunpack.c.h.b16 %v2757
      %v3589 = vunpack.c.l.b16 %v2758
      %v3590 = vunpack.c.h.b16 %v2758
      %v3591 = vunpack.c.l.b16 %v2759
      %v3592 = vunpack.c.h.b16 %v2759
      %v3593 = vunpack.c.l.b16 %v2760
      %v3594 = vunpack.c.h.b16 %v2760
      %v3595 = vunpack.c.l.b16 %v2761
      %v3596 = vunpack.c.h.b16 %v2761
      %v3597 = vunpack.c.l.b16 %v2762
      %v3598 = vunpack.c.h.b16 %v2762
      %v3599 = vunpack.c.l.b16 %v2763
      %v3600 = vunpack.c.h.b16 %v2763
      %v3601 = vunpack.c.l.b16 %v2764
      %v3602 = vunpack.c.h.b16 %v2764
      %v3603 = vunpack.c.l.b16 %v2765
      %v3604 = vunpack.c.h.b16 %v2765
      %v3605 = vunpack.c.l.b16 %v2766
      %v3606 = vunpack.c.h.b16 %v2766
      %v3607 = vunpack.c.l.b16 %v2767
      %v3608 = vunpack.c.h.b16 %v2767
      %v3609 = vunpack.c.l.b16 %v2768
      %v3610 = vunpack.c.h.b16 %v2768
      %v3611 = vunpack.c.l.b16 %v2769
      %v3612 = vunpack.c.h.b16 %v2769
      %v3613 = vunpack.c.l.b16 %v2770
      %v3614 = vunpack.c.h.b16 %v2770
      %v3615 = vunpack.c.l.b16 %v2771
      %v3616 = vunpack.c.h.b16 %v2771
      %v3617 = vunpack.c.l.b16 %v2772
      %v3618 = vunpack.c.h.b16 %v2772
      %v3619 = vunpack.c.l.b16 %v2773
      %v3620 = vunpack.c.h.b16 %v2773
      %v3621 = vunpack.c.l.b16 %v2774
      %v3622 = vunpack.c.h.b16 %v2774
      %v3623 = vunpack.c.l.b16 %v2775
      %v3624 = vunpack.c.h.b16 %v2775
      %v3625 = vunpack.c.l.b16 %v2776
      %v3626 = vunpack.c.h.b16 %v2776
      %v3627 = vunpack.c.l.b16 %v2777
      %v3628 = vunpack.c.h.b16 %v2777
      %v3629 = vunpack.c.l.b16 %v2778
      %v3630 = vunpack.c.h.b16 %v2778
      %v3631 = vunpack.c.l.b16 %v2779
      %v3632 = vunpack.c.h.b16 %v2779
      %v3633 = vunpack.c.l.b16 %v2780
      %v3634 = vunpack.c.h.b16 %v2780
      %v3635 = vunpack.c.l.b16 %v2781
      %v3636 = vunpack.c.h.b16 %v2781
      %v3637 = vunpack.c.l.b16 %v2782
      %v3638 = vunpack.c.h.b16 %v2782
      %v3639 = vunpack.c.l.b16 %v2783
      %v3640 = vunpack.c.h.b16 %v2783
      %v3641 = vunpack.c.l.b16 %v2784
      %v3642 = vunpack.c.h.b16 %v2784
      %v3643 = vunpack.c.l.b16 %v2785
      %v3644 = vunpack.c.h.b16 %v2785
      %v3645 = vunpack.c.l.b16 %v2786
      %v3646 = vunpack.c.h.b16 %v2786
      %v3647 = vunpack.c.l.b16 %v2787
      %v3648 = vunpack.c.h.b16 %v2787
      %v3649 = vunpack.c.l.b16 %v2788
      %v3650 = vunpack.c.h.b16 %v2788
      %v3651 = vunpack.c.l.b16 %v2789
      %v3652 = vunpack.c.h.b16 %v2789
      %v3653 = vunpack.c.l.b16 %v2790
      %v3654 = vunpack.c.h.b16 %v2790
      %v3655 = vunpack.c.l.b16 %v2791
      %v3656 = vunpack.c.h.b16 %v2791
      %v3657 = vunpack.c.l.b16 %v2792
      %v3658 = vunpack.c.h.b16 %v2792
      %v3659 = vunpack.c.l.b16 %v2793
      %v3660 = vunpack.c.h.b16 %v2793
      %v3661 = vunpack.c.l.b16 %v2794
      %v3662 = vunpack.c.h.b16 %v2794
      %v3663 = vunpack.c.l.b16 %v2795
      %v3664 = vunpack.c.h.b16 %v2795
      %v3665 = vunpack.c.l.b16 %v2796
      %v3666 = vunpack.c.h.b16 %v2796
      %v3667 = vunpack.c.l.b16 %v2797
      %v3668 = vunpack.c.h.b16 %v2797
      %v3669 = vunpack.c.l.b16 %v2798
      %v3670 = vunpack.c.h.b16 %v2798
      %v3671 = vunpack.c.l.b16 %v2799
      %v3672 = vunpack.c.h.b16 %v2799
      %v3673 = vunpack.c.l.b16 %v2800
      %v3674 = vunpack.c.h.b16 %v2800
      %v3675 = vunpack.c.l.b16 %v2801
      %v3676 = vunpack.c.h.b16 %v2801
      %v3677 = vunpack.c.l.b16 %v2802
      %v3678 = vunpack.c.h.b16 %v2802
      %v3679 = vunpack.c.l.b16 %v2803
      %v3680 = vunpack.c.h.b16 %v2803
      %v3681 = vunpack.c.l.b16 %v2804
      %v3682 = vunpack.c.h.b16 %v2804
      %v3683 = vunpack.c.l.b16 %v2805
      %v3684 = vunpack.c.h.b16 %v2805
      %v3685 = vunpack.c.l.b16 %v2806
      %v3686 = vunpack.c.h.b16 %v2806
      %v3687 = vunpack.c.l.b16 %v2807
      %v3688 = vunpack.c.h.b16 %v2807
      %v3689 = vunpack.c.l.b16 %v2808
      %v3690 = vunpack.c.h.b16 %v2808
      %v3691 = vunpack.c.l.b16 %v2809
      %v3692 = vunpack.c.h.b16 %v2809
      %v3693 = vunpack.c.l.b16 %v2810
      %v3694 = vunpack.c.h.b16 %v2810
      %v3695 = vunpack.c.l.b16 %v2811
      %v3696 = vunpack.c.h.b16 %v2811
      %v3697 = vunpack.c.l.b16 %v2812
      %v3698 = vunpack.c.h.b16 %v2812
      %v3699 = vunpack.c.l.b16 %v2813
      %v3700 = vunpack.c.h.b16 %v2813
      %v3701 = vunpack.c.l.b16 %v2814
      %v3702 = vunpack.c.h.b16 %v2814
      %v3703 = vunpack.c.l.b16 %v2815
      %v3704 = vunpack.c.h.b16 %v2815
      %v3705 = vunpack.c.l.b16 %v2816
      %v3706 = vunpack.c.h.b16 %v2816
      %v3707 = vunpack.c.l.b16 %v2817
      %v3708 = vunpack.c.h.b16 %v2817
      %v3709 = vunpack.c.l.b16 %v2818
      %v3710 = vunpack.c.h.b16 %v2818
      %v3711 = vunpack.c.l.b16 %v2819
      %v3712 = vunpack.c.h.b16 %v2819
      %v3713 = vunpack.c.l.b16 %v2820
      %v3714 = vunpack.c.h.b16 %v2820
      %v3715 = vunpack.c.l.b16 %v2821
      %v3716 = vunpack.c.h.b16 %v2821
      %v3717 = vunpack.c.l.b16 %v2822
      %v3718 = vunpack.c.h.b16 %v2822
      %v3719 = vunpack.c.l.b16 %v2823
      %v3720 = vunpack.c.h.b16 %v2823
      %v3721 = vunpack.c.l.b16 %v2824
      %v3722 = vunpack.c.h.b16 %v2824
      %v3723 = vunpack.c.l.b16 %v2825
      %v3724 = vunpack.c.h.b16 %v2825
      %v3725 = vunpack.c.l.b16 %v2826
      %v3726 = vunpack.c.h.b16 %v2826
      %v3727 = vunpack.c.l.b16 %v2827
      %v3728 = vunpack.c.h.b16 %v2827
      %v3729 = vunpack.c.l.b16 %v2828
      %v3730 = vunpack.c.h.b16 %v2828
      %v3731 = vunpack.c.l.b16 %v2829
      %v3732 = vunpack.c.h.b16 %v2829
      %v3733 = vunpack.c.l.b16 %v2830
      %v3734 = vunpack.c.h.b16 %v2830
      %v3735 = vunpack.c.l.b16 %v2831
      %v3736 = vunpack.c.h.b16 %v2831
      %v3737 = vunpack.c.l.b16 %v2832
      %v3738 = vunpack.c.h.b16 %v2832
      %v3739 = vunpack.c.l.b16 %v2833
      %v3740 = vunpack.c.h.b16 %v2833
      %v3741 = vunpack.c.l.b16 %v2834
      %v3742 = vunpack.c.h.b16 %v2834
      %v3743 = vunpack.c.l.b16 %v2835
      %v3744 = vunpack.c.h.b16 %v2835
      %v3745 = vunpack.c.l.b16 %v2836
      %v3746 = vunpack.c.h.b16 %v2836
      %v3747 = vunpack.c.l.b16 %v2837
      %v3748 = vunpack.c.h.b16 %v2837
      %v3749 = vunpack.c.l.b16 %v2838
      %v3750 = vunpack.c.h.b16 %v2838
      %v3751 = vunpack.c.l.b16 %v2839
      %v3752 = vunpack.c.h.b16 %v2839
      %v3753 = vunpack.c.l.b16 %v2840
      %v3754 = vunpack.c.h.b16 %v2840
      %v3755 = vunpack.c.l.b16 %v2841
      %v3756 = vunpack.c.h.b16 %v2841
      %v3757 = vunpack.c.l.b16 %v2842
      %v3758 = vunpack.c.h.b16 %v2842
      %v3759 = vunpack.c.l.b16 %v2843
      %v3760 = vunpack.c.h.b16 %v2843
      %v3761 = vunpack.c.l.b16 %v2844
      %v3762 = vunpack.c.h.b16 %v2844
      %v3763 = vunpack.c.l.b16 %v2845
      %v3764 = vunpack.c.h.b16 %v2845
      %v3765 = vunpack.c.l.b16 %v2846
      %v3766 = vunpack.c.h.b16 %v2846
      %v3767 = vunpack.c.l.b16 %v2847
      %v3768 = vunpack.c.h.b16 %v2847
      %v3769 = vunpack.c.l.b16 %v2848
      %v3770 = vunpack.c.h.b16 %v2848
      %v3771 = vunpack.c.l.b16 %v2849
      %v3772 = vunpack.c.h.b16 %v2849
      %v3773 = vunpack.c.l.b16 %v2850
      %v3774 = vunpack.c.h.b16 %v2850
      %v3775 = vunpack.c.l.b16 %v2851
      %v3776 = vunpack.c.h.b16 %v2851
      %v3777 = vunpack.c.l.b16 %v2852
      %v3778 = vunpack.c.h.b16 %v2852
      %v3779 = vunpack.c.l.b16 %v2853
      %v3780 = vunpack.c.h.b16 %v2853
      %v3781 = vunpack.c.l.b16 %v2854
      %v3782 = vunpack.c.h.b16 %v2854
      %v3783 = vunpack.c.l.b16 %v2855
      %v3784 = vunpack.c.h.b16 %v2855
      %v3785 = vunpack.c.l.b16 %v2856
      %v3786 = vunpack.c.h.b16 %v2856
      %v3787 = vunpack.c.l.b16 %v2857
      %v3788 = vunpack.c.h.b16 %v2857
      %v3789 = vunpack.c.l.b16 %v2858
      %v3790 = vunpack.c.h.b16 %v2858
      %v3791 = vunpack.c.l.b16 %v2859
      %v3792 = vunpack.c.h.b16 %v2859
      %v3793 = vunpack.c.l.b16 %v2860
      %v3794 = vunpack.c.h.b16 %v2860
      %v3795 = vunpack.c.l.b16 %v2861
      %v3796 = vunpack.c.h.b16 %v2861
      %v3797 = vunpack.c.l.b16 %v2862
      %v3798 = vunpack.c.h.b16 %v2862
      %v3799 = vunpack.c.l.b16 %v2863
      %v3800 = vunpack.c.h.b16 %v2863
      %v3801 = vunpack.c.l.b16 %v2864
      %v3802 = vunpack.c.h.b16 %v2864
      %v3803 = vunpack.c.l.b16 %v2865
      %v3804 = vunpack.c.h.b16 %v2865
      %v3805 = vunpack.c.l.b16 %v2866
      %v3806 = vunpack.c.h.b16 %v2866
      %v3807 = vunpack.c.l.b16 %v2867
      %v3808 = vunpack.c.h.b16 %v2867
      %v3809 = vunpack.c.l.b16 %v2868
      %v3810 = vunpack.c.h.b16 %v2868
      %v3811 = vunpack.c.l.b16 %v2869
      %v3812 = vunpack.c.h.b16 %v2869
      %v3813 = vunpack.c.l.b16 %v2870
      %v3814 = vunpack.c.h.b16 %v2870
      %v3815 = vunpack.c.l.b16 %v2871
      %v3816 = vunpack.c.h.b16 %v2871
      %v3817 = vunpack.c.l.b16 %v2872
      %v3818 = vunpack.c.h.b16 %v2872
      %v3819 = vunpack.c.l.b16 %v2873
      %v3820 = vunpack.c.h.b16 %v2873
      %v3821 = vunpack.c.l.b16 %v2874
      %v3822 = vunpack.c.h.b16 %v2874
      %v3823 = vunpack.c.l.b16 %v2875
      %v3824 = vunpack.c.h.b16 %v2875
      %v3825 = vunpack.c.l.b16 %v2876
      %v3826 = vunpack.c.h.b16 %v2876
      %v3827 = vunpack.c.l.b16 %v2877
      %v3828 = vunpack.c.h.b16 %v2877
      %v3829 = vunpack.c.l.b16 %v2878
      %v3830 = vunpack.c.h.b16 %v2878
      %v3831 = vunpack.c.l.b16 %v2879
      %v3832 = vunpack.c.h.b16 %v2879
      %v3833 = vunpack.c.l.b16 %v2880
      %v3834 = vunpack.c.h.b16 %v2880
      %v3835 = vunpack.c.l.b16 %v2881
      %v3836 = vunpack.c.h.b16 %v2881
      %v3837 = vunpack.c.l.b16 %v2882
      %v3838 = vunpack.c.h.b16 %v2882
      %v3839 = vunpack.c.l.b16 %v2883
      %v3840 = vunpack.c.h.b16 %v2883
      %v3841 = vunpack.c.l.b16 %v2884
      %v3842 = vunpack.c.h.b16 %v2884
      %v3843 = vunpack.c.l.b16 %v2885
      %v3844 = vunpack.c.h.b16 %v2885
      %v3845 = vunpack.c.l.b16 %v2886
      %v3846 = vunpack.c.h.b16 %v2886
      %v3847 = vunpack.c.l.b16 %v2887
      %v3848 = vunpack.c.h.b16 %v2887
      %v3849 = vunpack.c.l.b16 %v2888
      %v3850 = vunpack.c.h.b16 %v2888
      %v3851 = vunpack.c.l.b16 %v2889
      %v3852 = vunpack.c.h.b16 %v2889
      %v3853 = vunpack.c.l.b16 %v2890
      %v3854 = vunpack.c.h.b16 %v2890
      %v3855 = vunpack.c.l.b16 %v2891
      %v3856 = vunpack.c.h.b16 %v2891
      %v3857 = vunpack.c.l.b16 %v2892
      %v3858 = vunpack.c.h.b16 %v2892
      %v3859 = vunpack.c.l.b16 %v2893
      %v3860 = vunpack.c.h.b16 %v2893
      %v3861 = vunpack.c.l.b16 %v2894
      %v3862 = vunpack.c.h.b16 %v2894
      %v3863 = vunpack.c.l.b16 %v2895
      %v3864 = vunpack.c.h.b16 %v2895
      %v3865 = vunpack.c.l.b16 %v2896
      %v3866 = vunpack.c.h.b16 %v2896
      %v3867 = vunpack.c.l.b16 %v2897
      %v3868 = vunpack.c.h.b16 %v2897
      %v3869 = vunpack.c.l.b16 %v2898
      %v3870 = vunpack.c.h.b16 %v2898
      %v3871 = vunpack.c.l.b16 %v2899
      %v3872 = vunpack.c.h.b16 %v2899
      %v3873 = vunpack.c.l.b16 %v2900
      %v3874 = vunpack.c.h.b16 %v2900
      %v3875 = vunpack.c.l.b16 %v2901
      %v3876 = vunpack.c.h.b16 %v2901
      %v3877 = vunpack.c.l.b16 %v2902
      %v3878 = vunpack.c.h.b16 %v2902
      %v3879 = vunpack.c.l.b16 %v2903
      %v3880 = vunpack.c.h.b16 %v2903
      %v3881 = vunpack.c.l.b16 %v2904
      %v3882 = vunpack.c.h.b16 %v2904
      %v3883 = vunpack.c.l.b16 %v2905
      %v3884 = vunpack.c.h.b16 %v2905
      %v3885 = vunpack.c.l.b16 %v2906
      %v3886 = vunpack.c.h.b16 %v2906
      %v3887 = vunpack.c.l.b16 %v2907
      %v3888 = vunpack.c.h.b16 %v2907
      %v3889 = vunpack.c.l.b16 %v2908
      %v3890 = vunpack.c.h.b16 %v2908
      %v3891 = vunpack.c.l.b16 %v2909
      %v3892 = vunpack.c.h.b16 %v2909
      %v3893 = vunpack.c.l.b16 %v2910
      %v3894 = vunpack.c.h.b16 %v2910
      %v3895 = vunpack.c.l.b16 %v2911
      %v3896 = vunpack.c.h.b16 %v2911
      %v3897 = vunpack.c.l.b16 %v2912
      %v3898 = vunpack.c.h.b16 %v2912
      %v3899 = vunpack.c.l.b16 %v2913
      %v3900 = vunpack.c.h.b16 %v2913
      %v3901 = vunpack.c.l.b16 %v2914
      %v3902 = vunpack.c.h.b16 %v2914
      %v3903 = vunpack.c.l.b16 %v2915
      %v3904 = vunpack.c.h.b16 %v2915
      %v3905 = vunpack.c.l.b16 %v2916
      %v3906 = vunpack.c.h.b16 %v2916
      %v3907 = vunpack.c.l.b16 %v2917
      %v3908 = vunpack.c.h.b16 %v2917
      %v3909 = vunpack.c.l.b16 %v2918
      %v3910 = vunpack.c.h.b16 %v2918
      %v3911 = vunpack.c.l.b16 %v2919
      %v3912 = vunpack.c.h.b16 %v2919
      %v3913 = vunpack.c.l.b16 %v2920
      %v3914 = vunpack.c.h.b16 %v2920
      %v3915 = vunpack.c.l.b16 %v2921
      %v3916 = vunpack.c.h.b16 %v2921
      %v3917 = vunpack.c.l.b16 %v2922
      %v3918 = vunpack.c.h.b16 %v2922
      %v3919 = vunpack.c.l.b16 %v2923
      %v3920 = vunpack.c.h.b16 %v2923
      %v3921 = vunpack.c.l.b16 %v2924
      %v3922 = vunpack.c.h.b16 %v2924
      %v3923 = vunpack.c.l.b16 %v2925
      %v3924 = vunpack.c.h.b16 %v2925
      %v3925 = vunpack.c.l.b16 %v2926
      %v3926 = vunpack.c.h.b16 %v2926
      %v3927 = vunpack.c.l.b16 %v2927
      %v3928 = vunpack.c.h.b16 %v2927
      %v3929 = vunpack.c.l.b16 %v2928
      %v3930 = vunpack.c.h.b16 %v2928
      %v3931 = vunpack.c.l.b16 %v2929
      %v3932 = vunpack.c.h.b16 %v2929
      %v3933 = vunpack.c.l.b16 %v2930
      %v3934 = vunpack.c.h.b16 %v2930
      %v3935 = vunpack.c.l.b16 %v2931
      %v3936 = vunpack.c.h.b16 %v2931
      %v3937 = vunpack.c.l.b16 %v2932
      %v3938 = vunpack.c.h.b16 %v2932
      %v3939 = vunpack.c.l.b16 %v2933
      %v3940 = vunpack.c.h.b16 %v2933
      %v3941 = vunpack.c.l.b16 %v2934
      %v3942 = vunpack.c.h.b16 %v2934
      %v3943 = vunpack.c.l.b16 %v2935
      %v3944 = vunpack.c.h.b16 %v2935
      %v3945 = vunpack.c.l.b16 %v2936
      %v3946 = vunpack.c.h.b16 %v2936
      %v3947 = vunpack.c.l.b16 %v2937
      %v3948 = vunpack.c.h.b16 %v2937
      %v3949 = vunpack.c.l.b16 %v2938
      %v3950 = vunpack.c.h.b16 %v2938
      %v3951 = vunpack.c.l.b16 %v2939
      %v3952 = vunpack.c.h.b16 %v2939
      %v3953 = vunpack.c.l.b16 %v2940
      %v3954 = vunpack.c.h.b16 %v2940
      %v3955 = vunpack.c.l.b16 %v2941
      %v3956 = vunpack.c.h.b16 %v2941
      %v3957 = vunpack.c.l.b16 %v2942
      %v3958 = vunpack.c.h.b16 %v2942
      %v3959 = vunpack.c.l.b16 %v2943
      %v3960 = vunpack.c.h.b16 %v2943
      %v3961 = vunpack.c.l.b16 %v2944
      %v3962 = vunpack.c.h.b16 %v2944
      %v3963 = vunpack.c.l.b16 %v2945
      %v3964 = vunpack.c.h.b16 %v2945
      %v3965 = vunpack.c.l.b16 %v2946
      %v3966 = vunpack.c.h.b16 %v2946
      %v3967 = vunpack.c.l.b16 %v2947
      %v3968 = vunpack.c.h.b16 %v2947
      %v3969 = vunpack.c.l.b16 %v2948
      %v3970 = vunpack.c.h.b16 %v2948
      %v3971 = vunpack.c.l.b16 %v2949
      %v3972 = vunpack.c.h.b16 %v2949
      %v3973 = vunpack.c.l.b16 %v2950
      %v3974 = vunpack.c.h.b16 %v2950
      %v3975 = vunpack.c.l.b16 %v2951
      %v3976 = vunpack.c.h.b16 %v2951
      %v3977 = vunpack.c.l.b16 %v2952
      %v3978 = vunpack.c.h.b16 %v2952
      %v3979 = vunpack.c.l.b16 %v2953
      %v3980 = vunpack.c.h.b16 %v2953
      %v3981 = vunpack.c.l.b16 %v2954
      %v3982 = vunpack.c.h.b16 %v2954
      %v3983 = vunpack.c.l.b16 %v2955
      %v3984 = vunpack.c.h.b16 %v2955
      %v3985 = vunpack.c.l.b16 %v2956
      %v3986 = vunpack.c.h.b16 %v2956
      %v3987 = vunpack.c.l.b16 %v2957
      %v3988 = vunpack.c.h.b16 %v2957
      %v3989 = vunpack.c.l.b16 %v2958
      %v3990 = vunpack.c.h.b16 %v2958
      %v3991 = vunpack.c.l.b16 %v2959
      %v3992 = vunpack.c.h.b16 %v2959
      %v3993 = vunpack.c.l.b16 %v2960
      %v3994 = vunpack.c.h.b16 %v2960
      %v3995 = vunpack.c.l.b16 %v2961
      %v3996 = vunpack.c.h.b16 %v2961
      %v3997 = vunpack.c.l.b16 %v2962
      %v3998 = vunpack.c.h.b16 %v2962
      %v3999 = vunpack.c.l.b16 %v2963
      %v4000 = vunpack.c.h.b16 %v2963
      %v4001 = vunpack.c.l.b16 %v2964
      %v4002 = vunpack.c.h.b16 %v2964
      %v4003 = vunpack.c.l.b16 %v2965
      %v4004 = vunpack.c.h.b16 %v2965
      %v4005 = vunpack.c.l.b16 %v2966
      %v4006 = vunpack.c.h.b16 %v2966
      %v4007 = vunpack.c.l.b16 %v2967
      %v4008 = vunpack.c.h.b16 %v2967
      %v4009 = vunpack.c.l.b16 %v2968
      %v4010 = vunpack.c.h.b16 %v2968
      %v4011 = vunpack.c.l.b16 %v2969
      %v4012 = vunpack.c.h.b16 %v2969
      %v4013 = vunpack.c.l.b16 %v2970
      %v4014 = vunpack.c.h.b16 %v2970
      %v4015 = vunpack.c.l.b16 %v2971
      %v4016 = vunpack.c.h.b16 %v2971
      %v4017 = vunpack.c.l.b16 %v2972
      %v4018 = vunpack.c.h.b16 %v2972
      %v4019 = vunpack.c.l.b16 %v2973
      %v4020 = vunpack.c.h.b16 %v2973
      %v4021 = vunpack.c.l.b16 %v2974
      %v4022 = vunpack.c.h.b16 %v2974
      %v4023 = vunpack.c.l.b16 %v2975
      %v4024 = vunpack.c.h.b16 %v2975
      %v4025 = vunpack.c.l.b16 %v2976
      %v4026 = vunpack.c.h.b16 %v2976
      %v4027 = vunpack.c.l.b16 %v2977
      %v4028 = vunpack.c.h.b16 %v2977
      %v4029 = vunpack.c.l.b16 %v2978
      %v4030 = vunpack.c.h.b16 %v2978
      %v4031 = vunpack.c.l.b16 %v2979
      %v4032 = vunpack.c.h.b16 %v2979
      %v4033 = vpack.c.b16 %v3397, %v3393
      %v4034 = vpack.c.b16 %v3398, %v3394
      %v4035 = vpack.c.b16 %v3399, %v3395
      %v4036 = vpack.c.b16 %v3400, %v3396
      %v4037 = vpack.c.b16 %v3405, %v3401
      %v4038 = vpack.c.b16 %v3406, %v3402
      %v4039 = vpack.c.b16 %v3407, %v3403
      %v4040 = vpack.c.b16 %v3408, %v3404
      %v4041 = vpack.c.b16 %v3413, %v3409
      %v4042 = vpack.c.b16 %v3414, %v3410
      %v4043 = vpack.c.b16 %v3415, %v3411
      %v4044 = vpack.c.b16 %v3416, %v3412
      %v4045 = vpack.c.b16 %v3421, %v3417
      %v4046 = vpack.c.b16 %v3422, %v3418
      %v4047 = vpack.c.b16 %v3423, %v3419
      %v4048 = vpack.c.b16 %v3424, %v3420
      %v4049 = vpack.c.b16 %v3429, %v3425
      %v4050 = vpack.c.b16 %v3430, %v3426
      %v4051 = vpack.c.b16 %v3431, %v3427
      %v4052 = vpack.c.b16 %v3432, %v3428
      %v4053 = vpack.c.b16 %v3437, %v3433
      %v4054 = vpack.c.b16 %v3438, %v3434
      %v4055 = vpack.c.b16 %v3439, %v3435
      %v4056 = vpack.c.b16 %v3440, %v3436
      %v4057 = vpack.c.b16 %v3445, %v3441
      %v4058 = vpack.c.b16 %v3446, %v3442
      %v4059 = vpack.c.b16 %v3447, %v3443
      %v4060 = vpack.c.b16 %v3448, %v3444
      %v4061 = vpack.c.b16 %v3453, %v3449
      %v4062 = vpack.c.b16 %v3454, %v3450
      %v4063 = vpack.c.b16 %v3455, %v3451
      %v4064 = vpack.c.b16 %v3456, %v3452
      %v4065 = vpack.c.b16 %v3461, %v3457
      %v4066 = vpack.c.b16 %v3462, %v3458
      %v4067 = vpack.c.b16 %v3463, %v3459
      %v4068 = vpack.c.b16 %v3464, %v3460
      %v4069 = vpack.c.b16 %v3469, %v3465
      %v4070 = vpack.c.b16 %v3470, %v3466
      %v4071 = vpack.c.b16 %v3471, %v3467
      %v4072 = vpack.c.b16 %v3472, %v3468
      %v4073 = vpack.c.b16 %v3477, %v3473
      %v4074 = vpack.c.b16 %v3478, %v3474
      %v4075 = vpack.c.b16 %v3479, %v3475
      %v4076 = vpack.c.b16 %v3480, %v3476
      %v4077 = vpack.c.b16 %v3485, %v3481
      %v4078 = vpack.c.b16 %v3486, %v3482
      %v4079 = vpack.c.b16 %v3487, %v3483
      %v4080 = vpack.c.b16 %v3488, %v3484
      %v4081 = vpack.c.b16 %v3493, %v3489
      %v4082 = vpack.c.b16 %v3494, %v3490
      %v4083 = vpack.c.b16 %v3495, %v3491
      %v4084 = vpack.c.b16 %v3496, %v3492
      %v4085 = vpack.c.b16 %v3501, %v3497
      %v4086 = vpack.c.b16 %v3502, %v3498
      %v4087 = vpack.c.b16 %v3503, %v3499
      %v4088 = vpack.c.b16 %v3504, %v3500
      %v4089 = vpack.c.b16 %v3509, %v3505
      %v4090 = vpack.c.b16 %v3510, %v3506
      %v4091 = vpack.c.b16 %v3511, %v3507
      %v4092 = vpack.c.b16 %v3512, %v3508
      %v4093 = vpack.c.b16 %v3517, %v3513
      %v4094 = vpack.c.b16 %v3518, %v3514
      %v4095 = vpack.c.b16 %v3519, %v3515
      %v4096 = vpack.c.b16 %v3520, %v3516
      %v4097 = vpack.c.b16 %v3525, %v3521
      %v4098 = vpack.c.b16 %v3526, %v3522
      %v4099 = vpack.c.b16 %v3527, %v3523
      %v4100 = vpack.c.b16 %v3528, %v3524
      %v4101 = vpack.c.b16 %v3533, %v3529
      %v4102 = vpack.c.b16 %v3534, %v3530
      %v4103 = vpack.c.b16 %v3535, %v3531
      %v4104 = vpack.c.b16 %v3536, %v3532
      %v4105 = vpack.c.b16 %v3541, %v3537
      %v4106 = vpack.c.b16 %v3542, %v3538
      %v4107 = vpack.c.b16 %v3543, %v3539
      %v4108 = vpack.c.b16 %v3544, %v3540
      %v4109 = vpack.c.b16 %v3549, %v3545
      %v4110 = vpack.c.b16 %v3550, %v3546
      %v4111 = vpack.c.b16 %v3551, %v3547
      %v4112 = vpack.c.b16 %v3552, %v3548
      %v4113 = vpack.c.b16 %v3557, %v3553
      %v4114 = vpack.c.b16 %v3558, %v3554
      %v4115 = vpack.c.b16 %v3559, %v3555
      %v4116 = vpack.c.b16 %v3560, %v3556
      %v4117 = vpack.c.b16 %v3565, %v3561
      %v4118 = vpack.c.b16 %v3566, %v3562
      %v4119 = vpack.c.b16 %v3567, %v3563
      %v4120 = vpack.c.b16 %v3568, %v3564
      %v4121 = vpack.c.b16 %v3573, %v3569
      %v4122 = vpack.c.b16 %v3574, %v3570
      %v4123 = vpack.c.b16 %v3575, %v3571
      %v4124 = vpack.c.b16 %v3576, %v3572
      %v4125 = vpack.c.b16 %v3581, %v3577
      %v4126 = vpack.c.b16 %v3582, %v3578
      %v4127 = vpack.c.b16 %v3583, %v3579
      %v4128 = vpack.c.b16 %v3584, %v3580
      %v4129 = vpack.c.b16 %v3589, %v3585
      %v4130 = vpack.c.b16 %v3590, %v3586
      %v4131 = vpack.c.b16 %v3591, %v3587
      %v4132 = vpack.c.b16 %v3592, %v3588
      %v4133 = vpack.c.b16 %v3597, %v3593
      %v4134 = vpack.c.b16 %v3598, %v3594
      %v4135 = vpack.c.b16 %v3599, %v3595
      %v4136 = vpack.c.b16 %v3600, %v3596
      %v4137 = vpack.c.b16 %v3605, %v3601
      %v4138 = vpack.c.b16 %v3606, %v3602
      %v4139 = vpack.c.b16 %v3607, %v3603
      %v4140 = vpack.c.b16 %v3608, %v3604
      %v4141 = vpack.c.b16 %v3613, %v3609
      %v4142 = vpack.c.b16 %v3614, %v3610
      %v4143 = vpack.c.b16 %v3615, %v3611
      %v4144 = vpack.c.b16 %v3616, %v3612
      %v4145 = vpack.c.b16 %v3621, %v3617
      %v4146 = vpack.c.b16 %v3622, %v3618
      %v4147 = vpack.c.b16 %v3623, %v3619
      %v4148 = vpack.c.b16 %v3624, %v3620
      %v4149 = vpack.c.b16 %v3629, %v3625
      %v4150 = vpack.c.b16 %v3630, %v3626
      %v4151 = vpack.c.b16 %v3631, %v3627
      %v4152 = vpack.c.b16 %v3632, %v3628
      %v4153 = vpack.c.b16 %v3637, %v3633
      %v4154 = vpack.c.b16 %v3638, %v3634
      %v4155 = vpack.c.b16 %v3639, %v3635
      %v4156 = vpack.c.b16 %v3640, %v3636
      %v4157 = vpack.c.b16 %v3645, %v3641
      %v4158 = vpack.c.b16 %v3646, %v3642
      %v4159 = vpack.c.b16 %v3647, %v3643
      %v4160 = vpack.c.b16 %v3648, %v3644
      %v4161 = vpack.c.b16 %v3653, %v3649
      %v4162 = vpack.c.b16 %v3654, %v3650
      %v4163 = vpack.c.b16 %v3655, %v3651
      %v4164 = vpack.c.b16 %v3656, %v3652
      %v4165 = vpack.c.b16 %v3661, %v3657
      %v4166 = vpack.c.b16 %v3662, %v3658
      %v4167 = vpack.c.b16 %v3663, %v3659
      %v4168 = vpack.c.b16 %v3664, %v3660
      %v4169 = vpack.c.b16 %v3669, %v3665
      %v4170 = vpack.c.b16 %v3670, %v3666
      %v4171 = vpack.c.b16 %v3671, %v3667
      %v4172 = vpack.c.b16 %v3672, %v3668
      %v4173 = vpack.c.b16 %v3677, %v3673
      %v4174 = vpack.c.b16 %v3678, %v3674
      %v4175 = vpack.c.b16 %v3679, %v3675
      %v4176 = vpack.c.b16 %v3680, %v3676
      %v4177 = vpack.c.b16 %v3685, %v3681
      %v4178 = vpack.c.b16 %v3686, %v3682
      %v4179 = vpack.c.b16 %v3687, %v3683
      %v4180 = vpack.c.b16 %v3688, %v3684
      %v4181 = vpack.c.b16 %v3693, %v3689
      %v4182 = vpack.c.b16 %v3694, %v3690
      %v4183 = vpack.c.b16 %v3695, %v3691
      %v4184 = vpack.c.b16 %v3696, %v3692
      %v4185 = vpack.c.b16 %v3701, %v3697
      %v4186 = vpack.c.b16 %v3702, %v3698
      %v4187 = vpack.c.b16 %v3703, %v3699
      %v4188 = vpack.c.b16 %v3704, %v3700
      %v4189 = vpack.c.b16 %v3709, %v3705
      %v4190 = vpack.c.b16 %v3710, %v3706
      %v4191 = vpack.c.b16 %v3711, %v3707
      %v4192 = vpack.c.b16 %v3712, %v3708
      %v4193 = vpack.c.b16 %v3717, %v3713
      %v4194 = vpack.c.b16 %v3718, %v3714
      %v4195 = vpack.c.b16 %v3719, %v3715
      %v4196 = vpack.c.b16 %v3720, %v3716
      %v4197 = vpack.c.b16 %v3725, %v3721
      %v4198 = vpack.c.b16 %v3726, %v3722
      %v4199 = vpack.c.b16 %v3727, %v3723
      %v4200 = vpack.c.b16 %v3728, %v3724
      %v4201 = vpack.c.b16 %v3733, %v3729
      %v4202 = vpack.c.b16 %v3734, %v3730
      %v4203 = vpack.c.b16 %v3735, %v3731
      %v4204 = vpack.c.b16 %v3736, %v3732
      %v4205 = vpack.c.b16 %v3741, %v3737
      %v4206 = vpack.c.b16 %v3742, %v3738
      %v4207 = vpack.c.b16 %v3743, %v3739
      %v4208 = vpack.c.b16 %v3744, %v3740
      %v4209 = vpack.c.b16 %v3749, %v3745
      %v4210 = vpack.c.b16 %v3750, %v3746
      %v4211 = vpack.c.b16 %v3751, %v3747
      %v4212 = vpack.c.b16 %v3752, %v3748
      %v4213 = vpack.c.b16 %v3757, %v3753
      %v4214 = vpack.c.b16 %v3758, %v3754
      %v4215 = vpack.c.b16 %v3759, %v3755
      %v4216 = vpack.c.b16 %v3760, %v3756
      %v4217 = vpack.c.b16 %v3765, %v3761
      %v4218 = vpack.c.b16 %v3766, %v3762
      %v4219 = vpack.c.b16 %v3767, %v3763
      %v4220 = vpack.c.b16 %v3768, %v3764
      %v4221 = vpack.c.b16 %v3773, %v3769
      %v4222 = vpack.c.b16 %v3774, %v3770
      %v4223 = vpack.c.b16 %v3775, %v3771
      %v4224 = vpack.c.b16 %v3776, %v3772
      %v4225 = vpack.c.b16 %v3781, %v3777
      %v4226 = vpack.c.b16 %v3782, %v3778
      %v4227 = vpack.c.b16 %v3783, %v3779
      %v4228 = vpack.c.b16 %v3784, %v3780
      %v4229 = vpack.c.b16 %v3789, %v3785
      %v4230 = vpack.c.b16 %v3790, %v3786
      %v4231 = vpack.c.b16 %v3791, %v3787
      %v4232 = vpack.c.b16 %v3792, %v3788
      %v4233 = vpack.c.b16 %v3797, %v3793
      %v4234 = vpack.c.b16 %v3798, %v3794
      %v4235 = vpack.c.b16 %v3799, %v3795
      %v4236 = vpack.c.b16 %v3800, %v3796
      %v4237 = vpack.c.b16 %v3805, %v3801
      %v4238 = vpack.c.b16 %v3806, %v3802
      %v4239 = vpack.c.b16 %v3807, %v3803
      %v4240 = vpack.c.b16 %v3808, %v3804
      %v4241 = vpack.c.b16 %v3813, %v3809
      %v4242 = vpack.c.b16 %v3814, %v3810
      %v4243 = vpack.c.b16 %v3815, %v3811
      %v4244 = vpack.c.b16 %v3816, %v3812
      %v4245 = vpack.c.b16 %v3821, %v3817
      %v4246 = vpack.c.b16 %v3822, %v3818
      %v4247 = vpack.c.b16 %v3823, %v3819
      %v4248 = vpack.c.b16 %v3824, %v3820
      %v4249 = vpack.c.b16 %v3829, %v3825
      %v4250 = vpack.c.b16 %v3830, %v3826
      %v4251 = vpack.c.b16 %v3831, %v3827
      %v4252 = vpack.c.b16 %v3832, %v3828
      %v4253 = vpack.c.b16 %v3837, %v3833
      %v4254 = vpack.c.b16 %v3838, %v3834
      %v4255 = vpack.c.b16 %v3839, %v3835
      %v4256 = vpack.c.b16 %v3840, %v3836
      %v4257 = vpack.c.b16 %v3845, %v3841
      %v4258 = vpack.c.b16 %v3846, %v3842
      %v4259 = vpack.c.b16 %v3847, %v3843
      %v4260 = vpack.c.b16 %v3848, %v3844
      %v4261 = vpack.c.b16 %v3853, %v3849
      %v4262 = vpack.c.b16 %v3854, %v3850
      %v4263 = vpack.c.b16 %v3855, %v3851
      %v4264 = vpack.c.b16 %v3856, %v3852
      %v4265 = vpack.c.b16 %v3861, %v3857
      %v4266 = vpack.c.b16 %v3862, %v3858
      %v4267 = vpack.c.b16 %v3863, %v3859
      %v4268 = vpack.c.b16 %v3864, %v3860
      %v4269 = vpack.c.b16 %v3869, %v3865
      %v4270 = vpack.c.b16 %v3870, %v3866
      %v4271 = vpack.c.b16 %v3871, %v3867
      %v4272 = vpack.c.b16 %v3872, %v3868
      %v4273 = vpack.c.b16 %v3877, %v3873
      %v4274 = vpack.c.b16 %v3878, %v3874
      %v4275 = vpack.c.b16 %v3879, %v3875
      %v4276 = vpack.c.b16 %v3880, %v3876
      %v4277 = vpack.c.b16 %v3885, %v3881
      %v4278 = vpack.c.b16 %v3886, %v3882
      %v4279 = vpack.c.b16 %v3887, %v3883
      %v4280 = vpack.c.b16 %v3888, %v3884
      %v4281 = vpack.c.b16 %v3893, %v3889
      %v4282 = vpack.c.b16 %v3894, %v3890
      %v4283 = vpack.c.b16 %v3895, %v3891
      %v4284 = vpack.c.b16 %v3896, %v3892
      %v4285 = vpack.c.b16 %v3901, %v3897
      %v4286 = vpack.c.b16 %v3902, %v3898
      %v4287 = vpack.c.b16 %v3903, %v3899
      %v4288 = vpack.c.b16 %v3904, %v3900
      %v4289 = vpack.c.b16 %v3909, %v3905
      %v4290 = vpack.c.b16 %v3910, %v3906
      %v4291 = vpack.c.b16 %v3911, %v3907
      %v4292 = vpack.c.b16 %v3912, %v3908
      %v4293 = vpack.c.b16 %v3917, %v3913
      %v4294 = vpack.c.b16 %v3918, %v3914
      %v4295 = vpack.c.b16 %v3919, %v3915
      %v4296 = vpack.c.b16 %v3920, %v3916
      %v4297 = vpack.c.b16 %v3925, %v3921
      %v4298 = vpack.c.b16 %v3926, %v3922
      %v4299 = vpack.c.b16 %v3927, %v3923
      %v4300 = vpack.c.b16 %v3928, %v3924
      %v4301 = vpack.c.b16 %v3933, %v3929
      %v4302 = vpack.c.b16 %v3934, %v3930
      %v4303 = vpack.c.b16 %v3935, %v3931
      %v4304 = vpack.c.b16 %v3936, %v3932
      %v4305 = vpack.c.b16 %v3941, %v3937
      %v4306 = vpack.c.b16 %v3942, %v3938
      %v4307 = vpack.c.b16 %v3943, %v3939
      %v4308 = vpack.c.b16 %v3944, %v3940
      %v4309 = vpack.c.b16 %v3949, %v3945
      %v4310 = vpack.c.b16 %v3950, %v3946
      %v4311 = vpack.c.b16 %v3951, %v3947
      %v4312 = vpack.c.b16 %v3952, %v3948
      %v4313 = vpack.c.b16 %v3957, %v3953
      %v4314 = vpack.c.b16 %v3958, %v3954
      %v4315 = vpack.c.b16 %v3959, %v3955
      %v4316 = vpack.c.b16 %v3960, %v3956
      %v4317 = vpack.c.b16 %v3965, %v3961
      %v4318 = vpack.c.b16 %v3966, %v3962
      %v4319 = vpack.c.b16 %v3967, %v3963
      %v4320 = vpack.c.b16 %v3968, %v3964
      %v4321 = vpack.c.b16 %v3973, %v3969
      %v4322 = vpack.c.b16 %v3974, %v3970
      %v4323 = vpack.c.b16 %v3975, %v3971
      %v4324 = vpack.c.b16 %v3976, %v3972
      %v4325 = vpack.c.b16 %v3981, %v3977
      %v4326 = vpack.c.b16 %v3982, %v3978
      %v4327 = vpack.c.b16 %v3983, %v3979
      %v4328 = vpack.c.b16 %v3984, %v3980
      %v4329 = vpack.c.b16 %v3989, %v3985
      %v4330 = vpack.c.b16 %v3990, %v3986
      %v4331 = vpack.c.b16 %v3991, %v3987
      %v4332 = vpack.c.b16 %v3992, %v3988
      %v4333 = vpack.c.b16 %v3997, %v3993
      %v4334 = vpack.c.b16 %v3998, %v3994
      %v4335 = vpack.c.b16 %v3999, %v3995
      %v4336 = vpack.c.b16 %v4000, %v3996
      %v4337 = vpack.c.b16 %v4005, %v4001
      %v4338 = vpack.c.b16 %v4006, %v4002
      %v4339 = vpack.c.b16 %v4007, %v4003
      %v4340 = vpack.c.b16 %v4008, %v4004
      %v4341 = vpack.c.b16 %v4013, %v4009
      %v4342 = vpack.c.b16 %v4014, %v4010
      %v4343 = vpack.c.b16 %v4015, %v4011
      %v4344 = vpack.c.b16 %v4016, %v4012
      %v4345 = vpack.c.b16 %v4021, %v4017
      %v4346 = vpack.c.b16 %v4022, %v4018
      %v4347 = vpack.c.b16 %v4023, %v4019
      %v4348 = vpack.c.b16 %v4024, %v4020
      %v4349 = vpack.c.b16 %v4029, %v4025
      %v4350 = vpack.c.b16 %v4030, %v4026
      %v4351 = vpack.c.b16 %v4031, %v4027
      %v4352 = vpack.c.b16 %v4032, %v4028
      %4673 = vmatprep.subr.bf16.mxu0 %v4034
      %4674 = vmatpush1.bf16.msra.mxu0 %v4033
      %4675 = vmatprep.subr.bf16.mxu0 %v4038
      %4676 = vmatpush1.bf16.msra.mxu0 %v4037
      %4677 = vmatprep.subr.bf16.mxu0 %v4042
      %4678 = vmatpush1.bf16.msra.mxu0 %v4041
      %4679 = vmatprep.subr.bf16.mxu0 %v4046
      %4680 = vmatpush1.bf16.msra.mxu0 %v4045
      %4681 = vmatprep.subr.bf16.mxu0 %v4050
      %4682 = vmatpush1.bf16.msra.mxu0 %v4049
      %4683 = vmatprep.subr.bf16.mxu0 %v4054
      %4684 = vmatpush1.bf16.msra.mxu0 %v4053
      %4685 = vmatprep.subr.bf16.mxu0 %v4058
      %4686 = vmatpush1.bf16.msra.mxu0 %v4057
      %4687 = vmatprep.subr.bf16.mxu0 %v4062
      %4688 = vmatpush1.bf16.msra.mxu0 %v4061
      %4689 = vmatprep.subr.bf16.mxu0 %v4066
      %4690 = vmatpush1.bf16.msra.mxu0 %v4065
      %4691 = vmatprep.subr.bf16.mxu0 %v4070
      %4692 = vmatpush1.bf16.msra.mxu0 %v4069
      %4693 = vmatprep.subr.bf16.mxu0 %v4074
      %4694 = vmatpush1.bf16.msra.mxu0 %v4073
      %4695 = vmatprep.subr.bf16.mxu0 %v4078
      %4696 = vmatpush1.bf16.msra.mxu0 %v4077
      %4697 = vmatprep.subr.bf16.mxu0 %v4082
      %4698 = vmatpush1.bf16.msra.mxu0 %v4081
      %4699 = vmatprep.subr.bf16.mxu0 %v4086
      %4700 = vmatpush1.bf16.msra.mxu0 %v4085
      %4701 = vmatprep.subr.bf16.mxu0 %v4090
      %4702 = vmatpush1.bf16.msra.mxu0 %v4089
      %4703 = vmatprep.subr.bf16.mxu0 %v4094
      %4704 = vmatpush1.bf16.msra.mxu0 %v4093
      %4705 = vmatprep.mubr.bf16.mxu0 %v3054
      %4706 = vmatmul.mubr.bf16.gmra.mrb[0].mxu0 %v3053
      %v4707 = vpop.f32.mrb[0].mxu0
      %v4708 = vadd.f32 %v2985, %v4707
      %v4709 = vpop.f32.mrb[0].mxu0
      %v4710 = vadd.f32 %v2989, %v4709
      %v4711 = vpop.f32.mrb[0].mxu0
      %v4712 = vpop.f32.mrb[0].mxu0
      %4713 = vdwg.mxu0
      %4714 = vmatprep.subr.bf16.mxu0 %v4098
      %4715 = vmatpush1.bf16.msra.mxu0 %v4097
      %4716 = vmatprep.subr.bf16.mxu0 %v4102
      %4717 = vmatpush1.bf16.msra.mxu0 %v4101
      %4718 = vmatprep.subr.bf16.mxu0 %v4106
      %4719 = vmatpush1.bf16.msra.mxu0 %v4105
      %4720 = vmatprep.subr.bf16.mxu0 %v4110
      %4721 = vmatpush1.bf16.msra.mxu0 %v4109
      %4722 = vmatprep.subr.bf16.mxu0 %v4114
      %4723 = vmatpush1.bf16.msra.mxu0 %v4113
      %4724 = vmatprep.subr.bf16.mxu0 %v4118
      %4725 = vmatpush1.bf16.msra.mxu0 %v4117
      %4726 = vmatprep.subr.bf16.mxu0 %v4122
      %4727 = vmatpush1.bf16.msra.mxu0 %v4121
      %4728 = vmatprep.subr.bf16.mxu0 %v4126
      %4729 = vmatpush1.bf16.msra.mxu0 %v4125
      %4730 = vmatprep.subr.bf16.mxu0 %v4130
      %4731 = vmatpush1.bf16.msra.mxu0 %v4129
      %4732 = vmatprep.subr.bf16.mxu0 %v4134
      %4733 = vmatpush1.bf16.msra.mxu0 %v4133
      %4734 = vmatprep.subr.bf16.mxu0 %v4138
      %4735 = vmatpush1.bf16.msra.mxu0 %v4137
      %4736 = vmatprep.subr.bf16.mxu0 %v4142
      %4737 = vmatpush1.bf16.msra.mxu0 %v4141
      %4738 = vmatprep.subr.bf16.mxu0 %v4146
      %4739 = vmatpush1.bf16.msra.mxu0 %v4145
      %4740 = vmatprep.subr.bf16.mxu0 %v4150
      %4741 = vmatpush1.bf16.msra.mxu0 %v4149
      %4742 = vmatprep.subr.bf16.mxu0 %v4154
      %4743 = vmatpush1.bf16.msra.mxu0 %v4153
      %4744 = vmatprep.subr.bf16.mxu0 %v4158
      %4745 = vmatpush1.bf16.msra.mxu0 %v4157
      %4746 = vmatprep.mubr.bf16.mxu0 %v3056
      %4747 = vmatmul.mubr.bf16.gmra.mrb[0].mxu0 %v3055
      %v4748 = vpop.f32.mrb[0].mxu0
      %v4749 = vadd.f32 %v4708, %v4748
      %v4750 = vpop.f32.mrb[0].mxu0
      %v4751 = vadd.f32 %v4710, %v4750
      %v4752 = vpop.f32.mrb[0].mxu0
      %v4753 = vpop.f32.mrb[0].mxu0
      %4754 = vdwg.mxu0
      %4755 = vmatprep.subr.bf16.mxu0 %v4162
      %4756 = vmatpush1.bf16.msra.mxu0 %v4161
      %4757 = vmatprep.subr.bf16.mxu0 %v4166
      %4758 = vmatpush1.bf16.msra.mxu0 %v4165
      %4759 = vmatprep.subr.bf16.mxu0 %v4170
      %4760 = vmatpush1.bf16.msra.mxu0 %v4169
      %4761 = vmatprep.subr.bf16.mxu0 %v4174
      %4762 = vmatpush1.bf16.msra.mxu0 %v4173
      %4763 = vmatprep.subr.bf16.mxu0 %v4178
      %4764 = vmatpush1.bf16.msra.mxu0 %v4177
      %4765 = vmatprep.subr.bf16.mxu0 %v4182
      %4766 = vmatpush1.bf16.msra.mxu0 %v4181
      %4767 = vmatprep.subr.bf16.mxu0 %v4186
      %4768 = vmatpush1.bf16.msra.mxu0 %v4185
      %4769 = vmatprep.subr.bf16.mxu0 %v4190
      %4770 = vmatpush1.bf16.msra.mxu0 %v4189
      %4771 = vmatprep.subr.bf16.mxu0 %v4194
      %4772 = vmatpush1.bf16.msra.mxu0 %v4193
      %4773 = vmatprep.subr.bf16.mxu0 %v4198
      %4774 = vmatpush1.bf16.msra.mxu0 %v4197
      %4775 = vmatprep.subr.bf16.mxu0 %v4202
      %4776 = vmatpush1.bf16.msra.mxu0 %v4201
      %4777 = vmatprep.subr.bf16.mxu0 %v4206
      %4778 = vmatpush1.bf16.msra.mxu0 %v4205
      %4779 = vmatprep.subr.bf16.mxu0 %v4210
      %4780 = vmatpush1.bf16.msra.mxu0 %v4209
      %4781 = vmatprep.subr.bf16.mxu0 %v4214
      %4782 = vmatpush1.bf16.msra.mxu0 %v4213
      %4783 = vmatprep.subr.bf16.mxu0 %v4218
      %4784 = vmatpush1.bf16.msra.mxu0 %v4217
      %4785 = vmatprep.subr.bf16.mxu0 %v4222
      %4786 = vmatpush1.bf16.msra.mxu0 %v4221
      %4787 = vmatprep.mubr.bf16.mxu0 %v3058
      %4788 = vmatmul.mubr.bf16.gmra.mrb[0].mxu0 %v3057
      %v4789 = vpop.f32.mrb[0].mxu0
      %v4790 = vadd.f32 %v4749, %v4789
      %v4791 = vpop.f32.mrb[0].mxu0
      %v4792 = vadd.f32 %v4751, %v4791
      %v4793 = vpop.f32.mrb[0].mxu0
      %v4794 = vpop.f32.mrb[0].mxu0
      %4795 = vdwg.mxu0
      %4796 = vmatprep.subr.bf16.mxu0 %v4226
      %4797 = vmatpush1.bf16.msra.mxu0 %v4225
      %4798 = vmatprep.subr.bf16.mxu0 %v4230
      %4799 = vmatpush1.bf16.msra.mxu0 %v4229
      %4800 = vmatprep.subr.bf16.mxu0 %v4234
      %4801 = vmatpush1.bf16.msra.mxu0 %v4233
      %4802 = vmatprep.subr.bf16.mxu0 %v4238
      %4803 = vmatpush1.bf16.msra.mxu0 %v4237
      %4804 = vmatprep.subr.bf16.mxu0 %v4242
      %4805 = vmatpush1.bf16.msra.mxu0 %v4241
      %4806 = vmatprep.subr.bf16.mxu0 %v4246
      %4807 = vmatpush1.bf16.msra.mxu0 %v4245
      %4808 = vmatprep.subr.bf16.mxu0 %v4250
      %4809 = vmatpush1.bf16.msra.mxu0 %v4249
      %4810 = vmatprep.subr.bf16.mxu0 %v4254
      %4811 = vmatpush1.bf16.msra.mxu0 %v4253
      %4812 = vmatprep.subr.bf16.mxu0 %v4258
      %4813 = vmatpush1.bf16.msra.mxu0 %v4257
      %4814 = vmatprep.subr.bf16.mxu0 %v4262
      %4815 = vmatpush1.bf16.msra.mxu0 %v4261
      %4816 = vmatprep.subr.bf16.mxu0 %v4266
      %4817 = vmatpush1.bf16.msra.mxu0 %v4265
      %4818 = vmatprep.subr.bf16.mxu0 %v4270
      %4819 = vmatpush1.bf16.msra.mxu0 %v4269
      %4820 = vmatprep.subr.bf16.mxu0 %v4274
      %4821 = vmatpush1.bf16.msra.mxu0 %v4273
      %4822 = vmatprep.subr.bf16.mxu0 %v4278
      %4823 = vmatpush1.bf16.msra.mxu0 %v4277
      %4824 = vmatprep.subr.bf16.mxu0 %v4282
      %4825 = vmatpush1.bf16.msra.mxu0 %v4281
      %4826 = vmatprep.subr.bf16.mxu0 %v4286
      %4827 = vmatpush1.bf16.msra.mxu0 %v4285
      %4828 = vmatprep.mubr.bf16.mxu0 %v3060
      %4829 = vmatmul.mubr.bf16.gmra.mrb[0].mxu0 %v3059
      %v4830 = vpop.f32.mrb[0].mxu0
      %v4831 = vadd.f32 %v4790, %v4830
      %v4832 = vpop.f32.mrb[0].mxu0
      %v4833 = vadd.f32 %v4792, %v4832
      %v4834 = vpop.f32.mrb[0].mxu0
      %v4835 = vpop.f32.mrb[0].mxu0
      %4836 = vdwg.mxu0
      %4837 = vmatprep.subr.bf16.mxu0 %v4290
      %4838 = vmatpush1.bf16.msra.mxu0 %v4289
      %4839 = vmatprep.subr.bf16.mxu0 %v4294
      %4840 = vmatpush1.bf16.msra.mxu0 %v4293
      %4841 = vmatprep.subr.bf16.mxu0 %v4298
      %4842 = vmatpush1.bf16.msra.mxu0 %v4297
      %4843 = vmatprep.subr.bf16.mxu0 %v4302
      %4844 = vmatpush1.bf16.msra.mxu0 %v4301
      %4845 = vmatprep.subr.bf16.mxu0 %v4306
      %4846 = vmatpush1.bf16.msra.mxu0 %v4305
      %4847 = vmatprep.subr.bf16.mxu0 %v4310
      %4848 = vmatpush1.bf16.msra.mxu0 %v4309
      %4849 = vmatprep.subr.bf16.mxu0 %v4314
      %4850 = vmatpush1.bf16.msra.mxu0 %v4313
      %4851 = vmatprep.subr.bf16.mxu0 %v4318
      %4852 = vmatpush1.bf16.msra.mxu0 %v4317
      %4853 = vmatprep.subr.bf16.mxu0 %v4322
      %4854 = vmatpush1.bf16.msra.mxu0 %v4321
      %4855 = vmatprep.subr.bf16.mxu0 %v4326
      %4856 = vmatpush1.bf16.msra.mxu0 %v4325
      %4857 = vmatprep.subr.bf16.mxu0 %v4330
      %4858 = vmatpush1.bf16.msra.mxu0 %v4329
      %4859 = vmatprep.subr.bf16.mxu0 %v4334
      %4860 = vmatpush1.bf16.msra.mxu0 %v4333
      %4861 = vmatprep.subr.bf16.mxu0 %v4338
      %4862 = vmatpush1.bf16.msra.mxu0 %v4337
      %4863 = vmatprep.subr.bf16.mxu0 %v4342
      %4864 = vmatpush1.bf16.msra.mxu0 %v4341
      %4865 = vmatprep.subr.bf16.mxu0 %v4346
      %4866 = vmatpush1.bf16.msra.mxu0 %v4345
      %4867 = vmatprep.subr.bf16.mxu0 %v4350
      %4868 = vmatpush1.bf16.msra.mxu0 %v4349
      %4869 = vmatprep.mubr.bf16.mxu0 %v3062
      %4870 = vmatmul.mubr.bf16.gmra.mrb[0].mxu0 %v3061
      %v4871 = vpop.f32.mrb[0].mxu0
      %v4872 = vadd.f32 %v4831, %v4871
      %v4873 = vpop.f32.mrb[0].mxu0
      %v4874 = vadd.f32 %v4833, %v4873
      %v4875 = vpop.f32.mrb[0].mxu0
      %v4876 = vpop.f32.mrb[0].mxu0
      %4877 = vdwg.mxu0
      %4878 = vmatprep.subr.bf16.mxu0 %v4036
      %4879 = vmatpush1.bf16.msra.mxu0 %v4035
      %4880 = vmatprep.subr.bf16.mxu0 %v4040
      %4881 = vmatpush1.bf16.msra.mxu0 %v4039
      %4882 = vmatprep.subr.bf16.mxu0 %v4044
      %4883 = vmatpush1.bf16.msra.mxu0 %v4043
      %4884 = vmatprep.subr.bf16.mxu0 %v4048
      %4885 = vmatpush1.bf16.msra.mxu0 %v4047
      %4886 = vmatprep.subr.bf16.mxu0 %v4052
      %4887 = vmatpush1.bf16.msra.mxu0 %v4051
      %4888 = vmatprep.subr.bf16.mxu0 %v4056
      %4889 = vmatpush1.bf16.msra.mxu0 %v4055
      %4890 = vmatprep.subr.bf16.mxu0 %v4060
      %4891 = vmatpush1.bf16.msra.mxu0 %v4059
      %4892 = vmatprep.subr.bf16.mxu0 %v4064
      %4893 = vmatpush1.bf16.msra.mxu0 %v4063
      %4894 = vmatprep.subr.bf16.mxu0 %v4068
      %4895 = vmatpush1.bf16.msra.mxu0 %v4067
      %4896 = vmatprep.subr.bf16.mxu0 %v4072
      %4897 = vmatpush1.bf16.msra.mxu0 %v4071
      %4898 = vmatprep.subr.bf16.mxu0 %v4076
      %4899 = vmatpush1.bf16.msra.mxu0 %v4075
      %4900 = vmatprep.subr.bf16.mxu0 %v4080
      %4901 = vmatpush1.bf16.msra.mxu0 %v4079
      %4902 = vmatprep.subr.bf16.mxu0 %v4084
      %4903 = vmatpush1.bf16.msra.mxu0 %v4083
      %4904 = vmatprep.subr.bf16.mxu0 %v4088
      %4905 = vmatpush1.bf16.msra.mxu0 %v4087
      %4906 = vmatprep.subr.bf16.mxu0 %v4092
      %4907 = vmatpush1.bf16.msra.mxu0 %v4091
      %4908 = vmatprep.subr.bf16.mxu0 %v4096
      %4909 = vmatpush1.bf16.msra.mxu0 %v4095
      %4910 = vmatprep.mubr.bf16.mxu0 %v3054
      %4911 = vmatmul.mubr.bf16.gmra.mrb[0].mxu0 %v3053
      %v4912 = vpop.f32.mrb[0].mxu0
      %v4913 = vadd.f32 %v2993, %v4912
      %v4914 = vpop.f32.mrb[0].mxu0
      %v4915 = vadd.f32 %v2997, %v4914
      %v4916 = vpop.f32.mrb[0].mxu0
      %v4917 = vpop.f32.mrb[0].mxu0
      %4918 = vdwg.mxu0
      %4919 = vmatprep.subr.bf16.mxu0 %v4100
      %4920 = vmatpush1.bf16.msra.mxu0 %v4099
      %4921 = vmatprep.subr.bf16.mxu0 %v4104
      %4922 = vmatpush1.bf16.msra.mxu0 %v4103
      %4923 = vmatprep.subr.bf16.mxu0 %v4108
      %4924 = vmatpush1.bf16.msra.mxu0 %v4107
      %4925 = vmatprep.subr.bf16.mxu0 %v4112
      %4926 = vmatpush1.bf16.msra.mxu0 %v4111
      %4927 = vmatprep.subr.bf16.mxu0 %v4116
      %4928 = vmatpush1.bf16.msra.mxu0 %v4115
      %4929 = vmatprep.subr.bf16.mxu0 %v4120
      %4930 = vmatpush1.bf16.msra.mxu0 %v4119
      %4931 = vmatprep.subr.bf16.mxu0 %v4124
      %4932 = vmatpush1.bf16.msra.mxu0 %v4123
      %4933 = vmatprep.subr.bf16.mxu0 %v4128
      %4934 = vmatpush1.bf16.msra.mxu0 %v4127
      %4935 = vmatprep.subr.bf16.mxu0 %v4132
      %4936 = vmatpush1.bf16.msra.mxu0 %v4131
      %4937 = vmatprep.subr.bf16.mxu0 %v4136
      %4938 = vmatpush1.bf16.msra.mxu0 %v4135
      %4939 = vmatprep.subr.bf16.mxu0 %v4140
      %4940 = vmatpush1.bf16.msra.mxu0 %v4139
      %4941 = vmatprep.subr.bf16.mxu0 %v4144
      %4942 = vmatpush1.bf16.msra.mxu0 %v4143
      %4943 = vmatprep.subr.bf16.mxu0 %v4148
      %4944 = vmatpush1.bf16.msra.mxu0 %v4147
      %4945 = vmatprep.subr.bf16.mxu0 %v4152
      %4946 = vmatpush1.bf16.msra.mxu0 %v4151
      %4947 = vmatprep.subr.bf16.mxu0 %v4156
      %4948 = vmatpush1.bf16.msra.mxu0 %v4155
      %4949 = vmatprep.subr.bf16.mxu0 %v4160
      %4950 = vmatpush1.bf16.msra.mxu0 %v4159
      %4951 = vmatprep.mubr.bf16.mxu0 %v3056
      %4952 = vmatmul.mubr.bf16.gmra.mrb[0].mxu0 %v3055
      %v4953 = vpop.f32.mrb[0].mxu0
      %v4954 = vadd.f32 %v4913, %v4953
      %v4955 = vpop.f32.mrb[0].mxu0
      %v4956 = vadd.f32 %v4915, %v4955
      %v4957 = vpop.f32.mrb[0].mxu0
      %v4958 = vpop.f32.mrb[0].mxu0
      %4959 = vdwg.mxu0
      %4960 = vmatprep.subr.bf16.mxu0 %v4164
      %4961 = vmatpush1.bf16.msra.mxu0 %v4163
      %4962 = vmatprep.subr.bf16.mxu0 %v4168
      %4963 = vmatpush1.bf16.msra.mxu0 %v4167
      %4964 = vmatprep.subr.bf16.mxu0 %v4172
      %4965 = vmatpush1.bf16.msra.mxu0 %v4171
      %4966 = vmatprep.subr.bf16.mxu0 %v4176
      %4967 = vmatpush1.bf16.msra.mxu0 %v4175
      %4968 = vmatprep.subr.bf16.mxu0 %v4180
      %4969 = vmatpush1.bf16.msra.mxu0 %v4179
      %4970 = vmatprep.subr.bf16.mxu0 %v4184
      %4971 = vmatpush1.bf16.msra.mxu0 %v4183
      %4972 = vmatprep.subr.bf16.mxu0 %v4188
      %4973 = vmatpush1.bf16.msra.mxu0 %v4187
      %4974 = vmatprep.subr.bf16.mxu0 %v4192
      %4975 = vmatpush1.bf16.msra.mxu0 %v4191
      %4976 = vmatprep.subr.bf16.mxu0 %v4196
      %4977 = vmatpush1.bf16.msra.mxu0 %v4195
      %4978 = vmatprep.subr.bf16.mxu0 %v4200
      %4979 = vmatpush1.bf16.msra.mxu0 %v4199
      %4980 = vmatprep.subr.bf16.mxu0 %v4204
      %4981 = vmatpush1.bf16.msra.mxu0 %v4203
      %4982 = vmatprep.subr.bf16.mxu0 %v4208
      %4983 = vmatpush1.bf16.msra.mxu0 %v4207
      %4984 = vmatprep.subr.bf16.mxu0 %v4212
      %4985 = vmatpush1.bf16.msra.mxu0 %v4211
      %4986 = vmatprep.subr.bf16.mxu0 %v4216
      %4987 = vmatpush1.bf16.msra.mxu0 %v4215
      %4988 = vmatprep.subr.bf16.mxu0 %v4220
      %4989 = vmatpush1.bf16.msra.mxu0 %v4219
      %4990 = vmatprep.subr.bf16.mxu0 %v4224
      %4991 = vmatpush1.bf16.msra.mxu0 %v4223
      %4992 = vmatprep.mubr.bf16.mxu0 %v3058
      %4993 = vmatmul.mubr.bf16.gmra.mrb[0].mxu0 %v3057
      %v4994 = vpop.f32.mrb[0].mxu0
      %v4995 = vadd.f32 %v4954, %v4994
      %v4996 = vpop.f32.mrb[0].mxu0
      %v4997 = vadd.f32 %v4956, %v4996
      %v4998 = vpop.f32.mrb[0].mxu0
      %v4999 = vpop.f32.mrb[0].mxu0
      %5000 = vdwg.mxu0
      %5001 = vmatprep.subr.bf16.mxu0 %v4228
      %5002 = vmatpush1.bf16.msra.mxu0 %v4227
      %5003 = vmatprep.subr.bf16.mxu0 %v4232
      %5004 = vmatpush1.bf16.msra.mxu0 %v4231
      %5005 = vmatprep.subr.bf16.mxu0 %v4236
      %5006 = vmatpush1.bf16.msra.mxu0 %v4235
      %5007 = vmatprep.subr.bf16.mxu0 %v4240
      %5008 = vmatpush1.bf16.msra.mxu0 %v4239
      %5009 = vmatprep.subr.bf16.mxu0 %v4244
      %5010 = vmatpush1.bf16.msra.mxu0 %v4243
      %5011 = vmatprep.subr.bf16.mxu0 %v4248
      %5012 = vmatpush1.bf16.msra.mxu0 %v4247
      %5013 = vmatprep.subr.bf16.mxu0 %v4252
      %5014 = vmatpush1.bf16.msra.mxu0 %v4251
      %5015 = vmatprep.subr.bf16.mxu0 %v4256
      %5016 = vmatpush1.bf16.msra.mxu0 %v4255
      %5017 = vmatprep.subr.bf16.mxu0 %v4260
      %5018 = vmatpush1.bf16.msra.mxu0 %v4259
      %5019 = vmatprep.subr.bf16.mxu0 %v4264
      %5020 = vmatpush1.bf16.msra.mxu0 %v4263
      %5021 = vmatprep.subr.bf16.mxu0 %v4268
      %5022 = vmatpush1.bf16.msra.mxu0 %v4267
      %5023 = vmatprep.subr.bf16.mxu0 %v4272
      %5024 = vmatpush1.bf16.msra.mxu0 %v4271
      %5025 = vmatprep.subr.bf16.mxu0 %v4276
      %5026 = vmatpush1.bf16.msra.mxu0 %v4275
      %5027 = vmatprep.subr.bf16.mxu0 %v4280
      %5028 = vmatpush1.bf16.msra.mxu0 %v4279
      %5029 = vmatprep.subr.bf16.mxu0 %v4284
      %5030 = vmatpush1.bf16.msra.mxu0 %v4283
      %5031 = vmatprep.subr.bf16.mxu0 %v4288
      %5032 = vmatpush1.bf16.msra.mxu0 %v4287
      %5033 = vmatprep.mubr.bf16.mxu0 %v3060
      %5034 = vmatmul.mubr.bf16.gmra.mrb[0].mxu0 %v3059
      %v5035 = vpop.f32.mrb[0].mxu0
      %v5036 = vadd.f32 %v4995, %v5035
      %v5037 = vpop.f32.mrb[0].mxu0
      %v5038 = vadd.f32 %v4997, %v5037
      %v5039 = vpop.f32.mrb[0].mxu0
      %v5040 = vpop.f32.mrb[0].mxu0
      %5041 = vdwg.mxu0
      %5042 = vmatprep.subr.bf16.mxu0 %v4292
      %5043 = vmatpush1.bf16.msra.mxu0 %v4291
      %5044 = vmatprep.subr.bf16.mxu0 %v4296
      %5045 = vmatpush1.bf16.msra.mxu0 %v4295
      %5046 = vmatprep.subr.bf16.mxu0 %v4300
      %5047 = vmatpush1.bf16.msra.mxu0 %v4299
      %5048 = vmatprep.subr.bf16.mxu0 %v4304
      %5049 = vmatpush1.bf16.msra.mxu0 %v4303
      %5050 = vmatprep.subr.bf16.mxu0 %v4308
      %5051 = vmatpush1.bf16.msra.mxu0 %v4307
      %5052 = vmatprep.subr.bf16.mxu0 %v4312
      %5053 = vmatpush1.bf16.msra.mxu0 %v4311
      %5054 = vmatprep.subr.bf16.mxu0 %v4316
      %5055 = vmatpush1.bf16.msra.mxu0 %v4315
      %5056 = vmatprep.subr.bf16.mxu0 %v4320
      %5057 = vmatpush1.bf16.msra.mxu0 %v4319
      %5058 = vmatprep.subr.bf16.mxu0 %v4324
      %5059 = vmatpush1.bf16.msra.mxu0 %v4323
      %5060 = vmatprep.subr.bf16.mxu0 %v4328
      %5061 = vmatpush1.bf16.msra.mxu0 %v4327
      %5062 = vmatprep.subr.bf16.mxu0 %v4332
      %5063 = vmatpush1.bf16.msra.mxu0 %v4331
      %5064 = vmatprep.subr.bf16.mxu0 %v4336
      %5065 = vmatpush1.bf16.msra.mxu0 %v4335
      %5066 = vmatprep.subr.bf16.mxu0 %v4340
      %5067 = vmatpush1.bf16.msra.mxu0 %v4339
      %5068 = vmatprep.subr.bf16.mxu0 %v4344
      %5069 = vmatpush1.bf16.msra.mxu0 %v4343
      %5070 = vmatprep.subr.bf16.mxu0 %v4348
      %5071 = vmatpush1.bf16.msra.mxu0 %v4347
      %5072 = vmatprep.subr.bf16.mxu0 %v4352
      %5073 = vmatpush1.bf16.msra.mxu0 %v4351
      %5074 = vmatprep.mubr.bf16.mxu0 %v3062
      %5075 = vmatmul.mubr.bf16.gmra.mrb[0].mxu0 %v3061
      %v5076 = vpop.f32.mrb[0].mxu0
      %v5077 = vadd.f32 %v5036, %v5076
      %v5078 = vpop.f32.mrb[0].mxu0
      %v5079 = vadd.f32 %v5038, %v5078
      %v5080 = vpop.f32.mrb[0].mxu0
      %v5081 = vpop.f32.mrb[0].mxu0
      %5082 = vdwg.mxu0
      %v5083 = vmax.f32 %v4872, 0.0
      %v5084 = vmax.f32 %v4874, 0.0
      %v5085 = vmax.f32 %v5077, 0.0
      %v5086 = vmax.f32 %v5079, 0.0
      %v5087 = vpack.c.bf16 %v5083, %v5083
      %v5088 = vpack.c.bf16 %v5084, %v5084
      %v5089 = vpack.c.bf16 %v5085, %v5085
      %v5090 = vpack.c.bf16 %v5086, %v5086
      %v5091 = vld [vmem:[%s7] sm:$0xf]
      %v5092 = vld [vmem:[%s7 + $0x4] sm:$0xf]
      %v5093 = vld [vmem:[%s7 + $0x8] sm:$0xf]
      %v5094 = vld [vmem:[%s7 + $0xc] sm:$0xf]
      %v5095 = vld [vmem:[%s7 + $0x10] sm:$0xf]
      %v5096 = vld [vmem:[%s7 + $0x14] sm:$0xf]
      %v5097 = vld [vmem:[%s7 + $0x18] sm:$0xf]
      %v5098 = vld [vmem:[%s7 + $0x1c] sm:$0xf]
      %v5099 = vld [vmem:[%s7 + $0x20] sm:$0xf]
      %v5100 = vld [vmem:[%s7 + $0x24] sm:$0xf]
      %v5101 = vld [vmem:[%s7 + $0x28] sm:$0xf]
      %v5102 = vld [vmem:[%s7 + $0x2c] sm:$0xf]
      %v5103 = vld [vmem:[%s7 + $0x30] sm:$0xf]
      %v5104 = vld [vmem:[%s7 + $0x34] sm:$0xf]
      %v5105 = vld [vmem:[%s7 + $0x38] sm:$0xf]
      %v5106 = vld [vmem:[%s7 + $0x3c] sm:$0xf]
      %v5107 = vld [vmem:[%s7 + $0x40] sm:$0xf]
      %v5108 = vld [vmem:[%s7 + $0x44] sm:$0xf]
      %v5109 = vld [vmem:[%s7 + $0x48] sm:$0xf]
      %v5110 = vld [vmem:[%s7 + $0x4c] sm:$0xf]
      %v5111 = vld [vmem:[%s7 + $0x50] sm:$0xf]
      %v5112 = vld [vmem:[%s7 + $0x54] sm:$0xf]
      %v5113 = vld [vmem:[%s7 + $0x58] sm:$0xf]
      %v5114 = vld [vmem:[%s7 + $0x5c] sm:$0xf]
      %v5115 = vld [vmem:[%s7 + $0x60] sm:$0xf]
      %v5116 = vld [vmem:[%s7 + $0x64] sm:$0xf]
      %v5117 = vld [vmem:[%s7 + $0x68] sm:$0xf]
      %v5118 = vld [vmem:[%s7 + $0x6c] sm:$0xf]
      %v5119 = vld [vmem:[%s7 + $0x70] sm:$0xf]
      %v5120 = vld [vmem:[%s7 + $0x74] sm:$0xf]
      %v5121 = vld [vmem:[%s7 + $0x78] sm:$0xf]
      %v5122 = vld [vmem:[%s7 + $0x7c] sm:$0xf]
      %v5123 = vld [vmem:[%s7 + $0x80] sm:$0xf]
      %v5124 = vld [vmem:[%s7 + $0x84] sm:$0xf]
      %v5125 = vld [vmem:[%s7 + $0x88] sm:$0xf]
      %v5126 = vld [vmem:[%s7 + $0x8c] sm:$0xf]
      %v5127 = vld [vmem:[%s7 + $0x90] sm:$0xf]
      %v5128 = vld [vmem:[%s7 + $0x94] sm:$0xf]
      %v5129 = vld [vmem:[%s7 + $0x98] sm:$0xf]
      %v5130 = vld [vmem:[%s7 + $0x9c] sm:$0xf]
      %v5131 = vld [vmem:[%s7 + $0xa0] sm:$0xf]
      %v5132 = vld [vmem:[%s7 + $0xa4] sm:$0xf]
      %v5133 = vld [vmem:[%s7 + $0xa8] sm:$0xf]
      %v5134 = vld [vmem:[%s7 + $0xac] sm:$0xf]
      %v5135 = vld [vmem:[%s7 + $0xb0] sm:$0xf]
      %v5136 = vld [vmem:[%s7 + $0xb4] sm:$0xf]
      %v5137 = vld [vmem:[%s7 + $0xb8] sm:$0xf]
      %v5138 = vld [vmem:[%s7 + $0xbc] sm:$0xf]
      %v5139 = vld [vmem:[%s7 + $0xc0] sm:$0xf]
      %v5140 = vld [vmem:[%s7 + $0xc4] sm:$0xf]
      %v5141 = vld [vmem:[%s7 + $0xc8] sm:$0xf]
      %v5142 = vld [vmem:[%s7 + $0xcc] sm:$0xf]
      %v5143 = vld [vmem:[%s7 + $0xd0] sm:$0xf]
      %v5144 = vld [vmem:[%s7 + $0xd4] sm:$0xf]
      %v5145 = vld [vmem:[%s7 + $0xd8] sm:$0xf]
      %v5146 = vld [vmem:[%s7 + $0xdc] sm:$0xf]
      %v5147 = vld [vmem:[%s7 + $0xe0] sm:$0xf]
      %v5148 = vld [vmem:[%s7 + $0xe4] sm:$0xf]
      %v5149 = vld [vmem:[%s7 + $0xe8] sm:$0xf]
      %v5150 = vld [vmem:[%s7 + $0xec] sm:$0xf]
      %v5151 = vld [vmem:[%s7 + $0xf0] sm:$0xf]
      %v5152 = vld [vmem:[%s7 + $0xf4] sm:$0xf]
      %v5153 = vld [vmem:[%s7 + $0xf8] sm:$0xf]
      %v5154 = vld [vmem:[%s7 + $0xfc] sm:$0xf]
      %v5155 = vld [vmem:[%s8] sm:$0x1]
      %v5157 = vlaneseq
      %v5158 = vshrl.u32 %v5157, 7
      %v5159 = vsub.s32 0, %v5158
      %v5160 = vrot.slane %v5155, %v5159
      %v5226 = vunpack.c.l.b16 %v5091
      %v5227 = vunpack.c.l.b16 %v5092
      %v5228 = vunpack.c.l.b16 %v5093
      %v5229 = vunpack.c.l.b16 %v5094
      %v5230 = vunpack.c.l.b16 %v5095
      %v5231 = vunpack.c.l.b16 %v5096
      %v5232 = vunpack.c.l.b16 %v5097
      %v5233 = vunpack.c.l.b16 %v5098
      %v5234 = vunpack.c.l.b16 %v5099
      %v5235 = vunpack.c.l.b16 %v5100
      %v5236 = vunpack.c.l.b16 %v5101
      %v5237 = vunpack.c.l.b16 %v5102
      %v5238 = vunpack.c.l.b16 %v5103
      %v5239 = vunpack.c.l.b16 %v5104
      %v5240 = vunpack.c.l.b16 %v5105
      %v5241 = vunpack.c.l.b16 %v5106
      %v5242 = vunpack.c.l.b16 %v5107
      %v5243 = vunpack.c.l.b16 %v5108
      %v5244 = vunpack.c.l.b16 %v5109
      %v5245 = vunpack.c.l.b16 %v5110
      %v5246 = vunpack.c.l.b16 %v5111
      %v5247 = vunpack.c.l.b16 %v5112
      %v5248 = vunpack.c.l.b16 %v5113
      %v5249 = vunpack.c.l.b16 %v5114
      %v5250 = vunpack.c.l.b16 %v5115
      %v5251 = vunpack.c.l.b16 %v5116
      %v5252 = vunpack.c.l.b16 %v5117
      %v5253 = vunpack.c.l.b16 %v5118
      %v5254 = vunpack.c.l.b16 %v5119
      %v5255 = vunpack.c.l.b16 %v5120
      %v5256 = vunpack.c.l.b16 %v5121
      %v5257 = vunpack.c.l.b16 %v5122
      %v5258 = vunpack.c.l.b16 %v5123
      %v5259 = vunpack.c.l.b16 %v5124
      %v5260 = vunpack.c.l.b16 %v5125
      %v5261 = vunpack.c.l.b16 %v5126
      %v5262 = vunpack.c.l.b16 %v5127
      %v5263 = vunpack.c.l.b16 %v5128
      %v5264 = vunpack.c.l.b16 %v5129
      %v5265 = vunpack.c.l.b16 %v5130
      %v5266 = vunpack.c.l.b16 %v5131
      %v5267 = vunpack.c.l.b16 %v5132
      %v5268 = vunpack.c.l.b16 %v5133
      %v5269 = vunpack.c.l.b16 %v5134
      %v5270 = vunpack.c.l.b16 %v5135
      %v5271 = vunpack.c.l.b16 %v5136
      %v5272 = vunpack.c.l.b16 %v5137
      %v5273 = vunpack.c.l.b16 %v5138
      %v5274 = vunpack.c.l.b16 %v5139
      %v5275 = vunpack.c.l.b16 %v5140
      %v5276 = vunpack.c.l.b16 %v5141
      %v5277 = vunpack.c.l.b16 %v5142
      %v5278 = vunpack.c.l.b16 %v5143
      %v5279 = vunpack.c.l.b16 %v5144
      %v5280 = vunpack.c.l.b16 %v5145
      %v5281 = vunpack.c.l.b16 %v5146
      %v5282 = vunpack.c.l.b16 %v5147
      %v5283 = vunpack.c.l.b16 %v5148
      %v5284 = vunpack.c.l.b16 %v5149
      %v5285 = vunpack.c.l.b16 %v5150
      %v5286 = vunpack.c.l.b16 %v5151
      %v5287 = vunpack.c.l.b16 %v5152
      %v5288 = vunpack.c.l.b16 %v5153
      %v5289 = vunpack.c.l.b16 %v5154
      %v5290 = vpack.c.b16 %v5227, %v5226
      %v5291 = vpack.c.b16 %v5229, %v5228
      %v5292 = vpack.c.b16 %v5231, %v5230
      %v5293 = vpack.c.b16 %v5233, %v5232
      %v5294 = vpack.c.b16 %v5235, %v5234
      %v5295 = vpack.c.b16 %v5237, %v5236
      %v5296 = vpack.c.b16 %v5239, %v5238
      %v5297 = vpack.c.b16 %v5241, %v5240
      %v5298 = vpack.c.b16 %v5243, %v5242
      %v5299 = vpack.c.b16 %v5245, %v5244
      %v5300 = vpack.c.b16 %v5247, %v5246
      %v5301 = vpack.c.b16 %v5249, %v5248
      %v5302 = vpack.c.b16 %v5251, %v5250
      %v5303 = vpack.c.b16 %v5253, %v5252
      %v5304 = vpack.c.b16 %v5255, %v5254
      %v5305 = vpack.c.b16 %v5257, %v5256
      %v5306 = vpack.c.b16 %v5259, %v5258
      %v5307 = vpack.c.b16 %v5261, %v5260
      %v5308 = vpack.c.b16 %v5263, %v5262
      %v5309 = vpack.c.b16 %v5265, %v5264
      %v5310 = vpack.c.b16 %v5267, %v5266
      %v5311 = vpack.c.b16 %v5269, %v5268
      %v5312 = vpack.c.b16 %v5271, %v5270
      %v5313 = vpack.c.b16 %v5273, %v5272
      %v5314 = vpack.c.b16 %v5275, %v5274
      %v5315 = vpack.c.b16 %v5277, %v5276
      %v5316 = vpack.c.b16 %v5279, %v5278
      %v5317 = vpack.c.b16 %v5281, %v5280
      %v5318 = vpack.c.b16 %v5283, %v5282
      %v5319 = vpack.c.b16 %v5285, %v5284
      %v5320 = vpack.c.b16 %v5287, %v5286
      %v5321 = vpack.c.b16 %v5289, %v5288
      %5354 = vmatprep.subr.bf16.mxu0 0
      %5355 = vmatpush1.bf16.msra.mxu0 %v5290
      %5356 = vmatprep.subr.bf16.mxu0 0
      %5357 = vmatpush1.bf16.msra.mxu0 %v5291
      %5358 = vmatprep.subr.bf16.mxu0 0
      %5359 = vmatpush1.bf16.msra.mxu0 %v5292
      %5360 = vmatprep.subr.bf16.mxu0 0
      %5361 = vmatpush1.bf16.msra.mxu0 %v5293
      %5362 = vmatprep.subr.bf16.mxu0 0
      %5363 = vmatpush1.bf16.msra.mxu0 %v5294
      %5364 = vmatprep.subr.bf16.mxu0 0
      %5365 = vmatpush1.bf16.msra.mxu0 %v5295
      %5366 = vmatprep.subr.bf16.mxu0 0
      %5367 = vmatpush1.bf16.msra.mxu0 %v5296
      %5368 = vmatprep.subr.bf16.mxu0 0
      %5369 = vmatpush1.bf16.msra.mxu0 %v5297
      %5370 = vmatprep.subr.bf16.mxu0 0
      %5371 = vmatpush1.bf16.msra.mxu0 %v5298
      %5372 = vmatprep.subr.bf16.mxu0 0
      %5373 = vmatpush1.bf16.msra.mxu0 %v5299
      %5374 = vmatprep.subr.bf16.mxu0 0
      %5375 = vmatpush1.bf16.msra.mxu0 %v5300
      %5376 = vmatprep.subr.bf16.mxu0 0
      %5377 = vmatpush1.bf16.msra.mxu0 %v5301
      %5378 = vmatprep.subr.bf16.mxu0 0
      %5379 = vmatpush1.bf16.msra.mxu0 %v5302
      %5380 = vmatprep.subr.bf16.mxu0 0
      %5381 = vmatpush1.bf16.msra.mxu0 %v5303
      %5382 = vmatprep.subr.bf16.mxu0 0
      %5383 = vmatpush1.bf16.msra.mxu0 %v5304
      %5384 = vmatprep.subr.bf16.mxu0 0
      %5385 = vmatpush1.bf16.msra.mxu0 %v5305
      %5386 = vmatprep.mubr.bf16.mxu0 %v5088
      %5387 = vmatmul.mubr.bf16.gmra.mrb[0].mxu0 %v5087
      %v5388 = vpop.f32.mrb[0].mxu0
      %v5389 = vadd.f32 %v5160, %v5388
      %v5390 = vpop.f32.mrb[0].mxu0
      %v5391 = vpop.f32.mrb[0].mxu0
      %v5392 = vpop.f32.mrb[0].mxu0
      %5393 = vdwg.mxu0
      %5394 = vmatprep.subr.bf16.mxu0 0
      %5395 = vmatpush1.bf16.msra.mxu0 %v5306
      %5396 = vmatprep.subr.bf16.mxu0 0
      %5397 = vmatpush1.bf16.msra.mxu0 %v5307
      %5398 = vmatprep.subr.bf16.mxu0 0
      %5399 = vmatpush1.bf16.msra.mxu0 %v5308
      %5400 = vmatprep.subr.bf16.mxu0 0
      %5401 = vmatpush1.bf16.msra.mxu0 %v5309
      %5402 = vmatprep.subr.bf16.mxu0 0
      %5403 = vmatpush1.bf16.msra.mxu0 %v5310
      %5404 = vmatprep.subr.bf16.mxu0 0
      %5405 = vmatpush1.bf16.msra.mxu0 %v5311
      %5406 = vmatprep.subr.bf16.mxu0 0
      %5407 = vmatpush1.bf16.msra.mxu0 %v5312
      %5408 = vmatprep.subr.bf16.mxu0 0
      %5409 = vmatpush1.bf16.msra.mxu0 %v5313
      %5410 = vmatprep.subr.bf16.mxu0 0
      %5411 = vmatpush1.bf16.msra.mxu0 %v5314
      %5412 = vmatprep.subr.bf16.mxu0 0
      %5413 = vmatpush1.bf16.msra.mxu0 %v5315
      %5414 = vmatprep.subr.bf16.mxu0 0
      %5415 = vmatpush1.bf16.msra.mxu0 %v5316
      %5416 = vmatprep.subr.bf16.mxu0 0
      %5417 = vmatpush1.bf16.msra.mxu0 %v5317
      %5418 = vmatprep.subr.bf16.mxu0 0
      %5419 = vmatpush1.bf16.msra.mxu0 %v5318
      %5420 = vmatprep.subr.bf16.mxu0 0
      %5421 = vmatpush1.bf16.msra.mxu0 %v5319
      %5422 = vmatprep.subr.bf16.mxu0 0
      %5423 = vmatpush1.bf16.msra.mxu0 %v5320
      %5424 = vmatprep.subr.bf16.mxu0 0
      %5425 = vmatpush1.bf16.msra.mxu0 %v5321
      %5426 = vmatprep.mubr.bf16.mxu0 %v5090
      %5427 = vmatmul.mubr.bf16.gmra.mrb[0].mxu0 %v5089
      %v5428 = vpop.f32.mrb[0].mxu0
      %v5429 = vadd.f32 %v5389, %v5428
      %v5430 = vpop.f32.mrb[0].mxu0
      %v5431 = vpop.f32.mrb[0].mxu0
      %v5432 = vpop.f32.mrb[0].mxu0
      %5433 = vdwg.mxu0
      %5434 = vst [vmem:[%s330] sm:$0x3] %v5429
      %p5435 = scmp.lt.s32.totalorder %s20, 1
      %s5436 = scalar_select %p5435, %s20, 1
      %s5437 = smul.addr %s5436, 2
      %s5438 = scalar_lea.vmem %s9, %s5437
      // Predicated region
      $region57: #{_lambda_.1} parent=55 // pred_check
        %p5439 = pneg %p232
      $region58: #{_lambda_.1} parent=55 // pred_check_branch
        %5441 = sbr.rel (%p5439) target = $region60
      $region59: #{_lambda_.1} parent=55 // pred_region
        _
      $region60: #{_lambda_.1} parent=55 // pred_fallthru
        _
    $region56: #{_lambda_.1} parent=5 // pred_fallthru
      _
    %p5442 = scmp.le.s32.totalorder 2, %s15
    // Predicated region
    $region61: #{_lambda_.1} parent=5 // pred_check
      %p5443 = pneg %p5442
    $region62: #{_lambda_.1} parent=5 // pred_check_branch
      %5445 = sbr.rel (%p5443) target = $region64
    $region63: #{_lambda_.1} parent=5 // pred_region
      %s5446 = ssub.s32 %s15, 2
      // Predicated region
      $region65: #{_lambda_.1} parent=63 // pred_check
        %p5447 = pneg %p238
      $region66: #{_lambda_.1} parent=63 // pred_check_branch
        %5449 = sbr.rel (%p5447) target = $region68
      $region67: #{_lambda_.1} parent=63 // pred_region
        %p5450 = scmp.lt.s32.totalorder %s21, 1
        %s5451 = scalar_select %p5450, %s21, 1
        %s5452 = smul.addr %s5451, 2
        %s5453 = scalar_lea.vmem %s9, %s5452
      $region68: #{_lambda_.1} parent=63 // pred_fallthru
        _
    $region64: #{_lambda_.1} parent=5 // pred_fallthru
      _
  $region6: #{_lambda_.1} parent=0 // loop_footer
    %s19 = sadd.s32 1, %s15
  $region7: #{_lambda_.1} parent=0 // loop_footer_branch
    %14 = sbr.rel target = $region3
  $region8: #{_lambda_.1} parent=0 // loop_exit
    _

</llo_original>
